<compile_context>
chip_gen: v7x
topology: tpu7x:2x2x1
jax: 0.10.0
libtpu: 0.0.40
codegen_flags: <defaults>
</compile_context>

<pallas_src>
import functools

import jax
import jax.numpy as jnp
from jax.experimental import pallas as pl
from jax.experimental.pallas import tpu as pltpu

# logical (PyTorch) dims
D_IN = 784      # 28 * 28
H = 400         # hidden width
Z = 20          # latent dim (VAE.generate: torch.randn(n, 20))

# lane-padded dims (multiples of 128)
D_IN_P = 896    # 7 * 128
H_P = 512       # 4 * 128
ZP = 128        # one 128-lane group per latent slab (mu / logvar)


def _round_up(n, m):
    return (n + m - 1) // m * m


def _vae_kernel(x_ref, eps_ref,
                w1_ref, b1_ref,
                wmulv_ref, bmulv_ref,
                w3_ref, b3_ref,
                w4_ref, b4_ref,
                recon_ref, mu_ref, lv_ref):
    # ---- encoder: fc1 + ReLU ----
    x = x_ref[...].astype(jnp.bfloat16)                              # (TB, 896)
    h1 = jnp.dot(x, w1_ref[...], preferred_element_type=jnp.float32)
    h1 = jnp.maximum(h1 + b1_ref[...], 0.0)                          # (TB, 512) f32

    # ---- fused mu|logvar head: single MXU dot, two 128-lane slabs ----
    mulv = jnp.dot(h1.astype(jnp.bfloat16), wmulv_ref[...],
                   preferred_element_type=jnp.float32) + bmulv_ref[...]
    mu = mulv[:, :ZP]                                                # lane-group aligned (free)
    lv = mulv[:, ZP:]

    # ---- reparameterize (f32 elementwise; padded lanes stay 0 since eps pad = 0) ----
    z = mu + eps_ref[...] * jnp.exp(0.5 * lv)                        # (TB, 128)

    # ---- decoder: fc3 + ReLU, fc4 + sigmoid ----
    h3 = jnp.dot(z.astype(jnp.bfloat16), w3_ref[...],
                 preferred_element_type=jnp.float32)
    h3 = jnp.maximum(h3 + b3_ref[...], 0.0)                          # (TB, 512)
    logits = jnp.dot(h3.astype(jnp.bfloat16), w4_ref[...],
                     preferred_element_type=jnp.float32) + b4_ref[...]

    recon_ref[...] = jax.nn.sigmoid(logits)                          # (TB, 896)
    mu_ref[...] = mu
    lv_ref[...] = lv


@functools.partial(jax.jit, static_argnames=("tb",))
def vae_forward(image, eps, kparams, *, tb=256):
    """image: (B,1,28,28) f32 NCHW, eps: (B,20) f32, kparams from prepare_params.

    Returns (recon (B,784), mu (B,20), logvar (B,20)), all f32.
    Use tb=128 on v5e (4x128 MXU); 256 on v6e/v7x.
    """
    B = image.shape[0]
    TB = min(tb, _round_up(B, 8))          # batch tile: multiple of 8 sublanes
    B_pad = _round_up(B, TB)

    # glue: flatten NCHW -> (B, 784), zero-pad batch and lane dims
    x = image.reshape(B, D_IN).astype(jnp.float32)
    x_p = jnp.zeros((B_pad, D_IN_P), jnp.float32).at[:B, :D_IN].set(x)
    eps_p = jnp.zeros((B_pad, ZP), jnp.float32).at[:B, :Z].set(eps.astype(jnp.float32))

    (w1p, b1p, wmulvp, bmulvp, w3p, b3p, w4p, b4p) = kparams
    grid = (B_pad // TB,)

    def act_spec(d):                       # batch-tiled activation / output
        return pl.BlockSpec((TB, d), lambda i: (i, 0))

    def fixed_spec(shape):                 # weight/bias: VMEM-resident across tiles
        return pl.BlockSpec(shape, lambda i: (0, 0))

    in_specs = [
        act_spec(D_IN_P),                  # x
        act_spec(ZP),                      # eps
        fixed_spec(w1p.shape), fixed_spec(b1p.shape),
        fixed_spec(wmulvp.shape), fixed_spec(bmulvp.shape),
        fixed_spec(w3p.shape), fixed_spec(b3p.shape),
        fixed_spec(w4p.shape), fixed_spec(b4p.shape),
    ]
    out_specs = (act_spec(D_IN_P), act_spec(ZP), act_spec(ZP))
    out_shape = (
        jax.ShapeDtypeStruct((B_pad, D_IN_P), jnp.float32),   # recon (padded)
        jax.ShapeDtypeStruct((B_pad, ZP), jnp.float32),       # mu    (padded)
        jax.ShapeDtypeStruct((B_pad, ZP), jnp.float32),       # lv    (padded)
    )

    recon_p, mu_p, lv_p = pl.pallas_call(
        _vae_kernel,
        grid=grid,
        in_specs=in_specs,
        out_specs=out_specs,
        out_shape=out_shape,
        compiler_params=pltpu.CompilerParams(
            dimension_semantics=("parallel",),
            vmem_limit_bytes=32 << 20,
        ),
    )(x_p, eps_p, w1p, b1p, wmulvp, bmulvp, w3p, b3p, w4p, b4p)

    return recon_p[:B, :D_IN], mu_p[:B, :Z], lv_p[:B, :Z]


def init_params(key):
    """f32 Linear params in (in, out) layout, PyTorch nn.Linear default init."""
    ks = jax.random.split(key, 5)

    def linear(k, d_in, d_out):
        bound = 1.0 / jnp.sqrt(d_in)
        kw, kb = jax.random.split(k)
        w = jax.random.uniform(kw, (d_in, d_out), jnp.float32, -bound, bound)
        b = jax.random.uniform(kb, (1, d_out), jnp.float32, -bound, bound)
        return w, b

    w1, b1 = linear(ks[0], D_IN, H)        # fc1
    wmu, bmu = linear(ks[1], H, Z)         # fc21 (mu)
    wlv, blv = linear(ks[2], H, Z)         # fc22 (logvar)
    w3, b3 = linear(ks[3], Z, H)           # fc3
    w4, b4 = linear(ks[4], H, D_IN)        # fc4
    return (w1, b1, wmu, bmu, wlv, blv, w3, b3, w4, b4)


def prepare_params(params):
    """Zero-pad to lane-dense shapes, fuse the mu/logvar head, cast weights to bf16."""
    (w1, b1, wmu, bmu, wlv, blv, w3, b3, w4, b4) = params
    bf16 = jnp.bfloat16

    w1p = jnp.zeros((D_IN_P, H_P), bf16).at[:D_IN, :H].set(w1.astype(bf16))
    b1p = jnp.zeros((1, H_P), jnp.float32).at[:, :H].set(b1)

    wmulvp = (jnp.zeros((H_P, 2 * ZP), bf16)
              .at[:H, :Z].set(wmu.astype(bf16))
              .at[:H, ZP:ZP + Z].set(wlv.astype(bf16)))
    bmulvp = (jnp.zeros((1, 2 * ZP), jnp.float32)
              .at[:, :Z].set(bmu)
              .at[:, ZP:ZP + Z].set(blv))

    w3p = jnp.zeros((ZP, H_P), bf16).at[:Z, :H].set(w3.astype(bf16))
    b3p = jnp.zeros((1, H_P), jnp.float32).at[:, :H].set(b3)

    w4p = jnp.zeros((H_P, D_IN_P), bf16).at[:H, :D_IN].set(w4.astype(bf16))
    b4p = jnp.zeros((1, D_IN_P), jnp.float32).at[:, :D_IN].set(b4)

    return (w1p, b1p, wmulvp, bmulvp, w3p, b3p, w4p, b4p)


def vae_reference(image, eps, params, *, bf16_matmuls=True):
    """Pure-JAX reference. bf16_matmuls=True mirrors the kernel's bf16-input /
    f32-accumulate matmuls; False is the module's pure-f32 math."""
    (w1, b1, wmu, bmu, wlv, blv, w3, b3, w4, b4) = params
    c = (lambda a: a.astype(jnp.bfloat16)) if bf16_matmuls else (lambda a: a)

    def mm(a, w):
        return jnp.dot(c(a), c(w), preferred_element_type=jnp.float32)

    x = image.reshape(image.shape[0], D_IN)
    h1 = jnp.maximum(mm(x, w1) + b1, 0.0)
    mu = mm(h1, wmu) + bmu
    lv = mm(h1, wlv) + blv
    z = mu + eps * jnp.exp(0.5 * lv)
    h3 = jnp.maximum(mm(z, w3) + b3, 0.0)
    recon = jax.nn.sigmoid(mm(h3, w4) + b4)
    return recon, mu, lv


if __name__ == "__main__":
    key = jax.random.PRNGKey(0)
    k_img, k_eps, k_par = jax.random.split(key, 3)

    params = init_params(k_par)
    kparams = prepare_params(params)

    # ---- small-batch smoke test (grid=(1,)) ----
    B = 8
    image = jax.random.uniform(k_img, (B, 1, 28, 28), jnp.float32)   # NCHW like PyTorch
    eps = jax.random.normal(k_eps, (B, Z), jnp.float32)              # reparam noise

    recon, mu, logvar = vae_forward(image, eps, kparams)
    jax.block_until_ready((recon, mu, logvar))
    assert recon.shape == (B, D_IN) and mu.shape == (B, Z) and logvar.shape == (B, Z)

    # tight check against a reference that mirrors the kernel's bf16 matmul inputs
    r_bf, mu_bf, lv_bf = vae_reference(image, eps, params, bf16_matmuls=True)
    assert jnp.allclose(recon, r_bf, atol=2e-3, rtol=2e-3)
    assert jnp.allclose(mu, mu_bf, atol=2e-3, rtol=2e-3)
    assert jnp.allclose(logvar, lv_bf, atol=2e-3, rtol=2e-3)

    # loose check against the module's pure-f32 math (bf16 weights widen the gap)
    r32, mu32, lv32 = vae_reference(image, eps, params, bf16_matmuls=False)
    assert jnp.allclose(recon, r32, atol=5e-2, rtol=5e-2)
    assert jnp.allclose(mu, mu32, atol=5e-2, rtol=5e-2)
    assert jnp.allclose(logvar, lv32, atol=5e-2, rtol=5e-2)

    # ---- multi-tile batch: exercises the batch grid + padding path ----
    B2 = 300                                   # pads to 512 -> grid=(2,), TB=256
    image2 = jax.random.uniform(jax.random.PRNGKey(1), (B2, 1, 28, 28), jnp.float32)
    eps2 = jax.random.normal(jax.random.PRNGKey(2), (B2, Z), jnp.float32)
    recon2, mu2, lv2 = vae_forward(image2, eps2, kparams)
    jax.block_until_ready((recon2, mu2, lv2))
    r2, m2, l2 = vae_reference(image2, eps2, params, bf16_matmuls=True)
    assert jnp.allclose(recon2, r2, atol=2e-3, rtol=2e-3)
    assert jnp.allclose(mu2, m2, atol=2e-3, rtol=2e-3)
    assert jnp.allclose(lv2, l2, atol=2e-3, rtol=2e-3)

    print("KERNEL_OK")
</pallas_src>

<mosaic_0001>
module attributes {stable_mosaic.version = 11 : i64} {
  func.func @_vae_kernel(%arg0: i32, %arg1: memref<8x896xf32, #tpu.memory_space<vmem>>, %arg2: memref<8x128xf32, #tpu.memory_space<vmem>>, %arg3: memref<896x512xbf16, #tpu.memory_space<vmem>>, %arg4: memref<1x512xf32, #tpu.memory_space<vmem>>, %arg5: memref<512x256xbf16, #tpu.memory_space<vmem>>, %arg6: memref<1x256xf32, #tpu.memory_space<vmem>>, %arg7: memref<128x512xbf16, #tpu.memory_space<vmem>>, %arg8: memref<1x512xf32, #tpu.memory_space<vmem>>, %arg9: memref<512x896xbf16, #tpu.memory_space<vmem>>, %arg10: memref<1x896xf32, #tpu.memory_space<vmem>>, %arg11: memref<8x896xf32, #tpu.memory_space<vmem>>, %arg12: memref<8x128xf32, #tpu.memory_space<vmem>>, %arg13: memref<8x128xf32, #tpu.memory_space<vmem>>) attributes {dimension_semantics = [#tpu.dimension_semantics<parallel>], iteration_bounds = array<i64: 1>, scalar_prefetch = 0 : i64, scratch_operands = 0 : i64, tpu.core_type = #tpu.core_type<tc>, window_params = [{transform_indices = @transform_0, window_bounds = array<i64: 8, 896>}, {transform_indices = @transform_1, window_bounds = array<i64: 8, 128>}, {pipeline_mode = #tpu.pipeline_mode<synchronous>, transform_indices = @transform_2, window_bounds = array<i64: 896, 512>}, {pipeline_mode = #tpu.pipeline_mode<synchronous>, transform_indices = @transform_3, window_bounds = array<i64: 1, 512>}, {pipeline_mode = #tpu.pipeline_mode<synchronous>, transform_indices = @transform_4, window_bounds = array<i64: 512, 256>}, {pipeline_mode = #tpu.pipeline_mode<synchronous>, transform_indices = @transform_5, window_bounds = array<i64: 1, 256>}, {pipeline_mode = #tpu.pipeline_mode<synchronous>, transform_indices = @transform_6, window_bounds = array<i64: 128, 512>}, {pipeline_mode = #tpu.pipeline_mode<synchronous>, transform_indices = @transform_7, window_bounds = array<i64: 1, 512>}, {pipeline_mode = #tpu.pipeline_mode<synchronous>, transform_indices = @transform_8, window_bounds = array<i64: 512, 896>}, {pipeline_mode = #tpu.pipeline_mode<synchronous>, transform_indices = @transform_9, window_bounds = array<i64: 1, 896>}, {transform_indices = @transform_10, window_bounds = array<i64: 8, 896>}, {transform_indices = @transform_11, window_bounds = array<i64: 8, 128>}, {transform_indices = @transform_12, window_bounds = array<i64: 8, 128>}]} {
    %c0 = arith.constant 0 : index
    %c0_0 = arith.constant 0 : index
    %0 = vector.load %arg1[%c0, %c0_0] : memref<8x896xf32, #tpu.memory_space<vmem>>, vector<8x896xf32>
    %1 = arith.truncf %0 : vector<8x896xf32> to vector<8x896xbf16>
    %c0_1 = arith.constant 0 : index
    %c0_2 = arith.constant 0 : index
    %2 = vector.load %arg3[%c0_1, %c0_2] : memref<896x512xbf16, #tpu.memory_space<vmem>>, vector<896x512xbf16>
    %cst = arith.constant dense<0.000000e+00> : vector<8x512xf32>
    %3 = tpu.matmul %1, %2, %cst {dimension_numbers = #tpu.dot_dimension_numbers<[1], [0], [0], [1], [0, 0, 1, 1], [], []>} : vector<8x896xbf16>, vector<896x512xbf16>, vector<8x512xf32> -> vector<8x512xf32>
    %c0_3 = arith.constant 0 : index
    %c0_4 = arith.constant 0 : index
    %4 = vector.load %arg4[%c0_3, %c0_4] : memref<1x512xf32, #tpu.memory_space<vmem>>, vector<1x512xf32>
    %5 = vector.broadcast %4 : vector<1x512xf32> to vector<8x512xf32>
    %6 = arith.addf %3, %5 : vector<8x512xf32>
    %cst_5 = arith.constant 0.000000e+00 : f32
    %7 = vector.broadcast %cst_5 : f32 to vector<8x512xf32>
    %8 = arith.maximumf %6, %7 : vector<8x512xf32>
    %9 = arith.truncf %8 : vector<8x512xf32> to vector<8x512xbf16>
    %c0_6 = arith.constant 0 : index
    %c0_7 = arith.constant 0 : index
    %10 = vector.load %arg5[%c0_6, %c0_7] : memref<512x256xbf16, #tpu.memory_space<vmem>>, vector<512x256xbf16>
    %cst_8 = arith.constant dense<0.000000e+00> : vector<8x256xf32>
    %11 = tpu.matmul %9, %10, %cst_8 {dimension_numbers = #tpu.dot_dimension_numbers<[1], [0], [0], [1], [0, 0, 1, 1], [], []>} : vector<8x512xbf16>, vector<512x256xbf16>, vector<8x256xf32> -> vector<8x256xf32>
    %c0_9 = arith.constant 0 : index
    %c0_10 = arith.constant 0 : index
    %12 = vector.load %arg6[%c0_9, %c0_10] : memref<1x256xf32, #tpu.memory_space<vmem>>, vector<1x256xf32>
    %13 = vector.broadcast %12 : vector<1x256xf32> to vector<8x256xf32>
    %14 = arith.addf %11, %13 : vector<8x256xf32>
    %15 = vector.extract_strided_slice %14 {offsets = [0, 0], sizes = [8, 128], strides = [1, 1]} : vector<8x256xf32> to vector<8x128xf32>
    %16 = vector.extract_strided_slice %14 {offsets = [0, 128], sizes = [8, 128], strides = [1, 1]} : vector<8x256xf32> to vector<8x128xf32>
    %c0_11 = arith.constant 0 : index
    %c0_12 = arith.constant 0 : index
    %17 = vector.load %arg2[%c0_11, %c0_12] : memref<8x128xf32, #tpu.memory_space<vmem>>, vector<8x128xf32>
    %cst_13 = arith.constant 5.000000e-01 : f32
    %18 = vector.broadcast %cst_13 : f32 to vector<8x128xf32>
    %19 = arith.mulf %18, %16 : vector<8x128xf32>
    %20 = math.exp %19 : vector<8x128xf32>
    %21 = arith.mulf %17, %20 : vector<8x128xf32>
    %22 = arith.addf %15, %21 : vector<8x128xf32>
    %23 = arith.truncf %22 : vector<8x128xf32> to vector<8x128xbf16>
    %c0_14 = arith.constant 0 : index
    %c0_15 = arith.constant 0 : index
    %24 = vector.load %arg7[%c0_14, %c0_15] : memref<128x512xbf16, #tpu.memory_space<vmem>>, vector<128x512xbf16>
    %cst_16 = arith.constant dense<0.000000e+00> : vector<8x512xf32>
    %25 = tpu.matmul %23, %24, %cst_16 {dimension_numbers = #tpu.dot_dimension_numbers<[1], [0], [0], [1], [0, 0, 1, 1], [], []>} : vector<8x128xbf16>, vector<128x512xbf16>, vector<8x512xf32> -> vector<8x512xf32>
    %c0_17 = arith.constant 0 : index
    %c0_18 = arith.constant 0 : index
    %26 = vector.load %arg8[%c0_17, %c0_18] : memref<1x512xf32, #tpu.memory_space<vmem>>, vector<1x512xf32>
    %27 = vector.broadcast %26 : vector<1x512xf32> to vector<8x512xf32>
    %28 = arith.addf %25, %27 : vector<8x512xf32>
    %cst_19 = arith.constant 0.000000e+00 : f32
    %29 = vector.broadcast %cst_19 : f32 to vector<8x512xf32>
    %30 = arith.maximumf %28, %29 : vector<8x512xf32>
    %31 = arith.truncf %30 : vector<8x512xf32> to vector<8x512xbf16>
    %c0_20 = arith.constant 0 : index
    %c0_21 = arith.constant 0 : index
    %32 = vector.load %arg9[%c0_20, %c0_21] : memref<512x896xbf16, #tpu.memory_space<vmem>>, vector<512x896xbf16>
    %cst_22 = arith.constant dense<0.000000e+00> : vector<8x896xf32>
    %33 = tpu.matmul %31, %32, %cst_22 {dimension_numbers = #tpu.dot_dimension_numbers<[1], [0], [0], [1], [0, 0, 1, 1], [], []>} : vector<8x512xbf16>, vector<512x896xbf16>, vector<8x896xf32> -> vector<8x896xf32>
    %c0_23 = arith.constant 0 : index
    %c0_24 = arith.constant 0 : index
    %34 = vector.load %arg10[%c0_23, %c0_24] : memref<1x896xf32, #tpu.memory_space<vmem>>, vector<1x896xf32>
    %35 = vector.broadcast %34 : vector<1x896xf32> to vector<8x896xf32>
    %36 = arith.addf %33, %35 : vector<8x896xf32>
    %37 = arith.negf %36 : vector<8x896xf32>
    %38 = math.exp %37 : vector<8x896xf32>
    %cst_25 = arith.constant 1.000000e+00 : f32
    %39 = vector.broadcast %cst_25 : f32 to vector<8x896xf32>
    %40 = arith.addf %39, %38 : vector<8x896xf32>
    %41 = arith.divf %39, %40 : vector<8x896xf32>
    %c0_26 = arith.constant 0 : index
    %c0_27 = arith.constant 0 : index
    %42 = vector.load %arg11[%c0_26, %c0_27] : memref<8x896xf32, #tpu.memory_space<vmem>>, vector<8x896xf32>
    tpu.vector_store %arg11[%c0_26, %c0_27], %41 {strides = array<i32>} : memref<8x896xf32, #tpu.memory_space<vmem>>, vector<8x896xf32>,
    %c0_28 = arith.constant 0 : index
    %c0_29 = arith.constant 0 : index
    %43 = vector.load %arg12[%c0_28, %c0_29] : memref<8x128xf32, #tpu.memory_space<vmem>>, vector<8x128xf32>
    tpu.vector_store %arg12[%c0_28, %c0_29], %15 {strides = array<i32>} : memref<8x128xf32, #tpu.memory_space<vmem>>, vector<8x128xf32>,
    %c0_30 = arith.constant 0 : index
    %c0_31 = arith.constant 0 : index
    %44 = vector.load %arg13[%c0_30, %c0_31] : memref<8x128xf32, #tpu.memory_space<vmem>>, vector<8x128xf32>
    tpu.vector_store %arg13[%c0_30, %c0_31], %16 {strides = array<i32>} : memref<8x128xf32, #tpu.memory_space<vmem>>, vector<8x128xf32>,
    return
  }
  func.func @transform_0(%arg0: i32) -> (i32, i32) {
    %c0_i32 = arith.constant 0 : i32
    %c0_i32_0 = arith.constant 0 : i32
    return %arg0, %c0_i32 : i32, i32
  }
  func.func @transform_1(%arg0: i32) -> (i32, i32) {
    %c0_i32 = arith.constant 0 : i32
    %c0_i32_0 = arith.constant 0 : i32
    return %arg0, %c0_i32 : i32, i32
  }
  func.func @transform_2(%arg0: i32) -> (i32, i32) {
    %c0_i32 = arith.constant 0 : i32
    %c0_i32_0 = arith.constant 0 : i32
    %c0_i32_1 = arith.constant 0 : i32
    return %c0_i32, %c0_i32_0 : i32, i32
  }
  func.func @transform_3(%arg0: i32) -> (i32, i32) {
    %c0_i32 = arith.constant 0 : i32
    %c0_i32_0 = arith.constant 0 : i32
    %c0_i32_1 = arith.constant 0 : i32
    return %c0_i32, %c0_i32_0 : i32, i32
  }
  func.func @transform_4(%arg0: i32) -> (i32, i32) {
    %c0_i32 = arith.constant 0 : i32
    %c0_i32_0 = arith.constant 0 : i32
    %c0_i32_1 = arith.constant 0 : i32
    return %c0_i32, %c0_i32_0 : i32, i32
  }
  func.func @transform_5(%arg0: i32) -> (i32, i32) {
    %c0_i32 = arith.constant 0 : i32
    %c0_i32_0 = arith.constant 0 : i32
    %c0_i32_1 = arith.constant 0 : i32
    return %c0_i32, %c0_i32_0 : i32, i32
  }
  func.func @transform_6(%arg0: i32) -> (i32, i32) {
    %c0_i32 = arith.constant 0 : i32
    %c0_i32_0 = arith.constant 0 : i32
    %c0_i32_1 = arith.constant 0 : i32
    return %c0_i32, %c0_i32_0 : i32, i32
  }
  func.func @transform_7(%arg0: i32) -> (i32, i32) {
    %c0_i32 = arith.constant 0 : i32
    %c0_i32_0 = arith.constant 0 : i32
    %c0_i32_1 = arith.constant 0 : i32
    return %c0_i32, %c0_i32_0 : i32, i32
  }
  func.func @transform_8(%arg0: i32) -> (i32, i32) {
    %c0_i32 = arith.constant 0 : i32
    %c0_i32_0 = arith.constant 0 : i32
    %c0_i32_1 = arith.constant 0 : i32
    return %c0_i32, %c0_i32_0 : i32, i32
  }
  func.func @transform_9(%arg0: i32) -> (i32, i32) {
    %c0_i32 = arith.constant 0 : i32
    %c0_i32_0 = arith.constant 0 : i32
    %c0_i32_1 = arith.constant 0 : i32
    return %c0_i32, %c0_i32_0 : i32, i32
  }
  func.func @transform_10(%arg0: i32) -> (i32, i32) {
    %c0_i32 = arith.constant 0 : i32
    %c0_i32_0 = arith.constant 0 : i32
    return %arg0, %c0_i32 : i32, i32
  }
  func.func @transform_11(%arg0: i32) -> (i32, i32) {
    %c0_i32 = arith.constant 0 : i32
    %c0_i32_0 = arith.constant 0 : i32
    return %arg0, %c0_i32 : i32, i32
  }
  func.func @transform_12(%arg0: i32) -> (i32, i32) {
    %c0_i32 = arith.constant 0 : i32
    %c0_i32_0 = arith.constant 0 : i32
    return %arg0, %c0_i32 : i32, i32
  }
}

</mosaic_0001>

<llo_original>
// kernel: vae_forward.1
$region0: #{vae_forward.1}
  #allocation0 [shape = 'u32[]', space=smem, size = 0x4, offset = 0x4, fixed_abs, tag = 'smem constant byte address 0x4 - core index']
  #allocation1 [shape = 'u32[144,128]{1,0:T(1,128)}', space=vmem, size = 0x12000, scoped, tag = 'internal scratch']
  %s0 = inlined_call_operand.vmem [shape: f32[8,896], index: 0, kind: input, shape index: {}]
  %s1 = inlined_call_operand.vmem [shape: f32[8,128], index: 1, kind: input, shape index: {}]
  %s2 = inlined_call_operand.hbm [shape: bf16[896,512], index: 2, kind: input, shape index: {}]
  %s3 = inlined_call_operand.vmem [shape: f32[1,512], index: 3, kind: input, shape index: {}]
  %s4 = inlined_call_operand.vmem [shape: bf16[512,256], index: 4, kind: input, shape index: {}]
  %s5 = inlined_call_operand.vmem [shape: f32[1,256], index: 5, kind: input, shape index: {}]
  %s6 = inlined_call_operand.vmem [shape: bf16[128,512], index: 6, kind: input, shape index: {}]
  %s7 = inlined_call_operand.vmem [shape: f32[1,512], index: 7, kind: input, shape index: {}]
  %s8 = inlined_call_operand.hbm [shape: bf16[512,896], index: 8, kind: input, shape index: {}]
  %s9 = inlined_call_operand.vmem [shape: f32[1,896], index: 9, kind: input, shape index: {}]
  %s10 = inlined_call_operand.hbm [shape: f32[8,896], index: 10, kind: output, shape index: {0}]
  %s11 = inlined_call_operand.hbm [shape: f32[8,128], index: 11, kind: output, shape index: {1}]
  %s12 = inlined_call_operand.hbm [shape: f32[8,128], index: 12, kind: output, shape index: {2}]
  %13 = xla_tuple %s10, %s11, %s12
  %s14 = sld [smem:[#allocation0]]
  $region74: #{vae_forward.1} parent=0
    _
  %s16 = ssub.s32 1, %s14
  %s17 = scalar_select 0, %s16, %s14
  $region1: #{vae_forward.1} parent=0
    #allocation2 [shape = 'u8[917504]{0}', space=vmem, size = 0xe0000, scoped, tag = 'input window, operand 2, single buffered']
    #allocation3 [shape = 's32[1]{0}', space=sflag, size = 0x4, scoped, tag = 'scoped memory for vae_forward.1']
    #allocation4 [shape = 's32[1]{0}', space=sflag, size = 0x4, scoped, tag = 'scoped memory for vae_forward.1']
    #allocation5 [shape = 'u8[917504]{0}', space=vmem, size = 0xe0000, scoped, tag = 'input window, operand 8, single buffered']
    #allocation6 [shape = 's32[1]{0}', space=sflag, size = 0x4, scoped, tag = 'scoped memory for vae_forward.1']
    #allocation7 [shape = 'u8[28672]{0}', space=vmem, size = 0x7000, scoped, tag = 'output window, operand 0, single buffered']
    #allocation8 [shape = 'u8[4096]{0}', space=vmem, size = 0x1000, scoped, tag = 'output window, operand 1, single buffered']
    #allocation9 [shape = 's32[1]{0}', space=sflag, size = 0x4, scoped, tag = 'scoped memory for vae_forward.1']
    #allocation10 [shape = 'u8[4096]{0}', space=vmem, size = 0x1000, scoped, tag = 'output window, operand 2, single buffered']
    %18 = vsyncpa [#allocation3], 0
    %19 = vsyncpa [#allocation6], 0
    %20 = vsyncpa [#allocation4], 0
    %21 = vsyncpa [#allocation9], 0
    // Predicated region
    $region2: #{vae_forward.1} parent=1 // pred_check
      _
    $region3: #{vae_forward.1} parent=1 // pred_check_branch
      %23 = sbr.rel (0) target = $region5
    $region4: #{vae_forward.1} parent=1 // pred_region
      _
    $region5: #{vae_forward.1} parent=1 // pred_fallthru
      _
    // Predicated region
    $region6: #{vae_forward.1} parent=1 // pred_check
      _
    $region7: #{vae_forward.1} parent=1 // pred_check_branch
      %25 = sbr.rel (0) target = $region9
    $region8: #{vae_forward.1} parent=1 // pred_region
      _
    $region9: #{vae_forward.1} parent=1 // pred_fallthru
      _
    // Predicated region
    $region10: #{vae_forward.1} parent=1 // pred_check
      _
    $region11: #{vae_forward.1} parent=1 // pred_check_branch
      %27 = sbr.rel (0) target = $region13
    $region12: #{vae_forward.1} parent=1 // pred_region
      %s29 = ssub.s32 28672, 28672
      %30 = vsyncadd [#allocation3], %s29
      %s31 = sshll.u32 [#allocation2], 4
      %s32 = int_to_ptr.vmem [resolvable:$true] %s31
      %37 = dma.hbm_to_vmem [thread:$0]  %s2, 28672, %s32, [#allocation3], 256, 256, 16
    $region13: #{vae_forward.1} parent=1 // pred_fallthru
      _
    // Predicated region
    $region14: #{vae_forward.1} parent=1 // pred_check
      _
    $region15: #{vae_forward.1} parent=1 // pred_check_branch
      %39 = sbr.rel (0) target = $region17
    $region16: #{vae_forward.1} parent=1 // pred_region
      _
    $region17: #{vae_forward.1} parent=1 // pred_fallthru
      _
    // Predicated region
    $region18: #{vae_forward.1} parent=1 // pred_check
      _
    $region19: #{vae_forward.1} parent=1 // pred_check_branch
      %41 = sbr.rel (0) target = $region21
    $region20: #{vae_forward.1} parent=1 // pred_region
      _
    $region21: #{vae_forward.1} parent=1 // pred_fallthru
      _
    // Predicated region
    $region22: #{vae_forward.1} parent=1 // pred_check
      _
    $region23: #{vae_forward.1} parent=1 // pred_check_branch
      %43 = sbr.rel (0) target = $region25
    $region24: #{vae_forward.1} parent=1 // pred_region
      _
    $region25: #{vae_forward.1} parent=1 // pred_fallthru
      _
    // Predicated region
    $region26: #{vae_forward.1} parent=1 // pred_check
      _
    $region27: #{vae_forward.1} parent=1 // pred_check_branch
      %45 = sbr.rel (0) target = $region29
    $region28: #{vae_forward.1} parent=1 // pred_region
      _
    $region29: #{vae_forward.1} parent=1 // pred_fallthru
      _
    // Predicated region
    $region30: #{vae_forward.1} parent=1 // pred_check
      _
    $region31: #{vae_forward.1} parent=1 // pred_check_branch
      %47 = sbr.rel (0) target = $region33
    $region32: #{vae_forward.1} parent=1 // pred_region
      _
    $region33: #{vae_forward.1} parent=1 // pred_fallthru
      _
    // Predicated region
    $region34: #{vae_forward.1} parent=1 // pred_check
      _
    $region35: #{vae_forward.1} parent=1 // pred_check_branch
      %49 = sbr.rel (0) target = $region37
    $region36: #{vae_forward.1} parent=1 // pred_region
      %s51 = ssub.s32 28672, 28672
      %52 = vsyncadd [#allocation6], %s51
      %s53 = sshll.u32 [#allocation5], 4
      %s54 = int_to_ptr.vmem [resolvable:$true] %s53
      %59 = dma.hbm_to_vmem [thread:$0]  %s8, 28672, %s54, [#allocation6], 448, 448, 28
    $region37: #{vae_forward.1} parent=1 // pred_fallthru
      _
    // Predicated region
    $region38: #{vae_forward.1} parent=1 // pred_check
      _
    $region39: #{vae_forward.1} parent=1 // pred_check_branch
      %61 = sbr.rel (0) target = $region41
    $region40: #{vae_forward.1} parent=1 // pred_region
      _
    $region41: #{vae_forward.1} parent=1 // pred_fallthru
      _
    // Predicated region
    $region42: #{vae_forward.1} parent=1 // pred_check
      _
    $region43: #{vae_forward.1} parent=1 // pred_check_branch
      %63 = sbr.rel (0) target = $region45
    $region44: #{vae_forward.1} parent=1 // pred_region
      %64 = dma.done [#allocation3], 28672
    $region45: #{vae_forward.1} parent=1 // pred_fallthru
      _
    // Predicated region
    $region46: #{vae_forward.1} parent=1 // pred_check
      _
    $region47: #{vae_forward.1} parent=1 // pred_check_branch
      %66 = sbr.rel (0) target = $region49
    $region48: #{vae_forward.1} parent=1 // pred_region
      %67 = dma.done [#allocation6], 28672
    $region49: #{vae_forward.1} parent=1 // pred_fallthru
      _
    %v69 = vld [vmem:[%s0] sm:$0xff]
    %v70 = vld [vmem:[%s0 + $0x8] sm:$0xff]
    %v71 = vld [vmem:[%s0 + $0x10] sm:$0xff]
    %v72 = vld [vmem:[%s0 + $0x18] sm:$0xff]
    %v73 = vld [vmem:[%s0 + $0x20] sm:$0xff]
    %v74 = vld [vmem:[%s0 + $0x28] sm:$0xff]
    %v75 = vld [vmem:[%s0 + $0x30] sm:$0xff]
    %v76 = vpack.c.bf16 %v69, %v69
    %v77 = vpack.c.bf16 %v70, %v70
    %v78 = vpack.c.bf16 %v71, %v71
    %v79 = vpack.c.bf16 %v72, %v72
    %v80 = vpack.c.bf16 %v73, %v73
    %v81 = vpack.c.bf16 %v74, %v74
    %v82 = vpack.c.bf16 %v75, %v75
    %v83 = vld [vmem:[#allocation2] sm:$0xff]
    %v84 = vld [vmem:[#allocation2 + $0x8] sm:$0xff]
    %v85 = vld [vmem:[#allocation2 + $0x10] sm:$0xff]
    %v86 = vld [vmem:[#allocation2 + $0x18] sm:$0xff]
    %v87 = vld [vmem:[#allocation2 + $0x20] sm:$0xff]
    %v88 = vld [vmem:[#allocation2 + $0x28] sm:$0xff]
    %v89 = vld [vmem:[#allocation2 + $0x30] sm:$0xff]
    %v90 = vld [vmem:[#allocation2 + $0x38] sm:$0xff]
    %v91 = vld [vmem:[#allocation2 + $0x40] sm:$0xff]
    %v92 = vld [vmem:[#allocation2 + $0x48] sm:$0xff]
    %v93 = vld [vmem:[#allocation2 + $0x50] sm:$0xff]
    %v94 = vld [vmem:[#allocation2 + $0x58] sm:$0xff]
    %v95 = vld [vmem:[#allocation2 + $0x60] sm:$0xff]
    %v96 = vld [vmem:[#allocation2 + $0x68] sm:$0xff]
    %v97 = vld [vmem:[#allocation2 + $0x70] sm:$0xff]
    %v98 = vld [vmem:[#allocation2 + $0x78] sm:$0xff]
    %v99 = vld [vmem:[#allocation2 + $0x80] sm:$0xff]
    %v100 = vld [vmem:[#allocation2 + $0x88] sm:$0xff]
    %v101 = vld [vmem:[#allocation2 + $0x90] sm:$0xff]
    %v102 = vld [vmem:[#allocation2 + $0x98] sm:$0xff]
    %v103 = vld [vmem:[#allocation2 + $0xa0] sm:$0xff]
    %v104 = vld [vmem:[#allocation2 + $0xa8] sm:$0xff]
    %v105 = vld [vmem:[#allocation2 + $0xb0] sm:$0xff]
    %v106 = vld [vmem:[#allocation2 + $0xb8] sm:$0xff]
    %v107 = vld [vmem:[#allocation2 + $0xc0] sm:$0xff]
    %v108 = vld [vmem:[#allocation2 + $0xc8] sm:$0xff]
    %v109 = vld [vmem:[#allocation2 + $0xd0] sm:$0xff]
    %v110 = vld [vmem:[#allocation2 + $0xd8] sm:$0xff]
    %v111 = vld [vmem:[#allocation2 + $0xe0] sm:$0xff]
    %v112 = vld [vmem:[#allocation2 + $0xe8] sm:$0xff]
    %v113 = vld [vmem:[#allocation2 + $0xf0] sm:$0xff]
    %v114 = vld [vmem:[#allocation2 + $0xf8] sm:$0xff]
    %v115 = vld [vmem:[#allocation2 + $0x100] sm:$0xff]
    %v116 = vld [vmem:[#allocation2 + $0x108] sm:$0xff]
    %v117 = vld [vmem:[#allocation2 + $0x110] sm:$0xff]
    %v118 = vld [vmem:[#allocation2 + $0x118] sm:$0xff]
    %v119 = vld [vmem:[#allocation2 + $0x120] sm:$0xff]
    %v120 = vld [vmem:[#allocation2 + $0x128] sm:$0xff]
    %v121 = vld [vmem:[#allocation2 + $0x130] sm:$0xff]
    %v122 = vld [vmem:[#allocation2 + $0x138] sm:$0xff]
    %v123 = vld [vmem:[#allocation2 + $0x140] sm:$0xff]
    %v124 = vld [vmem:[#allocation2 + $0x148] sm:$0xff]
    %v125 = vld [vmem:[#allocation2 + $0x150] sm:$0xff]
    %v126 = vld [vmem:[#allocation2 + $0x158] sm:$0xff]
    %v127 = vld [vmem:[#allocation2 + $0x160] sm:$0xff]
    %v128 = vld [vmem:[#allocation2 + $0x168] sm:$0xff]
    %v129 = vld [vmem:[#allocation2 + $0x170] sm:$0xff]
    %v130 = vld [vmem:[#allocation2 + $0x178] sm:$0xff]
    %v131 = vld [vmem:[#allocation2 + $0x180] sm:$0xff]
    %v132 = vld [vmem:[#allocation2 + $0x188] sm:$0xff]
    %v133 = vld [vmem:[#allocation2 + $0x190] sm:$0xff]
    %v134 = vld [vmem:[#allocation2 + $0x198] sm:$0xff]
    %v135 = vld [vmem:[#allocation2 + $0x1a0] sm:$0xff]
    %v136 = vld [vmem:[#allocation2 + $0x1a8] sm:$0xff]
    %v137 = vld [vmem:[#allocation2 + $0x1b0] sm:$0xff]
    %v138 = vld [vmem:[#allocation2 + $0x1b8] sm:$0xff]
    %v139 = vld [vmem:[#allocation2 + $0x1c0] sm:$0xff]
    %v140 = vld [vmem:[#allocation2 + $0x1c8] sm:$0xff]
    %v141 = vld [vmem:[#allocation2 + $0x1d0] sm:$0xff]
    %v142 = vld [vmem:[#allocation2 + $0x1d8] sm:$0xff]
    %v143 = vld [vmem:[#allocation2 + $0x1e0] sm:$0xff]
    %v144 = vld [vmem:[#allocation2 + $0x1e8] sm:$0xff]
    %v145 = vld [vmem:[#allocation2 + $0x1f0] sm:$0xff]
    %v146 = vld [vmem:[#allocation2 + $0x1f8] sm:$0xff]
    %v147 = vld [vmem:[#allocation2 + $0x200] sm:$0xff]
    %v148 = vld [vmem:[#allocation2 + $0x208] sm:$0xff]
    %v149 = vld [vmem:[#allocation2 + $0x210] sm:$0xff]
    %v150 = vld [vmem:[#allocation2 + $0x218] sm:$0xff]
    %v151 = vld [vmem:[#allocation2 + $0x220] sm:$0xff]
    %v152 = vld [vmem:[#allocation2 + $0x228] sm:$0xff]
    %v153 = vld [vmem:[#allocation2 + $0x230] sm:$0xff]
    %v154 = vld [vmem:[#allocation2 + $0x238] sm:$0xff]
    %v155 = vld [vmem:[#allocation2 + $0x240] sm:$0xff]
    %v156 = vld [vmem:[#allocation2 + $0x248] sm:$0xff]
    %v157 = vld [vmem:[#allocation2 + $0x250] sm:$0xff]
    %v158 = vld [vmem:[#allocation2 + $0x258] sm:$0xff]
    %v159 = vld [vmem:[#allocation2 + $0x260] sm:$0xff]
    %v160 = vld [vmem:[#allocation2 + $0x268] sm:$0xff]
    %v161 = vld [vmem:[#allocation2 + $0x270] sm:$0xff]
    %v162 = vld [vmem:[#allocation2 + $0x278] sm:$0xff]
    %v163 = vld [vmem:[#allocation2 + $0x280] sm:$0xff]
    %v164 = vld [vmem:[#allocation2 + $0x288] sm:$0xff]
    %v165 = vld [vmem:[#allocation2 + $0x290] sm:$0xff]
    %v166 = vld [vmem:[#allocation2 + $0x298] sm:$0xff]
    %v167 = vld [vmem:[#allocation2 + $0x2a0] sm:$0xff]
    %v168 = vld [vmem:[#allocation2 + $0x2a8] sm:$0xff]
    %v169 = vld [vmem:[#allocation2 + $0x2b0] sm:$0xff]
    %v170 = vld [vmem:[#allocation2 + $0x2b8] sm:$0xff]
    %v171 = vld [vmem:[#allocation2 + $0x2c0] sm:$0xff]
    %v172 = vld [vmem:[#allocation2 + $0x2c8] sm:$0xff]
    %v173 = vld [vmem:[#allocation2 + $0x2d0] sm:$0xff]
    %v174 = vld [vmem:[#allocation2 + $0x2d8] sm:$0xff]
    %v175 = vld [vmem:[#allocation2 + $0x2e0] sm:$0xff]
    %v176 = vld [vmem:[#allocation2 + $0x2e8] sm:$0xff]
    %v177 = vld [vmem:[#allocation2 + $0x2f0] sm:$0xff]
    %v178 = vld [vmem:[#allocation2 + $0x2f8] sm:$0xff]
    %v179 = vld [vmem:[#allocation2 + $0x300] sm:$0xff]
    %v180 = vld [vmem:[#allocation2 + $0x308] sm:$0xff]
    %v181 = vld [vmem:[#allocation2 + $0x310] sm:$0xff]
    %v182 = vld [vmem:[#allocation2 + $0x318] sm:$0xff]
    %v183 = vld [vmem:[#allocation2 + $0x320] sm:$0xff]
    %v184 = vld [vmem:[#allocation2 + $0x328] sm:$0xff]
    %v185 = vld [vmem:[#allocation2 + $0x330] sm:$0xff]
    %v186 = vld [vmem:[#allocation2 + $0x338] sm:$0xff]
    %v187 = vld [vmem:[#allocation2 + $0x340] sm:$0xff]
    %v188 = vld [vmem:[#allocation2 + $0x348] sm:$0xff]
    %v189 = vld [vmem:[#allocation2 + $0x350] sm:$0xff]
    %v190 = vld [vmem:[#allocation2 + $0x358] sm:$0xff]
    %v191 = vld [vmem:[#allocation2 + $0x360] sm:$0xff]
    %v192 = vld [vmem:[#allocation2 + $0x368] sm:$0xff]
    %v193 = vld [vmem:[#allocation2 + $0x370] sm:$0xff]
    %v194 = vld [vmem:[#allocation2 + $0x378] sm:$0xff]
    %v195 = vld [vmem:[#allocation2 + $0x380] sm:$0xff]
    %v196 = vld [vmem:[#allocation2 + $0x388] sm:$0xff]
    %v197 = vld [vmem:[#allocation2 + $0x390] sm:$0xff]
    %v198 = vld [vmem:[#allocation2 + $0x398] sm:$0xff]
    %v199 = vld [vmem:[#allocation2 + $0x3a0] sm:$0xff]
    %v200 = vld [vmem:[#allocation2 + $0x3a8] sm:$0xff]
    %v201 = vld [vmem:[#allocation2 + $0x3b0] sm:$0xff]
    %v202 = vld [vmem:[#allocation2 + $0x3b8] sm:$0xff]
    %v203 = vld [vmem:[#allocation2 + $0x3c0] sm:$0xff]
    %v204 = vld [vmem:[#allocation2 + $0x3c8] sm:$0xff]
    %v205 = vld [vmem:[#allocation2 + $0x3d0] sm:$0xff]
    %v206 = vld [vmem:[#allocation2 + $0x3d8] sm:$0xff]
    %v207 = vld [vmem:[#allocation2 + $0x3e0] sm:$0xff]
    %v208 = vld [vmem:[#allocation2 + $0x3e8] sm:$0xff]
    %v209 = vld [vmem:[#allocation2 + $0x3f0] sm:$0xff]
    %v210 = vld [vmem:[#allocation2 + $0x3f8] sm:$0xff]
    %v211 = vld [vmem:[#allocation2 + $0x400] sm:$0xff]
    %v212 = vld [vmem:[#allocation2 + $0x408] sm:$0xff]
    %v213 = vld [vmem:[#allocation2 + $0x410] sm:$0xff]
    %v214 = vld [vmem:[#allocation2 + $0x418] sm:$0xff]
    %v215 = vld [vmem:[#allocation2 + $0x420] sm:$0xff]
    %v216 = vld [vmem:[#allocation2 + $0x428] sm:$0xff]
    %v217 = vld [vmem:[#allocation2 + $0x430] sm:$0xff]
    %v218 = vld [vmem:[#allocation2 + $0x438] sm:$0xff]
    %v219 = vld [vmem:[#allocation2 + $0x440] sm:$0xff]
    %v220 = vld [vmem:[#allocation2 + $0x448] sm:$0xff]
    %v221 = vld [vmem:[#allocation2 + $0x450] sm:$0xff]
    %v222 = vld [vmem:[#allocation2 + $0x458] sm:$0xff]
    %v223 = vld [vmem:[#allocation2 + $0x460] sm:$0xff]
    %v224 = vld [vmem:[#allocation2 + $0x468] sm:$0xff]
    %v225 = vld [vmem:[#allocation2 + $0x470] sm:$0xff]
    %v226 = vld [vmem:[#allocation2 + $0x478] sm:$0xff]
    %v227 = vld [vmem:[#allocation2 + $0x480] sm:$0xff]
    %v228 = vld [vmem:[#allocation2 + $0x488] sm:$0xff]
    %v229 = vld [vmem:[#allocation2 + $0x490] sm:$0xff]
    %v230 = vld [vmem:[#allocation2 + $0x498] sm:$0xff]
    %v231 = vld [vmem:[#allocation2 + $0x4a0] sm:$0xff]
    %v232 = vld [vmem:[#allocation2 + $0x4a8] sm:$0xff]
    %v233 = vld [vmem:[#allocation2 + $0x4b0] sm:$0xff]
    %v234 = vld [vmem:[#allocation2 + $0x4b8] sm:$0xff]
    %v235 = vld [vmem:[#allocation2 + $0x4c0] sm:$0xff]
    %v236 = vld [vmem:[#allocation2 + $0x4c8] sm:$0xff]
    %v237 = vld [vmem:[#allocation2 + $0x4d0] sm:$0xff]
    %v238 = vld [vmem:[#allocation2 + $0x4d8] sm:$0xff]
    %v239 = vld [vmem:[#allocation2 + $0x4e0] sm:$0xff]
    %v240 = vld [vmem:[#allocation2 + $0x4e8] sm:$0xff]
    %v241 = vld [vmem:[#allocation2 + $0x4f0] sm:$0xff]
    %v242 = vld [vmem:[#allocation2 + $0x4f8] sm:$0xff]
    %v243 = vld [vmem:[#allocation2 + $0x500] sm:$0xff]
    %v244 = vld [vmem:[#allocation2 + $0x508] sm:$0xff]
    %v245 = vld [vmem:[#allocation2 + $0x510] sm:$0xff]
    %v246 = vld [vmem:[#allocation2 + $0x518] sm:$0xff]
    %v247 = vld [vmem:[#allocation2 + $0x520] sm:$0xff]
    %v248 = vld [vmem:[#allocation2 + $0x528] sm:$0xff]
    %v249 = vld [vmem:[#allocation2 + $0x530] sm:$0xff]
    %v250 = vld [vmem:[#allocation2 + $0x538] sm:$0xff]
    %v251 = vld [vmem:[#allocation2 + $0x540] sm:$0xff]
    %v252 = vld [vmem:[#allocation2 + $0x548] sm:$0xff]
    %v253 = vld [vmem:[#allocation2 + $0x550] sm:$0xff]
    %v254 = vld [vmem:[#allocation2 + $0x558] sm:$0xff]
    %v255 = vld [vmem:[#allocation2 + $0x560] sm:$0xff]
    %v256 = vld [vmem:[#allocation2 + $0x568] sm:$0xff]
    %v257 = vld [vmem:[#allocation2 + $0x570] sm:$0xff]
    %v258 = vld [vmem:[#allocation2 + $0x578] sm:$0xff]
    %v259 = vld [vmem:[#allocation2 + $0x580] sm:$0xff]
    %v260 = vld [vmem:[#allocation2 + $0x588] sm:$0xff]
    %v261 = vld [vmem:[#allocation2 + $0x590] sm:$0xff]
    %v262 = vld [vmem:[#allocation2 + $0x598] sm:$0xff]
    %v263 = vld [vmem:[#allocation2 + $0x5a0] sm:$0xff]
    %v264 = vld [vmem:[#allocation2 + $0x5a8] sm:$0xff]
    %v265 = vld [vmem:[#allocation2 + $0x5b0] sm:$0xff]
    %v266 = vld [vmem:[#allocation2 + $0x5b8] sm:$0xff]
    %v267 = vld [vmem:[#allocation2 + $0x5c0] sm:$0xff]
    %v268 = vld [vmem:[#allocation2 + $0x5c8] sm:$0xff]
    %v269 = vld [vmem:[#allocation2 + $0x5d0] sm:$0xff]
    %v270 = vld [vmem:[#allocation2 + $0x5d8] sm:$0xff]
    %v271 = vld [vmem:[#allocation2 + $0x5e0] sm:$0xff]
    %v272 = vld [vmem:[#allocation2 + $0x5e8] sm:$0xff]
    %v273 = vld [vmem:[#allocation2 + $0x5f0] sm:$0xff]
    %v274 = vld [vmem:[#allocation2 + $0x5f8] sm:$0xff]
    %v275 = vld [vmem:[#allocation2 + $0x600] sm:$0xff]
    %v276 = vld [vmem:[#allocation2 + $0x608] sm:$0xff]
    %v277 = vld [vmem:[#allocation2 + $0x610] sm:$0xff]
    %v278 = vld [vmem:[#allocation2 + $0x618] sm:$0xff]
    %v279 = vld [vmem:[#allocation2 + $0x620] sm:$0xff]
    %v280 = vld [vmem:[#allocation2 + $0x628] sm:$0xff]
    %v281 = vld [vmem:[#allocation2 + $0x630] sm:$0xff]
    %v282 = vld [vmem:[#allocation2 + $0x638] sm:$0xff]
    %v283 = vld [vmem:[#allocation2 + $0x640] sm:$0xff]
    %v284 = vld [vmem:[#allocation2 + $0x648] sm:$0xff]
    %v285 = vld [vmem:[#allocation2 + $0x650] sm:$0xff]
    %v286 = vld [vmem:[#allocation2 + $0x658] sm:$0xff]
    %v287 = vld [vmem:[#allocation2 + $0x660] sm:$0xff]
    %v288 = vld [vmem:[#allocation2 + $0x668] sm:$0xff]
    %v289 = vld [vmem:[#allocation2 + $0x670] sm:$0xff]
    %v290 = vld [vmem:[#allocation2 + $0x678] sm:$0xff]
    %v291 = vld [vmem:[#allocation2 + $0x680] sm:$0xff]
    %v292 = vld [vmem:[#allocation2 + $0x688] sm:$0xff]
    %v293 = vld [vmem:[#allocation2 + $0x690] sm:$0xff]
    %v294 = vld [vmem:[#allocation2 + $0x698] sm:$0xff]
    %v295 = vld [vmem:[#allocation2 + $0x6a0] sm:$0xff]
    %v296 = vld [vmem:[#allocation2 + $0x6a8] sm:$0xff]
    %v297 = vld [vmem:[#allocation2 + $0x6b0] sm:$0xff]
    %v298 = vld [vmem:[#allocation2 + $0x6b8] sm:$0xff]
    %v299 = vld [vmem:[#allocation2 + $0x6c0] sm:$0xff]
    %v300 = vld [vmem:[#allocation2 + $0x6c8] sm:$0xff]
    %v301 = vld [vmem:[#allocation2 + $0x6d0] sm:$0xff]
    %v302 = vld [vmem:[#allocation2 + $0x6d8] sm:$0xff]
    %v303 = vld [vmem:[#allocation2 + $0x6e0] sm:$0xff]
    %v304 = vld [vmem:[#allocation2 + $0x6e8] sm:$0xff]
    %v305 = vld [vmem:[#allocation2 + $0x6f0] sm:$0xff]
    %v306 = vld [vmem:[#allocation2 + $0x6f8] sm:$0xff]
    %v307 = vld [vmem:[%s3] sm:$0xf]
    %v309 = vlaneseq
    %v310 = vshrl.u32 %v309, 7
    %v311 = vsub.s32 0, %v310
    %v312 = vrot.slane %v307, %v311
    %v313 = vlaneseq
    %v314 = vshrl.u32 %v313, 7
    %v315 = vsub.s32 1, %v314
    %v316 = vrot.slane %v307, %v315
    %v317 = vlaneseq
    %v318 = vshrl.u32 %v317, 7
    %v319 = vsub.s32 2, %v318
    %v320 = vrot.slane %v307, %v319
    %v321 = vlaneseq
    %v322 = vshrl.u32 %v321, 7
    %v323 = vsub.s32 3, %v322
    %v324 = vrot.slane %v307, %v323
    %v553 = vunpack.c.l.b16 %v83
    %v554 = vunpack.c.h.b16 %v83
    %v555 = vunpack.c.l.b16 %v84
    %v556 = vunpack.c.h.b16 %v84
    %v557 = vunpack.c.l.b16 %v85
    %v558 = vunpack.c.h.b16 %v85
    %v559 = vunpack.c.l.b16 %v86
    %v560 = vunpack.c.h.b16 %v86
    %v561 = vunpack.c.l.b16 %v87
    %v562 = vunpack.c.h.b16 %v87
    %v563 = vunpack.c.l.b16 %v88
    %v564 = vunpack.c.h.b16 %v88
    %v565 = vunpack.c.l.b16 %v89
    %v566 = vunpack.c.h.b16 %v89
    %v567 = vunpack.c.l.b16 %v90
    %v568 = vunpack.c.h.b16 %v90
    %v569 = vunpack.c.l.b16 %v91
    %v570 = vunpack.c.h.b16 %v91
    %v571 = vunpack.c.l.b16 %v92
    %v572 = vunpack.c.h.b16 %v92
    %v573 = vunpack.c.l.b16 %v93
    %v574 = vunpack.c.h.b16 %v93
    %v575 = vunpack.c.l.b16 %v94
    %v576 = vunpack.c.h.b16 %v94
    %v577 = vunpack.c.l.b16 %v95
    %v578 = vunpack.c.h.b16 %v95
    %v579 = vunpack.c.l.b16 %v96
    %v580 = vunpack.c.h.b16 %v96
    %v581 = vunpack.c.l.b16 %v97
    %v582 = vunpack.c.h.b16 %v97
    %v583 = vunpack.c.l.b16 %v98
    %v584 = vunpack.c.h.b16 %v98
    %v585 = vunpack.c.l.b16 %v99
    %v586 = vunpack.c.h.b16 %v99
    %v587 = vunpack.c.l.b16 %v100
    %v588 = vunpack.c.h.b16 %v100
    %v589 = vunpack.c.l.b16 %v101
    %v590 = vunpack.c.h.b16 %v101
    %v591 = vunpack.c.l.b16 %v102
    %v592 = vunpack.c.h.b16 %v102
    %v593 = vunpack.c.l.b16 %v103
    %v594 = vunpack.c.h.b16 %v103
    %v595 = vunpack.c.l.b16 %v104
    %v596 = vunpack.c.h.b16 %v104
    %v597 = vunpack.c.l.b16 %v105
    %v598 = vunpack.c.h.b16 %v105
    %v599 = vunpack.c.l.b16 %v106
    %v600 = vunpack.c.h.b16 %v106
    %v601 = vunpack.c.l.b16 %v107
    %v602 = vunpack.c.h.b16 %v107
    %v603 = vunpack.c.l.b16 %v108
    %v604 = vunpack.c.h.b16 %v108
    %v605 = vunpack.c.l.b16 %v109
    %v606 = vunpack.c.h.b16 %v109
    %v607 = vunpack.c.l.b16 %v110
    %v608 = vunpack.c.h.b16 %v110
    %v609 = vunpack.c.l.b16 %v111
    %v610 = vunpack.c.h.b16 %v111
    %v611 = vunpack.c.l.b16 %v112
    %v612 = vunpack.c.h.b16 %v112
    %v613 = vunpack.c.l.b16 %v113
    %v614 = vunpack.c.h.b16 %v113
    %v615 = vunpack.c.l.b16 %v114
    %v616 = vunpack.c.h.b16 %v114
    %v617 = vunpack.c.l.b16 %v115
    %v618 = vunpack.c.h.b16 %v115
    %v619 = vunpack.c.l.b16 %v116
    %v620 = vunpack.c.h.b16 %v116
    %v621 = vunpack.c.l.b16 %v117
    %v622 = vunpack.c.h.b16 %v117
    %v623 = vunpack.c.l.b16 %v118
    %v624 = vunpack.c.h.b16 %v118
    %v625 = vunpack.c.l.b16 %v119
    %v626 = vunpack.c.h.b16 %v119
    %v627 = vunpack.c.l.b16 %v120
    %v628 = vunpack.c.h.b16 %v120
    %v629 = vunpack.c.l.b16 %v121
    %v630 = vunpack.c.h.b16 %v121
    %v631 = vunpack.c.l.b16 %v122
    %v632 = vunpack.c.h.b16 %v122
    %v633 = vunpack.c.l.b16 %v123
    %v634 = vunpack.c.h.b16 %v123
    %v635 = vunpack.c.l.b16 %v124
    %v636 = vunpack.c.h.b16 %v124
    %v637 = vunpack.c.l.b16 %v125
    %v638 = vunpack.c.h.b16 %v125
    %v639 = vunpack.c.l.b16 %v126
    %v640 = vunpack.c.h.b16 %v126
    %v641 = vunpack.c.l.b16 %v127
    %v642 = vunpack.c.h.b16 %v127
    %v643 = vunpack.c.l.b16 %v128
    %v644 = vunpack.c.h.b16 %v128
    %v645 = vunpack.c.l.b16 %v129
    %v646 = vunpack.c.h.b16 %v129
    %v647 = vunpack.c.l.b16 %v130
    %v648 = vunpack.c.h.b16 %v130
    %v649 = vunpack.c.l.b16 %v131
    %v650 = vunpack.c.h.b16 %v131
    %v651 = vunpack.c.l.b16 %v132
    %v652 = vunpack.c.h.b16 %v132
    %v653 = vunpack.c.l.b16 %v133
    %v654 = vunpack.c.h.b16 %v133
    %v655 = vunpack.c.l.b16 %v134
    %v656 = vunpack.c.h.b16 %v134
    %v657 = vunpack.c.l.b16 %v135
    %v658 = vunpack.c.h.b16 %v135
    %v659 = vunpack.c.l.b16 %v136
    %v660 = vunpack.c.h.b16 %v136
    %v661 = vunpack.c.l.b16 %v137
    %v662 = vunpack.c.h.b16 %v137
    %v663 = vunpack.c.l.b16 %v138
    %v664 = vunpack.c.h.b16 %v138
    %v665 = vunpack.c.l.b16 %v139
    %v666 = vunpack.c.h.b16 %v139
    %v667 = vunpack.c.l.b16 %v140
    %v668 = vunpack.c.h.b16 %v140
    %v669 = vunpack.c.l.b16 %v141
    %v670 = vunpack.c.h.b16 %v141
    %v671 = vunpack.c.l.b16 %v142
    %v672 = vunpack.c.h.b16 %v142
    %v673 = vunpack.c.l.b16 %v143
    %v674 = vunpack.c.h.b16 %v143
    %v675 = vunpack.c.l.b16 %v144
    %v676 = vunpack.c.h.b16 %v144
    %v677 = vunpack.c.l.b16 %v145
    %v678 = vunpack.c.h.b16 %v145
    %v679 = vunpack.c.l.b16 %v146
    %v680 = vunpack.c.h.b16 %v146
    %v681 = vunpack.c.l.b16 %v147
    %v682 = vunpack.c.h.b16 %v147
    %v683 = vunpack.c.l.b16 %v148
    %v684 = vunpack.c.h.b16 %v148
    %v685 = vunpack.c.l.b16 %v149
    %v686 = vunpack.c.h.b16 %v149
    %v687 = vunpack.c.l.b16 %v150
    %v688 = vunpack.c.h.b16 %v150
    %v689 = vunpack.c.l.b16 %v151
    %v690 = vunpack.c.h.b16 %v151
    %v691 = vunpack.c.l.b16 %v152
    %v692 = vunpack.c.h.b16 %v152
    %v693 = vunpack.c.l.b16 %v153
    %v694 = vunpack.c.h.b16 %v153
    %v695 = vunpack.c.l.b16 %v154
    %v696 = vunpack.c.h.b16 %v154
    %v697 = vunpack.c.l.b16 %v155
    %v698 = vunpack.c.h.b16 %v155
    %v699 = vunpack.c.l.b16 %v156
    %v700 = vunpack.c.h.b16 %v156
    %v701 = vunpack.c.l.b16 %v157
    %v702 = vunpack.c.h.b16 %v157
    %v703 = vunpack.c.l.b16 %v158
    %v704 = vunpack.c.h.b16 %v158
    %v705 = vunpack.c.l.b16 %v159
    %v706 = vunpack.c.h.b16 %v159
    %v707 = vunpack.c.l.b16 %v160
    %v708 = vunpack.c.h.b16 %v160
    %v709 = vunpack.c.l.b16 %v161
    %v710 = vunpack.c.h.b16 %v161
    %v711 = vunpack.c.l.b16 %v162
    %v712 = vunpack.c.h.b16 %v162
    %v713 = vunpack.c.l.b16 %v163
    %v714 = vunpack.c.h.b16 %v163
    %v715 = vunpack.c.l.b16 %v164
    %v716 = vunpack.c.h.b16 %v164
    %v717 = vunpack.c.l.b16 %v165
    %v718 = vunpack.c.h.b16 %v165
    %v719 = vunpack.c.l.b16 %v166
    %v720 = vunpack.c.h.b16 %v166
    %v721 = vunpack.c.l.b16 %v167
    %v722 = vunpack.c.h.b16 %v167
    %v723 = vunpack.c.l.b16 %v168
    %v724 = vunpack.c.h.b16 %v168
    %v725 = vunpack.c.l.b16 %v169
    %v726 = vunpack.c.h.b16 %v169
    %v727 = vunpack.c.l.b16 %v170
    %v728 = vunpack.c.h.b16 %v170
    %v729 = vunpack.c.l.b16 %v171
    %v730 = vunpack.c.h.b16 %v171
    %v731 = vunpack.c.l.b16 %v172
    %v732 = vunpack.c.h.b16 %v172
    %v733 = vunpack.c.l.b16 %v173
    %v734 = vunpack.c.h.b16 %v173
    %v735 = vunpack.c.l.b16 %v174
    %v736 = vunpack.c.h.b16 %v174
    %v737 = vunpack.c.l.b16 %v175
    %v738 = vunpack.c.h.b16 %v175
    %v739 = vunpack.c.l.b16 %v176
    %v740 = vunpack.c.h.b16 %v176
    %v741 = vunpack.c.l.b16 %v177
    %v742 = vunpack.c.h.b16 %v177
    %v743 = vunpack.c.l.b16 %v178
    %v744 = vunpack.c.h.b16 %v178
    %v745 = vunpack.c.l.b16 %v179
    %v746 = vunpack.c.h.b16 %v179
    %v747 = vunpack.c.l.b16 %v180
    %v748 = vunpack.c.h.b16 %v180
    %v749 = vunpack.c.l.b16 %v181
    %v750 = vunpack.c.h.b16 %v181
    %v751 = vunpack.c.l.b16 %v182
    %v752 = vunpack.c.h.b16 %v182
    %v753 = vunpack.c.l.b16 %v183
    %v754 = vunpack.c.h.b16 %v183
    %v755 = vunpack.c.l.b16 %v184
    %v756 = vunpack.c.h.b16 %v184
    %v757 = vunpack.c.l.b16 %v185
    %v758 = vunpack.c.h.b16 %v185
    %v759 = vunpack.c.l.b16 %v186
    %v760 = vunpack.c.h.b16 %v186
    %v761 = vunpack.c.l.b16 %v187
    %v762 = vunpack.c.h.b16 %v187
    %v763 = vunpack.c.l.b16 %v188
    %v764 = vunpack.c.h.b16 %v188
    %v765 = vunpack.c.l.b16 %v189
    %v766 = vunpack.c.h.b16 %v189
    %v767 = vunpack.c.l.b16 %v190
    %v768 = vunpack.c.h.b16 %v190
    %v769 = vunpack.c.l.b16 %v191
    %v770 = vunpack.c.h.b16 %v191
    %v771 = vunpack.c.l.b16 %v192
    %v772 = vunpack.c.h.b16 %v192
    %v773 = vunpack.c.l.b16 %v193
    %v774 = vunpack.c.h.b16 %v193
    %v775 = vunpack.c.l.b16 %v194
    %v776 = vunpack.c.h.b16 %v194
    %v777 = vunpack.c.l.b16 %v195
    %v778 = vunpack.c.h.b16 %v195
    %v779 = vunpack.c.l.b16 %v196
    %v780 = vunpack.c.h.b16 %v196
    %v781 = vunpack.c.l.b16 %v197
    %v782 = vunpack.c.h.b16 %v197
    %v783 = vunpack.c.l.b16 %v198
    %v784 = vunpack.c.h.b16 %v198
    %v785 = vunpack.c.l.b16 %v199
    %v786 = vunpack.c.h.b16 %v199
    %v787 = vunpack.c.l.b16 %v200
    %v788 = vunpack.c.h.b16 %v200
    %v789 = vunpack.c.l.b16 %v201
    %v790 = vunpack.c.h.b16 %v201
    %v791 = vunpack.c.l.b16 %v202
    %v792 = vunpack.c.h.b16 %v202
    %v793 = vunpack.c.l.b16 %v203
    %v794 = vunpack.c.h.b16 %v203
    %v795 = vunpack.c.l.b16 %v204
    %v796 = vunpack.c.h.b16 %v204
    %v797 = vunpack.c.l.b16 %v205
    %v798 = vunpack.c.h.b16 %v205
    %v799 = vunpack.c.l.b16 %v206
    %v800 = vunpack.c.h.b16 %v206
    %v801 = vunpack.c.l.b16 %v207
    %v802 = vunpack.c.h.b16 %v207
    %v803 = vunpack.c.l.b16 %v208
    %v804 = vunpack.c.h.b16 %v208
    %v805 = vunpack.c.l.b16 %v209
    %v806 = vunpack.c.h.b16 %v209
    %v807 = vunpack.c.l.b16 %v210
    %v808 = vunpack.c.h.b16 %v210
    %v809 = vunpack.c.l.b16 %v211
    %v810 = vunpack.c.h.b16 %v211
    %v811 = vunpack.c.l.b16 %v212
    %v812 = vunpack.c.h.b16 %v212
    %v813 = vunpack.c.l.b16 %v213
    %v814 = vunpack.c.h.b16 %v213
    %v815 = vunpack.c.l.b16 %v214
    %v816 = vunpack.c.h.b16 %v214
    %v817 = vunpack.c.l.b16 %v215
    %v818 = vunpack.c.h.b16 %v215
    %v819 = vunpack.c.l.b16 %v216
    %v820 = vunpack.c.h.b16 %v216
    %v821 = vunpack.c.l.b16 %v217
    %v822 = vunpack.c.h.b16 %v217
    %v823 = vunpack.c.l.b16 %v218
    %v824 = vunpack.c.h.b16 %v218
    %v825 = vunpack.c.l.b16 %v219
    %v826 = vunpack.c.h.b16 %v219
    %v827 = vunpack.c.l.b16 %v220
    %v828 = vunpack.c.h.b16 %v220
    %v829 = vunpack.c.l.b16 %v221
    %v830 = vunpack.c.h.b16 %v221
    %v831 = vunpack.c.l.b16 %v222
    %v832 = vunpack.c.h.b16 %v222
    %v833 = vunpack.c.l.b16 %v223
    %v834 = vunpack.c.h.b16 %v223
    %v835 = vunpack.c.l.b16 %v224
    %v836 = vunpack.c.h.b16 %v224
    %v837 = vunpack.c.l.b16 %v225
    %v838 = vunpack.c.h.b16 %v225
    %v839 = vunpack.c.l.b16 %v226
    %v840 = vunpack.c.h.b16 %v226
    %v841 = vunpack.c.l.b16 %v227
    %v842 = vunpack.c.h.b16 %v227
    %v843 = vunpack.c.l.b16 %v228
    %v844 = vunpack.c.h.b16 %v228
    %v845 = vunpack.c.l.b16 %v229
    %v846 = vunpack.c.h.b16 %v229
    %v847 = vunpack.c.l.b16 %v230
    %v848 = vunpack.c.h.b16 %v230
    %v849 = vunpack.c.l.b16 %v231
    %v850 = vunpack.c.h.b16 %v231
    %v851 = vunpack.c.l.b16 %v232
    %v852 = vunpack.c.h.b16 %v232
    %v853 = vunpack.c.l.b16 %v233
    %v854 = vunpack.c.h.b16 %v233
    %v855 = vunpack.c.l.b16 %v234
    %v856 = vunpack.c.h.b16 %v234
    %v857 = vunpack.c.l.b16 %v235
    %v858 = vunpack.c.h.b16 %v235
    %v859 = vunpack.c.l.b16 %v236
    %v860 = vunpack.c.h.b16 %v236
    %v861 = vunpack.c.l.b16 %v237
    %v862 = vunpack.c.h.b16 %v237
    %v863 = vunpack.c.l.b16 %v238
    %v864 = vunpack.c.h.b16 %v238
    %v865 = vunpack.c.l.b16 %v239
    %v866 = vunpack.c.h.b16 %v239
    %v867 = vunpack.c.l.b16 %v240
    %v868 = vunpack.c.h.b16 %v240
    %v869 = vunpack.c.l.b16 %v241
    %v870 = vunpack.c.h.b16 %v241
    %v871 = vunpack.c.l.b16 %v242
    %v872 = vunpack.c.h.b16 %v242
    %v873 = vunpack.c.l.b16 %v243
    %v874 = vunpack.c.h.b16 %v243
    %v875 = vunpack.c.l.b16 %v244
    %v876 = vunpack.c.h.b16 %v244
    %v877 = vunpack.c.l.b16 %v245
    %v878 = vunpack.c.h.b16 %v245
    %v879 = vunpack.c.l.b16 %v246
    %v880 = vunpack.c.h.b16 %v246
    %v881 = vunpack.c.l.b16 %v247
    %v882 = vunpack.c.h.b16 %v247
    %v883 = vunpack.c.l.b16 %v248
    %v884 = vunpack.c.h.b16 %v248
    %v885 = vunpack.c.l.b16 %v249
    %v886 = vunpack.c.h.b16 %v249
    %v887 = vunpack.c.l.b16 %v250
    %v888 = vunpack.c.h.b16 %v250
    %v889 = vunpack.c.l.b16 %v251
    %v890 = vunpack.c.h.b16 %v251
    %v891 = vunpack.c.l.b16 %v252
    %v892 = vunpack.c.h.b16 %v252
    %v893 = vunpack.c.l.b16 %v253
    %v894 = vunpack.c.h.b16 %v253
    %v895 = vunpack.c.l.b16 %v254
    %v896 = vunpack.c.h.b16 %v254
    %v897 = vunpack.c.l.b16 %v255
    %v898 = vunpack.c.h.b16 %v255
    %v899 = vunpack.c.l.b16 %v256
    %v900 = vunpack.c.h.b16 %v256
    %v901 = vunpack.c.l.b16 %v257
    %v902 = vunpack.c.h.b16 %v257
    %v903 = vunpack.c.l.b16 %v258
    %v904 = vunpack.c.h.b16 %v258
    %v905 = vunpack.c.l.b16 %v259
    %v906 = vunpack.c.h.b16 %v259
    %v907 = vunpack.c.l.b16 %v260
    %v908 = vunpack.c.h.b16 %v260
    %v909 = vunpack.c.l.b16 %v261
    %v910 = vunpack.c.h.b16 %v261
    %v911 = vunpack.c.l.b16 %v262
    %v912 = vunpack.c.h.b16 %v262
    %v913 = vunpack.c.l.b16 %v263
    %v914 = vunpack.c.h.b16 %v263
    %v915 = vunpack.c.l.b16 %v264
    %v916 = vunpack.c.h.b16 %v264
    %v917 = vunpack.c.l.b16 %v265
    %v918 = vunpack.c.h.b16 %v265
    %v919 = vunpack.c.l.b16 %v266
    %v920 = vunpack.c.h.b16 %v266
    %v921 = vunpack.c.l.b16 %v267
    %v922 = vunpack.c.h.b16 %v267
    %v923 = vunpack.c.l.b16 %v268
    %v924 = vunpack.c.h.b16 %v268
    %v925 = vunpack.c.l.b16 %v269
    %v926 = vunpack.c.h.b16 %v269
    %v927 = vunpack.c.l.b16 %v270
    %v928 = vunpack.c.h.b16 %v270
    %v929 = vunpack.c.l.b16 %v271
    %v930 = vunpack.c.h.b16 %v271
    %v931 = vunpack.c.l.b16 %v272
    %v932 = vunpack.c.h.b16 %v272
    %v933 = vunpack.c.l.b16 %v273
    %v934 = vunpack.c.h.b16 %v273
    %v935 = vunpack.c.l.b16 %v274
    %v936 = vunpack.c.h.b16 %v274
    %v937 = vunpack.c.l.b16 %v275
    %v938 = vunpack.c.h.b16 %v275
    %v939 = vunpack.c.l.b16 %v276
    %v940 = vunpack.c.h.b16 %v276
    %v941 = vunpack.c.l.b16 %v277
    %v942 = vunpack.c.h.b16 %v277
    %v943 = vunpack.c.l.b16 %v278
    %v944 = vunpack.c.h.b16 %v278
    %v945 = vunpack.c.l.b16 %v279
    %v946 = vunpack.c.h.b16 %v279
    %v947 = vunpack.c.l.b16 %v280
    %v948 = vunpack.c.h.b16 %v280
    %v949 = vunpack.c.l.b16 %v281
    %v950 = vunpack.c.h.b16 %v281
    %v951 = vunpack.c.l.b16 %v282
    %v952 = vunpack.c.h.b16 %v282
    %v953 = vunpack.c.l.b16 %v283
    %v954 = vunpack.c.h.b16 %v283
    %v955 = vunpack.c.l.b16 %v284
    %v956 = vunpack.c.h.b16 %v284
    %v957 = vunpack.c.l.b16 %v285
    %v958 = vunpack.c.h.b16 %v285
    %v959 = vunpack.c.l.b16 %v286
    %v960 = vunpack.c.h.b16 %v286
    %v961 = vunpack.c.l.b16 %v287
    %v962 = vunpack.c.h.b16 %v287
    %v963 = vunpack.c.l.b16 %v288
    %v964 = vunpack.c.h.b16 %v288
    %v965 = vunpack.c.l.b16 %v289
    %v966 = vunpack.c.h.b16 %v289
    %v967 = vunpack.c.l.b16 %v290
    %v968 = vunpack.c.h.b16 %v290
    %v969 = vunpack.c.l.b16 %v291
    %v970 = vunpack.c.h.b16 %v291
    %v971 = vunpack.c.l.b16 %v292
    %v972 = vunpack.c.h.b16 %v292
    %v973 = vunpack.c.l.b16 %v293
    %v974 = vunpack.c.h.b16 %v293
    %v975 = vunpack.c.l.b16 %v294
    %v976 = vunpack.c.h.b16 %v294
    %v977 = vunpack.c.l.b16 %v295
    %v978 = vunpack.c.h.b16 %v295
    %v979 = vunpack.c.l.b16 %v296
    %v980 = vunpack.c.h.b16 %v296
    %v981 = vunpack.c.l.b16 %v297
    %v982 = vunpack.c.h.b16 %v297
    %v983 = vunpack.c.l.b16 %v298
    %v984 = vunpack.c.h.b16 %v298
    %v985 = vunpack.c.l.b16 %v299
    %v986 = vunpack.c.h.b16 %v299
    %v987 = vunpack.c.l.b16 %v300
    %v988 = vunpack.c.h.b16 %v300
    %v989 = vunpack.c.l.b16 %v301
    %v990 = vunpack.c.h.b16 %v301
    %v991 = vunpack.c.l.b16 %v302
    %v992 = vunpack.c.h.b16 %v302
    %v993 = vunpack.c.l.b16 %v303
    %v994 = vunpack.c.h.b16 %v303
    %v995 = vunpack.c.l.b16 %v304
    %v996 = vunpack.c.h.b16 %v304
    %v997 = vunpack.c.l.b16 %v305
    %v998 = vunpack.c.h.b16 %v305
    %v999 = vunpack.c.l.b16 %v306
    %v1000 = vunpack.c.h.b16 %v306
    %v1001 = vpack.c.b16 %v557, %v553
    %v1002 = vpack.c.b16 %v558, %v554
    %v1003 = vpack.c.b16 %v559, %v555
    %v1004 = vpack.c.b16 %v560, %v556
    %v1005 = vpack.c.b16 %v565, %v561
    %v1006 = vpack.c.b16 %v566, %v562
    %v1007 = vpack.c.b16 %v567, %v563
    %v1008 = vpack.c.b16 %v568, %v564
    %v1009 = vpack.c.b16 %v573, %v569
    %v1010 = vpack.c.b16 %v574, %v570
    %v1011 = vpack.c.b16 %v575, %v571
    %v1012 = vpack.c.b16 %v576, %v572
    %v1013 = vpack.c.b16 %v581, %v577
    %v1014 = vpack.c.b16 %v582, %v578
    %v1015 = vpack.c.b16 %v583, %v579
    %v1016 = vpack.c.b16 %v584, %v580
    %v1017 = vpack.c.b16 %v589, %v585
    %v1018 = vpack.c.b16 %v590, %v586
    %v1019 = vpack.c.b16 %v591, %v587
    %v1020 = vpack.c.b16 %v592, %v588
    %v1021 = vpack.c.b16 %v597, %v593
    %v1022 = vpack.c.b16 %v598, %v594
    %v1023 = vpack.c.b16 %v599, %v595
    %v1024 = vpack.c.b16 %v600, %v596
    %v1025 = vpack.c.b16 %v605, %v601
    %v1026 = vpack.c.b16 %v606, %v602
    %v1027 = vpack.c.b16 %v607, %v603
    %v1028 = vpack.c.b16 %v608, %v604
    %v1029 = vpack.c.b16 %v613, %v609
    %v1030 = vpack.c.b16 %v614, %v610
    %v1031 = vpack.c.b16 %v615, %v611
    %v1032 = vpack.c.b16 %v616, %v612
    %v1033 = vpack.c.b16 %v621, %v617
    %v1034 = vpack.c.b16 %v622, %v618
    %v1035 = vpack.c.b16 %v623, %v619
    %v1036 = vpack.c.b16 %v624, %v620
    %v1037 = vpack.c.b16 %v629, %v625
    %v1038 = vpack.c.b16 %v630, %v626
    %v1039 = vpack.c.b16 %v631, %v627
    %v1040 = vpack.c.b16 %v632, %v628
    %v1041 = vpack.c.b16 %v637, %v633
    %v1042 = vpack.c.b16 %v638, %v634
    %v1043 = vpack.c.b16 %v639, %v635
    %v1044 = vpack.c.b16 %v640, %v636
    %v1045 = vpack.c.b16 %v645, %v641
    %v1046 = vpack.c.b16 %v646, %v642
    %v1047 = vpack.c.b16 %v647, %v643
    %v1048 = vpack.c.b16 %v648, %v644
    %v1049 = vpack.c.b16 %v653, %v649
    %v1050 = vpack.c.b16 %v654, %v650
    %v1051 = vpack.c.b16 %v655, %v651
    %v1052 = vpack.c.b16 %v656, %v652
    %v1053 = vpack.c.b16 %v661, %v657
    %v1054 = vpack.c.b16 %v662, %v658
    %v1055 = vpack.c.b16 %v663, %v659
    %v1056 = vpack.c.b16 %v664, %v660
    %v1057 = vpack.c.b16 %v669, %v665
    %v1058 = vpack.c.b16 %v670, %v666
    %v1059 = vpack.c.b16 %v671, %v667
    %v1060 = vpack.c.b16 %v672, %v668
    %v1061 = vpack.c.b16 %v677, %v673
    %v1062 = vpack.c.b16 %v678, %v674
    %v1063 = vpack.c.b16 %v679, %v675
    %v1064 = vpack.c.b16 %v680, %v676
    %v1065 = vpack.c.b16 %v685, %v681
    %v1066 = vpack.c.b16 %v686, %v682
    %v1067 = vpack.c.b16 %v687, %v683
    %v1068 = vpack.c.b16 %v688, %v684
    %v1069 = vpack.c.b16 %v693, %v689
    %v1070 = vpack.c.b16 %v694, %v690
    %v1071 = vpack.c.b16 %v695, %v691
    %v1072 = vpack.c.b16 %v696, %v692
    %v1073 = vpack.c.b16 %v701, %v697
    %v1074 = vpack.c.b16 %v702, %v698
    %v1075 = vpack.c.b16 %v703, %v699
    %v1076 = vpack.c.b16 %v704, %v700
    %v1077 = vpack.c.b16 %v709, %v705
    %v1078 = vpack.c.b16 %v710, %v706
    %v1079 = vpack.c.b16 %v711, %v707
    %v1080 = vpack.c.b16 %v712, %v708
    %v1081 = vpack.c.b16 %v717, %v713
    %v1082 = vpack.c.b16 %v718, %v714
    %v1083 = vpack.c.b16 %v719, %v715
    %v1084 = vpack.c.b16 %v720, %v716
    %v1085 = vpack.c.b16 %v725, %v721
    %v1086 = vpack.c.b16 %v726, %v722
    %v1087 = vpack.c.b16 %v727, %v723
    %v1088 = vpack.c.b16 %v728, %v724
    %v1089 = vpack.c.b16 %v733, %v729
    %v1090 = vpack.c.b16 %v734, %v730
    %v1091 = vpack.c.b16 %v735, %v731
    %v1092 = vpack.c.b16 %v736, %v732
    %v1093 = vpack.c.b16 %v741, %v737
    %v1094 = vpack.c.b16 %v742, %v738
    %v1095 = vpack.c.b16 %v743, %v739
    %v1096 = vpack.c.b16 %v744, %v740
    %v1097 = vpack.c.b16 %v749, %v745
    %v1098 = vpack.c.b16 %v750, %v746
    %v1099 = vpack.c.b16 %v751, %v747
    %v1100 = vpack.c.b16 %v752, %v748
    %v1101 = vpack.c.b16 %v757, %v753
    %v1102 = vpack.c.b16 %v758, %v754
    %v1103 = vpack.c.b16 %v759, %v755
    %v1104 = vpack.c.b16 %v760, %v756
    %v1105 = vpack.c.b16 %v765, %v761
    %v1106 = vpack.c.b16 %v766, %v762
    %v1107 = vpack.c.b16 %v767, %v763
    %v1108 = vpack.c.b16 %v768, %v764
    %v1109 = vpack.c.b16 %v773, %v769
    %v1110 = vpack.c.b16 %v774, %v770
    %v1111 = vpack.c.b16 %v775, %v771
    %v1112 = vpack.c.b16 %v776, %v772
    %v1113 = vpack.c.b16 %v781, %v777
    %v1114 = vpack.c.b16 %v782, %v778
    %v1115 = vpack.c.b16 %v783, %v779
    %v1116 = vpack.c.b16 %v784, %v780
    %v1117 = vpack.c.b16 %v789, %v785
    %v1118 = vpack.c.b16 %v790, %v786
    %v1119 = vpack.c.b16 %v791, %v787
    %v1120 = vpack.c.b16 %v792, %v788
    %v1121 = vpack.c.b16 %v797, %v793
    %v1122 = vpack.c.b16 %v798, %v794
    %v1123 = vpack.c.b16 %v799, %v795
    %v1124 = vpack.c.b16 %v800, %v796
    %v1125 = vpack.c.b16 %v805, %v801
    %v1126 = vpack.c.b16 %v806, %v802
    %v1127 = vpack.c.b16 %v807, %v803
    %v1128 = vpack.c.b16 %v808, %v804
    %v1129 = vpack.c.b16 %v813, %v809
    %v1130 = vpack.c.b16 %v814, %v810
    %v1131 = vpack.c.b16 %v815, %v811
    %v1132 = vpack.c.b16 %v816, %v812
    %v1133 = vpack.c.b16 %v821, %v817
    %v1134 = vpack.c.b16 %v822, %v818
    %v1135 = vpack.c.b16 %v823, %v819
    %v1136 = vpack.c.b16 %v824, %v820
    %v1137 = vpack.c.b16 %v829, %v825
    %v1138 = vpack.c.b16 %v830, %v826
    %v1139 = vpack.c.b16 %v831, %v827
    %v1140 = vpack.c.b16 %v832, %v828
    %v1141 = vpack.c.b16 %v837, %v833
    %v1142 = vpack.c.b16 %v838, %v834
    %v1143 = vpack.c.b16 %v839, %v835
    %v1144 = vpack.c.b16 %v840, %v836
    %v1145 = vpack.c.b16 %v845, %v841
    %v1146 = vpack.c.b16 %v846, %v842
    %v1147 = vpack.c.b16 %v847, %v843
    %v1148 = vpack.c.b16 %v848, %v844
    %v1149 = vpack.c.b16 %v853, %v849
    %v1150 = vpack.c.b16 %v854, %v850
    %v1151 = vpack.c.b16 %v855, %v851
    %v1152 = vpack.c.b16 %v856, %v852
    %v1153 = vpack.c.b16 %v861, %v857
    %v1154 = vpack.c.b16 %v862, %v858
    %v1155 = vpack.c.b16 %v863, %v859
    %v1156 = vpack.c.b16 %v864, %v860
    %v1157 = vpack.c.b16 %v869, %v865
    %v1158 = vpack.c.b16 %v870, %v866
    %v1159 = vpack.c.b16 %v871, %v867
    %v1160 = vpack.c.b16 %v872, %v868
    %v1161 = vpack.c.b16 %v877, %v873
    %v1162 = vpack.c.b16 %v878, %v874
    %v1163 = vpack.c.b16 %v879, %v875
    %v1164 = vpack.c.b16 %v880, %v876
    %v1165 = vpack.c.b16 %v885, %v881
    %v1166 = vpack.c.b16 %v886, %v882
    %v1167 = vpack.c.b16 %v887, %v883
    %v1168 = vpack.c.b16 %v888, %v884
    %v1169 = vpack.c.b16 %v893, %v889
    %v1170 = vpack.c.b16 %v894, %v890
    %v1171 = vpack.c.b16 %v895, %v891
    %v1172 = vpack.c.b16 %v896, %v892
    %v1173 = vpack.c.b16 %v901, %v897
    %v1174 = vpack.c.b16 %v902, %v898
    %v1175 = vpack.c.b16 %v903, %v899
    %v1176 = vpack.c.b16 %v904, %v900
    %v1177 = vpack.c.b16 %v909, %v905
    %v1178 = vpack.c.b16 %v910, %v906
    %v1179 = vpack.c.b16 %v911, %v907
    %v1180 = vpack.c.b16 %v912, %v908
    %v1181 = vpack.c.b16 %v917, %v913
    %v1182 = vpack.c.b16 %v918, %v914
    %v1183 = vpack.c.b16 %v919, %v915
    %v1184 = vpack.c.b16 %v920, %v916
    %v1185 = vpack.c.b16 %v925, %v921
    %v1186 = vpack.c.b16 %v926, %v922
    %v1187 = vpack.c.b16 %v927, %v923
    %v1188 = vpack.c.b16 %v928, %v924
    %v1189 = vpack.c.b16 %v933, %v929
    %v1190 = vpack.c.b16 %v934, %v930
    %v1191 = vpack.c.b16 %v935, %v931
    %v1192 = vpack.c.b16 %v936, %v932
    %v1193 = vpack.c.b16 %v941, %v937
    %v1194 = vpack.c.b16 %v942, %v938
    %v1195 = vpack.c.b16 %v943, %v939
    %v1196 = vpack.c.b16 %v944, %v940
    %v1197 = vpack.c.b16 %v949, %v945
    %v1198 = vpack.c.b16 %v950, %v946
    %v1199 = vpack.c.b16 %v951, %v947
    %v1200 = vpack.c.b16 %v952, %v948
    %v1201 = vpack.c.b16 %v957, %v953
    %v1202 = vpack.c.b16 %v958, %v954
    %v1203 = vpack.c.b16 %v959, %v955
    %v1204 = vpack.c.b16 %v960, %v956
    %v1205 = vpack.c.b16 %v965, %v961
    %v1206 = vpack.c.b16 %v966, %v962
    %v1207 = vpack.c.b16 %v967, %v963
    %v1208 = vpack.c.b16 %v968, %v964
    %v1209 = vpack.c.b16 %v973, %v969
    %v1210 = vpack.c.b16 %v974, %v970
    %v1211 = vpack.c.b16 %v975, %v971
    %v1212 = vpack.c.b16 %v976, %v972
    %v1213 = vpack.c.b16 %v981, %v977
    %v1214 = vpack.c.b16 %v982, %v978
    %v1215 = vpack.c.b16 %v983, %v979
    %v1216 = vpack.c.b16 %v984, %v980
    %v1217 = vpack.c.b16 %v989, %v985
    %v1218 = vpack.c.b16 %v990, %v986
    %v1219 = vpack.c.b16 %v991, %v987
    %v1220 = vpack.c.b16 %v992, %v988
    %v1221 = vpack.c.b16 %v997, %v993
    %v1222 = vpack.c.b16 %v998, %v994
    %v1223 = vpack.c.b16 %v999, %v995
    %v1224 = vpack.c.b16 %v1000, %v996
    %1449 = vmatprep.subr.bf16.mxu0 %v1002
    %1450 = vmatpush1.bf16.msra.mxu0 %v1001
    %1451 = vmatprep.subr.bf16.mxu0 %v1006
    %1452 = vmatpush1.bf16.msra.mxu0 %v1005
    %1453 = vmatprep.subr.bf16.mxu0 %v1010
    %1454 = vmatpush1.bf16.msra.mxu0 %v1009
    %1455 = vmatprep.subr.bf16.mxu0 %v1014
    %1456 = vmatpush1.bf16.msra.mxu0 %v1013
    %1457 = vmatprep.subr.bf16.mxu0 %v1018
    %1458 = vmatpush1.bf16.msra.mxu0 %v1017
    %1459 = vmatprep.subr.bf16.mxu0 %v1022
    %1460 = vmatpush1.bf16.msra.mxu0 %v1021
    %1461 = vmatprep.subr.bf16.mxu0 %v1026
    %1462 = vmatpush1.bf16.msra.mxu0 %v1025
    %1463 = vmatprep.subr.bf16.mxu0 %v1030
    %1464 = vmatpush1.bf16.msra.mxu0 %v1029
    %1465 = vmatprep.subr.bf16.mxu0 %v1034
    %1466 = vmatpush1.bf16.msra.mxu0 %v1033
    %1467 = vmatprep.subr.bf16.mxu0 %v1038
    %1468 = vmatpush1.bf16.msra.mxu0 %v1037
    %1469 = vmatprep.subr.bf16.mxu0 %v1042
    %1470 = vmatpush1.bf16.msra.mxu0 %v1041
    %1471 = vmatprep.subr.bf16.mxu0 %v1046
    %1472 = vmatpush1.bf16.msra.mxu0 %v1045
    %1473 = vmatprep.subr.bf16.mxu0 %v1050
    %1474 = vmatpush1.bf16.msra.mxu0 %v1049
    %1475 = vmatprep.subr.bf16.mxu0 %v1054
    %1476 = vmatpush1.bf16.msra.mxu0 %v1053
    %1477 = vmatprep.subr.bf16.mxu0 %v1058
    %1478 = vmatpush1.bf16.msra.mxu0 %v1057
    %1479 = vmatprep.subr.bf16.mxu0 %v1062
    %1480 = vmatpush1.bf16.msra.mxu0 %v1061
    %1481 = vmatprep.mubr.bf16.mxu0 %v77
    %1482 = vmatmul.mubr.bf16.gmra.mrb[0].mxu0 %v76
    %v1483 = vpop.f32.mrb[0].mxu0
    %v1484 = vadd.f32 %v312, %v1483
    %v1485 = vpop.f32.mrb[0].mxu0
    %v1486 = vadd.f32 %v316, %v1485
    %v1487 = vpop.f32.mrb[0].mxu0
    %v1488 = vpop.f32.mrb[0].mxu0
    %1489 = vdwg.mxu0
    %1490 = vmatprep.subr.bf16.mxu0 %v1066
    %1491 = vmatpush1.bf16.msra.mxu0 %v1065
    %1492 = vmatprep.subr.bf16.mxu0 %v1070
    %1493 = vmatpush1.bf16.msra.mxu0 %v1069
    %1494 = vmatprep.subr.bf16.mxu0 %v1074
    %1495 = vmatpush1.bf16.msra.mxu0 %v1073
    %1496 = vmatprep.subr.bf16.mxu0 %v1078
    %1497 = vmatpush1.bf16.msra.mxu0 %v1077
    %1498 = vmatprep.subr.bf16.mxu0 %v1082
    %1499 = vmatpush1.bf16.msra.mxu0 %v1081
    %1500 = vmatprep.subr.bf16.mxu0 %v1086
    %1501 = vmatpush1.bf16.msra.mxu0 %v1085
    %1502 = vmatprep.subr.bf16.mxu0 %v1090
    %1503 = vmatpush1.bf16.msra.mxu0 %v1089
    %1504 = vmatprep.subr.bf16.mxu0 %v1094
    %1505 = vmatpush1.bf16.msra.mxu0 %v1093
    %1506 = vmatprep.subr.bf16.mxu0 %v1098
    %1507 = vmatpush1.bf16.msra.mxu0 %v1097
    %1508 = vmatprep.subr.bf16.mxu0 %v1102
    %1509 = vmatpush1.bf16.msra.mxu0 %v1101
    %1510 = vmatprep.subr.bf16.mxu0 %v1106
    %1511 = vmatpush1.bf16.msra.mxu0 %v1105
    %1512 = vmatprep.subr.bf16.mxu0 %v1110
    %1513 = vmatpush1.bf16.msra.mxu0 %v1109
    %1514 = vmatprep.subr.bf16.mxu0 %v1114
    %1515 = vmatpush1.bf16.msra.mxu0 %v1113
    %1516 = vmatprep.subr.bf16.mxu0 %v1118
    %1517 = vmatpush1.bf16.msra.mxu0 %v1117
    %1518 = vmatprep.subr.bf16.mxu0 %v1122
    %1519 = vmatpush1.bf16.msra.mxu0 %v1121
    %1520 = vmatprep.subr.bf16.mxu0 %v1126
    %1521 = vmatpush1.bf16.msra.mxu0 %v1125
    %1522 = vmatprep.mubr.bf16.mxu0 %v79
    %1523 = vmatmul.mubr.bf16.gmra.mrb[0].mxu0 %v78
    %v1524 = vpop.f32.mrb[0].mxu0
    %v1525 = vadd.f32 %v1484, %v1524
    %v1526 = vpop.f32.mrb[0].mxu0
    %v1527 = vadd.f32 %v1486, %v1526
    %v1528 = vpop.f32.mrb[0].mxu0
    %v1529 = vpop.f32.mrb[0].mxu0
    %1530 = vdwg.mxu0
    %1531 = vmatprep.subr.bf16.mxu0 %v1130
    %1532 = vmatpush1.bf16.msra.mxu0 %v1129
    %1533 = vmatprep.subr.bf16.mxu0 %v1134
    %1534 = vmatpush1.bf16.msra.mxu0 %v1133
    %1535 = vmatprep.subr.bf16.mxu0 %v1138
    %1536 = vmatpush1.bf16.msra.mxu0 %v1137
    %1537 = vmatprep.subr.bf16.mxu0 %v1142
    %1538 = vmatpush1.bf16.msra.mxu0 %v1141
    %1539 = vmatprep.subr.bf16.mxu0 %v1146
    %1540 = vmatpush1.bf16.msra.mxu0 %v1145
    %1541 = vmatprep.subr.bf16.mxu0 %v1150
    %1542 = vmatpush1.bf16.msra.mxu0 %v1149
    %1543 = vmatprep.subr.bf16.mxu0 %v1154
    %1544 = vmatpush1.bf16.msra.mxu0 %v1153
    %1545 = vmatprep.subr.bf16.mxu0 %v1158
    %1546 = vmatpush1.bf16.msra.mxu0 %v1157
    %1547 = vmatprep.subr.bf16.mxu0 %v1162
    %1548 = vmatpush1.bf16.msra.mxu0 %v1161
    %1549 = vmatprep.subr.bf16.mxu0 %v1166
    %1550 = vmatpush1.bf16.msra.mxu0 %v1165
    %1551 = vmatprep.subr.bf16.mxu0 %v1170
    %1552 = vmatpush1.bf16.msra.mxu0 %v1169
    %1553 = vmatprep.subr.bf16.mxu0 %v1174
    %1554 = vmatpush1.bf16.msra.mxu0 %v1173
    %1555 = vmatprep.subr.bf16.mxu0 %v1178
    %1556 = vmatpush1.bf16.msra.mxu0 %v1177
    %1557 = vmatprep.subr.bf16.mxu0 %v1182
    %1558 = vmatpush1.bf16.msra.mxu0 %v1181
    %1559 = vmatprep.subr.bf16.mxu0 %v1186
    %1560 = vmatpush1.bf16.msra.mxu0 %v1185
    %1561 = vmatprep.subr.bf16.mxu0 %v1190
    %1562 = vmatpush1.bf16.msra.mxu0 %v1189
    %1563 = vmatprep.mubr.bf16.mxu0 %v81
    %1564 = vmatmul.mubr.bf16.gmra.mrb[0].mxu0 %v80
    %v1565 = vpop.f32.mrb[0].mxu0
    %v1566 = vadd.f32 %v1525, %v1565
    %v1567 = vpop.f32.mrb[0].mxu0
    %v1568 = vadd.f32 %v1527, %v1567
    %v1569 = vpop.f32.mrb[0].mxu0
    %v1570 = vpop.f32.mrb[0].mxu0
    %1571 = vdwg.mxu0
    %1572 = vmatprep.subr.bf16.mxu0 %v1194
    %1573 = vmatpush1.bf16.msra.mxu0 %v1193
    %1574 = vmatprep.subr.bf16.mxu0 %v1198
    %1575 = vmatpush1.bf16.msra.mxu0 %v1197
    %1576 = vmatprep.subr.bf16.mxu0 %v1202
    %1577 = vmatpush1.bf16.msra.mxu0 %v1201
    %1578 = vmatprep.subr.bf16.mxu0 %v1206
    %1579 = vmatpush1.bf16.msra.mxu0 %v1205
    %1580 = vmatprep.subr.bf16.mxu0 %v1210
    %1581 = vmatpush1.bf16.msra.mxu0 %v1209
    %1582 = vmatprep.subr.bf16.mxu0 %v1214
    %1583 = vmatpush1.bf16.msra.mxu0 %v1213
    %1584 = vmatprep.subr.bf16.mxu0 %v1218
    %1585 = vmatpush1.bf16.msra.mxu0 %v1217
    %1586 = vmatprep.subr.bf16.mxu0 %v1222
    %1587 = vmatpush1.bf16.msra.mxu0 %v1221
    %1588 = vmatprep.subr.bf16.mxu0 0
    %1589 = vmatpush1.bf16.msra.mxu0 0
    %1590 = vmatprep.subr.bf16.mxu0 0
    %1591 = vmatpush1.bf16.msra.mxu0 0
    %1592 = vmatprep.subr.bf16.mxu0 0
    %1593 = vmatpush1.bf16.msra.mxu0 0
    %1594 = vmatprep.subr.bf16.mxu0 0
    %1595 = vmatpush1.bf16.msra.mxu0 0
    %1596 = vmatprep.subr.bf16.mxu0 0
    %1597 = vmatpush1.bf16.msra.mxu0 0
    %1598 = vmatprep.subr.bf16.mxu0 0
    %1599 = vmatpush1.bf16.msra.mxu0 0
    %1600 = vmatprep.subr.bf16.mxu0 0
    %1601 = vmatpush1.bf16.msra.mxu0 0
    %1602 = vmatprep.subr.bf16.mxu0 0
    %1603 = vmatpush1.bf16.msra.mxu0 0
    %1604 = vmatprep.mubr.bf16.mxu0 0
    %1605 = vmatmul.mubr.bf16.gmra.mrb[0].mxu0 %v82
    %v1606 = vpop.f32.mrb[0].mxu0
    %v1607 = vadd.f32 %v1566, %v1606
    %v1608 = vpop.f32.mrb[0].mxu0
    %v1609 = vadd.f32 %v1568, %v1608
    %v1610 = vpop.f32.mrb[0].mxu0
    %v1611 = vpop.f32.mrb[0].mxu0
    %1612 = vdwg.mxu0
    %1613 = vmatprep.subr.bf16.mxu0 %v1004
    %1614 = vmatpush1.bf16.msra.mxu0 %v1003
    %1615 = vmatprep.subr.bf16.mxu0 %v1008
    %1616 = vmatpush1.bf16.msra.mxu0 %v1007
    %1617 = vmatprep.subr.bf16.mxu0 %v1012
    %1618 = vmatpush1.bf16.msra.mxu0 %v1011
    %1619 = vmatprep.subr.bf16.mxu0 %v1016
    %1620 = vmatpush1.bf16.msra.mxu0 %v1015
    %1621 = vmatprep.subr.bf16.mxu0 %v1020
    %1622 = vmatpush1.bf16.msra.mxu0 %v1019
    %1623 = vmatprep.subr.bf16.mxu0 %v1024
    %1624 = vmatpush1.bf16.msra.mxu0 %v1023
    %1625 = vmatprep.subr.bf16.mxu0 %v1028
    %1626 = vmatpush1.bf16.msra.mxu0 %v1027
    %1627 = vmatprep.subr.bf16.mxu0 %v1032
    %1628 = vmatpush1.bf16.msra.mxu0 %v1031
    %1629 = vmatprep.subr.bf16.mxu0 %v1036
    %1630 = vmatpush1.bf16.msra.mxu0 %v1035
    %1631 = vmatprep.subr.bf16.mxu0 %v1040
    %1632 = vmatpush1.bf16.msra.mxu0 %v1039
    %1633 = vmatprep.subr.bf16.mxu0 %v1044
    %1634 = vmatpush1.bf16.msra.mxu0 %v1043
    %1635 = vmatprep.subr.bf16.mxu0 %v1048
    %1636 = vmatpush1.bf16.msra.mxu0 %v1047
    %1637 = vmatprep.subr.bf16.mxu0 %v1052
    %1638 = vmatpush1.bf16.msra.mxu0 %v1051
    %1639 = vmatprep.subr.bf16.mxu0 %v1056
    %1640 = vmatpush1.bf16.msra.mxu0 %v1055
    %1641 = vmatprep.subr.bf16.mxu0 %v1060
    %1642 = vmatpush1.bf16.msra.mxu0 %v1059
    %1643 = vmatprep.subr.bf16.mxu0 %v1064
    %1644 = vmatpush1.bf16.msra.mxu0 %v1063
    %1645 = vmatprep.mubr.bf16.mxu0 %v77
    %1646 = vmatmul.mubr.bf16.gmra.mrb[0].mxu0 %v76
    %v1647 = vpop.f32.mrb[0].mxu0
    %v1648 = vadd.f32 %v320, %v1647
    %v1649 = vpop.f32.mrb[0].mxu0
    %v1650 = vadd.f32 %v324, %v1649
    %v1651 = vpop.f32.mrb[0].mxu0
    %v1652 = vpop.f32.mrb[0].mxu0
    %1653 = vdwg.mxu0
    %1654 = vmatprep.subr.bf16.mxu0 %v1068
    %1655 = vmatpush1.bf16.msra.mxu0 %v1067
    %1656 = vmatprep.subr.bf16.mxu0 %v1072
    %1657 = vmatpush1.bf16.msra.mxu0 %v1071
    %1658 = vmatprep.subr.bf16.mxu0 %v1076
    %1659 = vmatpush1.bf16.msra.mxu0 %v1075
    %1660 = vmatprep.subr.bf16.mxu0 %v1080
    %1661 = vmatpush1.bf16.msra.mxu0 %v1079
    %1662 = vmatprep.subr.bf16.mxu0 %v1084
    %1663 = vmatpush1.bf16.msra.mxu0 %v1083
    %1664 = vmatprep.subr.bf16.mxu0 %v1088
    %1665 = vmatpush1.bf16.msra.mxu0 %v1087
    %1666 = vmatprep.subr.bf16.mxu0 %v1092
    %1667 = vmatpush1.bf16.msra.mxu0 %v1091
    %1668 = vmatprep.subr.bf16.mxu0 %v1096
    %1669 = vmatpush1.bf16.msra.mxu0 %v1095
    %1670 = vmatprep.subr.bf16.mxu0 %v1100
    %1671 = vmatpush1.bf16.msra.mxu0 %v1099
    %1672 = vmatprep.subr.bf16.mxu0 %v1104
    %1673 = vmatpush1.bf16.msra.mxu0 %v1103
    %1674 = vmatprep.subr.bf16.mxu0 %v1108
    %1675 = vmatpush1.bf16.msra.mxu0 %v1107
    %1676 = vmatprep.subr.bf16.mxu0 %v1112
    %1677 = vmatpush1.bf16.msra.mxu0 %v1111
    %1678 = vmatprep.subr.bf16.mxu0 %v1116
    %1679 = vmatpush1.bf16.msra.mxu0 %v1115
    %1680 = vmatprep.subr.bf16.mxu0 %v1120
    %1681 = vmatpush1.bf16.msra.mxu0 %v1119
    %1682 = vmatprep.subr.bf16.mxu0 %v1124
    %1683 = vmatpush1.bf16.msra.mxu0 %v1123
    %1684 = vmatprep.subr.bf16.mxu0 %v1128
    %1685 = vmatpush1.bf16.msra.mxu0 %v1127
    %1686 = vmatprep.mubr.bf16.mxu0 %v79
    %1687 = vmatmul.mubr.bf16.gmra.mrb[0].mxu0 %v78
    %v1688 = vpop.f32.mrb[0].mxu0
    %v1689 = vadd.f32 %v1648, %v1688
    %v1690 = vpop.f32.mrb[0].mxu0
    %v1691 = vadd.f32 %v1650, %v1690
    %v1692 = vpop.f32.mrb[0].mxu0
    %v1693 = vpop.f32.mrb[0].mxu0
    %1694 = vdwg.mxu0
    %1695 = vmatprep.subr.bf16.mxu0 %v1132
    %1696 = vmatpush1.bf16.msra.mxu0 %v1131
    %1697 = vmatprep.subr.bf16.mxu0 %v1136
    %1698 = vmatpush1.bf16.msra.mxu0 %v1135
    %1699 = vmatprep.subr.bf16.mxu0 %v1140
    %1700 = vmatpush1.bf16.msra.mxu0 %v1139
    %1701 = vmatprep.subr.bf16.mxu0 %v1144
    %1702 = vmatpush1.bf16.msra.mxu0 %v1143
    %1703 = vmatprep.subr.bf16.mxu0 %v1148
    %1704 = vmatpush1.bf16.msra.mxu0 %v1147
    %1705 = vmatprep.subr.bf16.mxu0 %v1152
    %1706 = vmatpush1.bf16.msra.mxu0 %v1151
    %1707 = vmatprep.subr.bf16.mxu0 %v1156
    %1708 = vmatpush1.bf16.msra.mxu0 %v1155
    %1709 = vmatprep.subr.bf16.mxu0 %v1160
    %1710 = vmatpush1.bf16.msra.mxu0 %v1159
    %1711 = vmatprep.subr.bf16.mxu0 %v1164
    %1712 = vmatpush1.bf16.msra.mxu0 %v1163
    %1713 = vmatprep.subr.bf16.mxu0 %v1168
    %1714 = vmatpush1.bf16.msra.mxu0 %v1167
    %1715 = vmatprep.subr.bf16.mxu0 %v1172
    %1716 = vmatpush1.bf16.msra.mxu0 %v1171
    %1717 = vmatprep.subr.bf16.mxu0 %v1176
    %1718 = vmatpush1.bf16.msra.mxu0 %v1175
    %1719 = vmatprep.subr.bf16.mxu0 %v1180
    %1720 = vmatpush1.bf16.msra.mxu0 %v1179
    %1721 = vmatprep.subr.bf16.mxu0 %v1184
    %1722 = vmatpush1.bf16.msra.mxu0 %v1183
    %1723 = vmatprep.subr.bf16.mxu0 %v1188
    %1724 = vmatpush1.bf16.msra.mxu0 %v1187
    %1725 = vmatprep.subr.bf16.mxu0 %v1192
    %1726 = vmatpush1.bf16.msra.mxu0 %v1191
    %1727 = vmatprep.mubr.bf16.mxu0 %v81
    %1728 = vmatmul.mubr.bf16.gmra.mrb[0].mxu0 %v80
    %v1729 = vpop.f32.mrb[0].mxu0
    %v1730 = vadd.f32 %v1689, %v1729
    %v1731 = vpop.f32.mrb[0].mxu0
    %v1732 = vadd.f32 %v1691, %v1731
    %v1733 = vpop.f32.mrb[0].mxu0
    %v1734 = vpop.f32.mrb[0].mxu0
    %1735 = vdwg.mxu0
    %1736 = vmatprep.subr.bf16.mxu0 %v1196
    %1737 = vmatpush1.bf16.msra.mxu0 %v1195
    %1738 = vmatprep.subr.bf16.mxu0 %v1200
    %1739 = vmatpush1.bf16.msra.mxu0 %v1199
    %1740 = vmatprep.subr.bf16.mxu0 %v1204
    %1741 = vmatpush1.bf16.msra.mxu0 %v1203
    %1742 = vmatprep.subr.bf16.mxu0 %v1208
    %1743 = vmatpush1.bf16.msra.mxu0 %v1207
    %1744 = vmatprep.subr.bf16.mxu0 %v1212
    %1745 = vmatpush1.bf16.msra.mxu0 %v1211
    %1746 = vmatprep.subr.bf16.mxu0 %v1216
    %1747 = vmatpush1.bf16.msra.mxu0 %v1215
    %1748 = vmatprep.subr.bf16.mxu0 %v1220
    %1749 = vmatpush1.bf16.msra.mxu0 %v1219
    %1750 = vmatprep.subr.bf16.mxu0 %v1224
    %1751 = vmatpush1.bf16.msra.mxu0 %v1223
    %1752 = vmatprep.subr.bf16.mxu0 0
    %1753 = vmatpush1.bf16.msra.mxu0 0
    %1754 = vmatprep.subr.bf16.mxu0 0
    %1755 = vmatpush1.bf16.msra.mxu0 0
    %1756 = vmatprep.subr.bf16.mxu0 0
    %1757 = vmatpush1.bf16.msra.mxu0 0
    %1758 = vmatprep.subr.bf16.mxu0 0
    %1759 = vmatpush1.bf16.msra.mxu0 0
    %1760 = vmatprep.subr.bf16.mxu0 0
    %1761 = vmatpush1.bf16.msra.mxu0 0
    %1762 = vmatprep.subr.bf16.mxu0 0
    %1763 = vmatpush1.bf16.msra.mxu0 0
    %1764 = vmatprep.subr.bf16.mxu0 0
    %1765 = vmatpush1.bf16.msra.mxu0 0
    %1766 = vmatprep.subr.bf16.mxu0 0
    %1767 = vmatpush1.bf16.msra.mxu0 0
    %1768 = vmatprep.mubr.bf16.mxu0 0
    %1769 = vmatmul.mubr.bf16.gmra.mrb[0].mxu0 %v82
    %v1770 = vpop.f32.mrb[0].mxu0
    %v1771 = vadd.f32 %v1730, %v1770
    %v1772 = vpop.f32.mrb[0].mxu0
    %v1773 = vadd.f32 %v1732, %v1772
    %v1774 = vpop.f32.mrb[0].mxu0
    %v1775 = vpop.f32.mrb[0].mxu0
    %1776 = vdwg.mxu0
    %v1777 = vmax.f32 %v1607, 0.0
    %v1778 = vmax.f32 %v1609, 0.0
    %v1779 = vmax.f32 %v1771, 0.0
    %v1780 = vmax.f32 %v1773, 0.0
    %v1781 = vpack.c.bf16 %v1777, %v1777
    %v1782 = vpack.c.bf16 %v1778, %v1778
    %v1783 = vpack.c.bf16 %v1779, %v1779
    %v1784 = vpack.c.bf16 %v1780, %v1780
    %v1785 = vld [vmem:[%s4] sm:$0xff]
    %v1786 = vld [vmem:[%s4 + $0x8] sm:$0xff]
    %v1787 = vld [vmem:[%s4 + $0x10] sm:$0xff]
    %v1788 = vld [vmem:[%s4 + $0x18] sm:$0xff]
    %v1789 = vld [vmem:[%s4 + $0x20] sm:$0xff]
    %v1790 = vld [vmem:[%s4 + $0x28] sm:$0xff]
    %v1791 = vld [vmem:[%s4 + $0x30] sm:$0xff]
    %v1792 = vld [vmem:[%s4 + $0x38] sm:$0xff]
    %v1793 = vld [vmem:[%s4 + $0x40] sm:$0xff]
    %v1794 = vld [vmem:[%s4 + $0x48] sm:$0xff]
    %v1795 = vld [vmem:[%s4 + $0x50] sm:$0xff]
    %v1796 = vld [vmem:[%s4 + $0x58] sm:$0xff]
    %v1797 = vld [vmem:[%s4 + $0x60] sm:$0xff]
    %v1798 = vld [vmem:[%s4 + $0x68] sm:$0xff]
    %v1799 = vld [vmem:[%s4 + $0x70] sm:$0xff]
    %v1800 = vld [vmem:[%s4 + $0x78] sm:$0xff]
    %v1801 = vld [vmem:[%s4 + $0x80] sm:$0xff]
    %v1802 = vld [vmem:[%s4 + $0x88] sm:$0xff]
    %v1803 = vld [vmem:[%s4 + $0x90] sm:$0xff]
    %v1804 = vld [vmem:[%s4 + $0x98] sm:$0xff]
    %v1805 = vld [vmem:[%s4 + $0xa0] sm:$0xff]
    %v1806 = vld [vmem:[%s4 + $0xa8] sm:$0xff]
    %v1807 = vld [vmem:[%s4 + $0xb0] sm:$0xff]
    %v1808 = vld [vmem:[%s4 + $0xb8] sm:$0xff]
    %v1809 = vld [vmem:[%s4 + $0xc0] sm:$0xff]
    %v1810 = vld [vmem:[%s4 + $0xc8] sm:$0xff]
    %v1811 = vld [vmem:[%s4 + $0xd0] sm:$0xff]
    %v1812 = vld [vmem:[%s4 + $0xd8] sm:$0xff]
    %v1813 = vld [vmem:[%s4 + $0xe0] sm:$0xff]
    %v1814 = vld [vmem:[%s4 + $0xe8] sm:$0xff]
    %v1815 = vld [vmem:[%s4 + $0xf0] sm:$0xff]
    %v1816 = vld [vmem:[%s4 + $0xf8] sm:$0xff]
    %v1817 = vld [vmem:[%s4 + $0x100] sm:$0xff]
    %v1818 = vld [vmem:[%s4 + $0x108] sm:$0xff]
    %v1819 = vld [vmem:[%s4 + $0x110] sm:$0xff]
    %v1820 = vld [vmem:[%s4 + $0x118] sm:$0xff]
    %v1821 = vld [vmem:[%s4 + $0x120] sm:$0xff]
    %v1822 = vld [vmem:[%s4 + $0x128] sm:$0xff]
    %v1823 = vld [vmem:[%s4 + $0x130] sm:$0xff]
    %v1824 = vld [vmem:[%s4 + $0x138] sm:$0xff]
    %v1825 = vld [vmem:[%s4 + $0x140] sm:$0xff]
    %v1826 = vld [vmem:[%s4 + $0x148] sm:$0xff]
    %v1827 = vld [vmem:[%s4 + $0x150] sm:$0xff]
    %v1828 = vld [vmem:[%s4 + $0x158] sm:$0xff]
    %v1829 = vld [vmem:[%s4 + $0x160] sm:$0xff]
    %v1830 = vld [vmem:[%s4 + $0x168] sm:$0xff]
    %v1831 = vld [vmem:[%s4 + $0x170] sm:$0xff]
    %v1832 = vld [vmem:[%s4 + $0x178] sm:$0xff]
    %v1833 = vld [vmem:[%s4 + $0x180] sm:$0xff]
    %v1834 = vld [vmem:[%s4 + $0x188] sm:$0xff]
    %v1835 = vld [vmem:[%s4 + $0x190] sm:$0xff]
    %v1836 = vld [vmem:[%s4 + $0x198] sm:$0xff]
    %v1837 = vld [vmem:[%s4 + $0x1a0] sm:$0xff]
    %v1838 = vld [vmem:[%s4 + $0x1a8] sm:$0xff]
    %v1839 = vld [vmem:[%s4 + $0x1b0] sm:$0xff]
    %v1840 = vld [vmem:[%s4 + $0x1b8] sm:$0xff]
    %v1841 = vld [vmem:[%s4 + $0x1c0] sm:$0xff]
    %v1842 = vld [vmem:[%s4 + $0x1c8] sm:$0xff]
    %v1843 = vld [vmem:[%s4 + $0x1d0] sm:$0xff]
    %v1844 = vld [vmem:[%s4 + $0x1d8] sm:$0xff]
    %v1845 = vld [vmem:[%s4 + $0x1e0] sm:$0xff]
    %v1846 = vld [vmem:[%s4 + $0x1e8] sm:$0xff]
    %v1847 = vld [vmem:[%s4 + $0x1f0] sm:$0xff]
    %v1848 = vld [vmem:[%s4 + $0x1f8] sm:$0xff]
    %v1849 = vld [vmem:[%s5] sm:$0x3]
    %v1851 = vlaneseq
    %v1852 = vshrl.u32 %v1851, 7
    %v1853 = vsub.s32 0, %v1852
    %v1854 = vrot.slane %v1849, %v1853
    %v1855 = vlaneseq
    %v1856 = vshrl.u32 %v1855, 7
    %v1857 = vsub.s32 1, %v1856
    %v1858 = vrot.slane %v1849, %v1857
    %v1925 = vunpack.c.l.b16 %v1785
    %v1926 = vunpack.c.h.b16 %v1785
    %v1927 = vunpack.c.l.b16 %v1786
    %v1928 = vunpack.c.h.b16 %v1786
    %v1929 = vunpack.c.l.b16 %v1787
    %v1930 = vunpack.c.h.b16 %v1787
    %v1931 = vunpack.c.l.b16 %v1788
    %v1932 = vunpack.c.h.b16 %v1788
    %v1933 = vunpack.c.l.b16 %v1789
    %v1934 = vunpack.c.h.b16 %v1789
    %v1935 = vunpack.c.l.b16 %v1790
    %v1936 = vunpack.c.h.b16 %v1790
    %v1937 = vunpack.c.l.b16 %v1791
    %v1938 = vunpack.c.h.b16 %v1791
    %v1939 = vunpack.c.l.b16 %v1792
    %v1940 = vunpack.c.h.b16 %v1792
    %v1941 = vunpack.c.l.b16 %v1793
    %v1942 = vunpack.c.h.b16 %v1793
    %v1943 = vunpack.c.l.b16 %v1794
    %v1944 = vunpack.c.h.b16 %v1794
    %v1945 = vunpack.c.l.b16 %v1795
    %v1946 = vunpack.c.h.b16 %v1795
    %v1947 = vunpack.c.l.b16 %v1796
    %v1948 = vunpack.c.h.b16 %v1796
    %v1949 = vunpack.c.l.b16 %v1797
    %v1950 = vunpack.c.h.b16 %v1797
    %v1951 = vunpack.c.l.b16 %v1798
    %v1952 = vunpack.c.h.b16 %v1798
    %v1953 = vunpack.c.l.b16 %v1799
    %v1954 = vunpack.c.h.b16 %v1799
    %v1955 = vunpack.c.l.b16 %v1800
    %v1956 = vunpack.c.h.b16 %v1800
    %v1957 = vunpack.c.l.b16 %v1801
    %v1958 = vunpack.c.h.b16 %v1801
    %v1959 = vunpack.c.l.b16 %v1802
    %v1960 = vunpack.c.h.b16 %v1802
    %v1961 = vunpack.c.l.b16 %v1803
    %v1962 = vunpack.c.h.b16 %v1803
    %v1963 = vunpack.c.l.b16 %v1804
    %v1964 = vunpack.c.h.b16 %v1804
    %v1965 = vunpack.c.l.b16 %v1805
    %v1966 = vunpack.c.h.b16 %v1805
    %v1967 = vunpack.c.l.b16 %v1806
    %v1968 = vunpack.c.h.b16 %v1806
    %v1969 = vunpack.c.l.b16 %v1807
    %v1970 = vunpack.c.h.b16 %v1807
    %v1971 = vunpack.c.l.b16 %v1808
    %v1972 = vunpack.c.h.b16 %v1808
    %v1973 = vunpack.c.l.b16 %v1809
    %v1974 = vunpack.c.h.b16 %v1809
    %v1975 = vunpack.c.l.b16 %v1810
    %v1976 = vunpack.c.h.b16 %v1810
    %v1977 = vunpack.c.l.b16 %v1811
    %v1978 = vunpack.c.h.b16 %v1811
    %v1979 = vunpack.c.l.b16 %v1812
    %v1980 = vunpack.c.h.b16 %v1812
    %v1981 = vunpack.c.l.b16 %v1813
    %v1982 = vunpack.c.h.b16 %v1813
    %v1983 = vunpack.c.l.b16 %v1814
    %v1984 = vunpack.c.h.b16 %v1814
    %v1985 = vunpack.c.l.b16 %v1815
    %v1986 = vunpack.c.h.b16 %v1815
    %v1987 = vunpack.c.l.b16 %v1816
    %v1988 = vunpack.c.h.b16 %v1816
    %v1989 = vunpack.c.l.b16 %v1817
    %v1990 = vunpack.c.h.b16 %v1817
    %v1991 = vunpack.c.l.b16 %v1818
    %v1992 = vunpack.c.h.b16 %v1818
    %v1993 = vunpack.c.l.b16 %v1819
    %v1994 = vunpack.c.h.b16 %v1819
    %v1995 = vunpack.c.l.b16 %v1820
    %v1996 = vunpack.c.h.b16 %v1820
    %v1997 = vunpack.c.l.b16 %v1821
    %v1998 = vunpack.c.h.b16 %v1821
    %v1999 = vunpack.c.l.b16 %v1822
    %v2000 = vunpack.c.h.b16 %v1822
    %v2001 = vunpack.c.l.b16 %v1823
    %v2002 = vunpack.c.h.b16 %v1823
    %v2003 = vunpack.c.l.b16 %v1824
    %v2004 = vunpack.c.h.b16 %v1824
    %v2005 = vunpack.c.l.b16 %v1825
    %v2006 = vunpack.c.h.b16 %v1825
    %v2007 = vunpack.c.l.b16 %v1826
    %v2008 = vunpack.c.h.b16 %v1826
    %v2009 = vunpack.c.l.b16 %v1827
    %v2010 = vunpack.c.h.b16 %v1827
    %v2011 = vunpack.c.l.b16 %v1828
    %v2012 = vunpack.c.h.b16 %v1828
    %v2013 = vunpack.c.l.b16 %v1829
    %v2014 = vunpack.c.h.b16 %v1829
    %v2015 = vunpack.c.l.b16 %v1830
    %v2016 = vunpack.c.h.b16 %v1830
    %v2017 = vunpack.c.l.b16 %v1831
    %v2018 = vunpack.c.h.b16 %v1831
    %v2019 = vunpack.c.l.b16 %v1832
    %v2020 = vunpack.c.h.b16 %v1832
    %v2021 = vunpack.c.l.b16 %v1833
    %v2022 = vunpack.c.h.b16 %v1833
    %v2023 = vunpack.c.l.b16 %v1834
    %v2024 = vunpack.c.h.b16 %v1834
    %v2025 = vunpack.c.l.b16 %v1835
    %v2026 = vunpack.c.h.b16 %v1835
    %v2027 = vunpack.c.l.b16 %v1836
    %v2028 = vunpack.c.h.b16 %v1836
    %v2029 = vunpack.c.l.b16 %v1837
    %v2030 = vunpack.c.h.b16 %v1837
    %v2031 = vunpack.c.l.b16 %v1838
    %v2032 = vunpack.c.h.b16 %v1838
    %v2033 = vunpack.c.l.b16 %v1839
    %v2034 = vunpack.c.h.b16 %v1839
    %v2035 = vunpack.c.l.b16 %v1840
    %v2036 = vunpack.c.h.b16 %v1840
    %v2037 = vunpack.c.l.b16 %v1841
    %v2038 = vunpack.c.h.b16 %v1841
    %v2039 = vunpack.c.l.b16 %v1842
    %v2040 = vunpack.c.h.b16 %v1842
    %v2041 = vunpack.c.l.b16 %v1843
    %v2042 = vunpack.c.h.b16 %v1843
    %v2043 = vunpack.c.l.b16 %v1844
    %v2044 = vunpack.c.h.b16 %v1844
    %v2045 = vunpack.c.l.b16 %v1845
    %v2046 = vunpack.c.h.b16 %v1845
    %v2047 = vunpack.c.l.b16 %v1846
    %v2048 = vunpack.c.h.b16 %v1846
    %v2049 = vunpack.c.l.b16 %v1847
    %v2050 = vunpack.c.h.b16 %v1847
    %v2051 = vunpack.c.l.b16 %v1848
    %v2052 = vunpack.c.h.b16 %v1848
    %v2053 = vpack.c.b16 %v1927, %v1925
    %v2054 = vpack.c.b16 %v1928, %v1926
    %v2055 = vpack.c.b16 %v1931, %v1929
    %v2056 = vpack.c.b16 %v1932, %v1930
    %v2057 = vpack.c.b16 %v1935, %v1933
    %v2058 = vpack.c.b16 %v1936, %v1934
    %v2059 = vpack.c.b16 %v1939, %v1937
    %v2060 = vpack.c.b16 %v1940, %v1938
    %v2061 = vpack.c.b16 %v1943, %v1941
    %v2062 = vpack.c.b16 %v1944, %v1942
    %v2063 = vpack.c.b16 %v1947, %v1945
    %v2064 = vpack.c.b16 %v1948, %v1946
    %v2065 = vpack.c.b16 %v1951, %v1949
    %v2066 = vpack.c.b16 %v1952, %v1950
    %v2067 = vpack.c.b16 %v1955, %v1953
    %v2068 = vpack.c.b16 %v1956, %v1954
    %v2069 = vpack.c.b16 %v1959, %v1957
    %v2070 = vpack.c.b16 %v1960, %v1958
    %v2071 = vpack.c.b16 %v1963, %v1961
    %v2072 = vpack.c.b16 %v1964, %v1962
    %v2073 = vpack.c.b16 %v1967, %v1965
    %v2074 = vpack.c.b16 %v1968, %v1966
    %v2075 = vpack.c.b16 %v1971, %v1969
    %v2076 = vpack.c.b16 %v1972, %v1970
    %v2077 = vpack.c.b16 %v1975, %v1973
    %v2078 = vpack.c.b16 %v1976, %v1974
    %v2079 = vpack.c.b16 %v1979, %v1977
    %v2080 = vpack.c.b16 %v1980, %v1978
    %v2081 = vpack.c.b16 %v1983, %v1981
    %v2082 = vpack.c.b16 %v1984, %v1982
    %v2083 = vpack.c.b16 %v1987, %v1985
    %v2084 = vpack.c.b16 %v1988, %v1986
    %v2085 = vpack.c.b16 %v1991, %v1989
    %v2086 = vpack.c.b16 %v1992, %v1990
    %v2087 = vpack.c.b16 %v1995, %v1993
    %v2088 = vpack.c.b16 %v1996, %v1994
    %v2089 = vpack.c.b16 %v1999, %v1997
    %v2090 = vpack.c.b16 %v2000, %v1998
    %v2091 = vpack.c.b16 %v2003, %v2001
    %v2092 = vpack.c.b16 %v2004, %v2002
    %v2093 = vpack.c.b16 %v2007, %v2005
    %v2094 = vpack.c.b16 %v2008, %v2006
    %v2095 = vpack.c.b16 %v2011, %v2009
    %v2096 = vpack.c.b16 %v2012, %v2010
    %v2097 = vpack.c.b16 %v2015, %v2013
    %v2098 = vpack.c.b16 %v2016, %v2014
    %v2099 = vpack.c.b16 %v2019, %v2017
    %v2100 = vpack.c.b16 %v2020, %v2018
    %v2101 = vpack.c.b16 %v2023, %v2021
    %v2102 = vpack.c.b16 %v2024, %v2022
    %v2103 = vpack.c.b16 %v2027, %v2025
    %v2104 = vpack.c.b16 %v2028, %v2026
    %v2105 = vpack.c.b16 %v2031, %v2029
    %v2106 = vpack.c.b16 %v2032, %v2030
    %v2107 = vpack.c.b16 %v2035, %v2033
    %v2108 = vpack.c.b16 %v2036, %v2034
    %v2109 = vpack.c.b16 %v2039, %v2037
    %v2110 = vpack.c.b16 %v2040, %v2038
    %v2111 = vpack.c.b16 %v2043, %v2041
    %v2112 = vpack.c.b16 %v2044, %v2042
    %v2113 = vpack.c.b16 %v2047, %v2045
    %v2114 = vpack.c.b16 %v2048, %v2046
    %v2115 = vpack.c.b16 %v2051, %v2049
    %v2116 = vpack.c.b16 %v2052, %v2050
    %2181 = vmatprep.subr.bf16.mxu0 %v2054
    %2182 = vmatpush1.bf16.msra.mxu0 %v2053
    %2183 = vmatprep.subr.bf16.mxu0 %v2056
    %2184 = vmatpush1.bf16.msra.mxu0 %v2055
    %2185 = vmatprep.subr.bf16.mxu0 %v2058
    %2186 = vmatpush1.bf16.msra.mxu0 %v2057
    %2187 = vmatprep.subr.bf16.mxu0 %v2060
    %2188 = vmatpush1.bf16.msra.mxu0 %v2059
    %2189 = vmatprep.subr.bf16.mxu0 %v2062
    %2190 = vmatpush1.bf16.msra.mxu0 %v2061
    %2191 = vmatprep.subr.bf16.mxu0 %v2064
    %2192 = vmatpush1.bf16.msra.mxu0 %v2063
    %2193 = vmatprep.subr.bf16.mxu0 %v2066
    %2194 = vmatpush1.bf16.msra.mxu0 %v2065
    %2195 = vmatprep.subr.bf16.mxu0 %v2068
    %2196 = vmatpush1.bf16.msra.mxu0 %v2067
    %2197 = vmatprep.subr.bf16.mxu0 %v2070
    %2198 = vmatpush1.bf16.msra.mxu0 %v2069
    %2199 = vmatprep.subr.bf16.mxu0 %v2072
    %2200 = vmatpush1.bf16.msra.mxu0 %v2071
    %2201 = vmatprep.subr.bf16.mxu0 %v2074
    %2202 = vmatpush1.bf16.msra.mxu0 %v2073
    %2203 = vmatprep.subr.bf16.mxu0 %v2076
    %2204 = vmatpush1.bf16.msra.mxu0 %v2075
    %2205 = vmatprep.subr.bf16.mxu0 %v2078
    %2206 = vmatpush1.bf16.msra.mxu0 %v2077
    %2207 = vmatprep.subr.bf16.mxu0 %v2080
    %2208 = vmatpush1.bf16.msra.mxu0 %v2079
    %2209 = vmatprep.subr.bf16.mxu0 %v2082
    %2210 = vmatpush1.bf16.msra.mxu0 %v2081
    %2211 = vmatprep.subr.bf16.mxu0 %v2084
    %2212 = vmatpush1.bf16.msra.mxu0 %v2083
    %2213 = vmatprep.mubr.bf16.mxu0 %v1782
    %2214 = vmatmul.mubr.bf16.gmra.mrb[0].mxu0 %v1781
    %v2215 = vpop.f32.mrb[0].mxu0
    %v2216 = vadd.f32 %v1854, %v2215
    %v2217 = vpop.f32.mrb[0].mxu0
    %v2218 = vadd.f32 %v1858, %v2217
    %v2219 = vpop.f32.mrb[0].mxu0
    %v2220 = vpop.f32.mrb[0].mxu0
    %2221 = vdwg.mxu0
    %2222 = vmatprep.subr.bf16.mxu0 %v2086
    %2223 = vmatpush1.bf16.msra.mxu0 %v2085
    %2224 = vmatprep.subr.bf16.mxu0 %v2088
    %2225 = vmatpush1.bf16.msra.mxu0 %v2087
    %2226 = vmatprep.subr.bf16.mxu0 %v2090
    %2227 = vmatpush1.bf16.msra.mxu0 %v2089
    %2228 = vmatprep.subr.bf16.mxu0 %v2092
    %2229 = vmatpush1.bf16.msra.mxu0 %v2091
    %2230 = vmatprep.subr.bf16.mxu0 %v2094
    %2231 = vmatpush1.bf16.msra.mxu0 %v2093
    %2232 = vmatprep.subr.bf16.mxu0 %v2096
    %2233 = vmatpush1.bf16.msra.mxu0 %v2095
    %2234 = vmatprep.subr.bf16.mxu0 %v2098
    %2235 = vmatpush1.bf16.msra.mxu0 %v2097
    %2236 = vmatprep.subr.bf16.mxu0 %v2100
    %2237 = vmatpush1.bf16.msra.mxu0 %v2099
    %2238 = vmatprep.subr.bf16.mxu0 %v2102
    %2239 = vmatpush1.bf16.msra.mxu0 %v2101
    %2240 = vmatprep.subr.bf16.mxu0 %v2104
    %2241 = vmatpush1.bf16.msra.mxu0 %v2103
    %2242 = vmatprep.subr.bf16.mxu0 %v2106
    %2243 = vmatpush1.bf16.msra.mxu0 %v2105
    %2244 = vmatprep.subr.bf16.mxu0 %v2108
    %2245 = vmatpush1.bf16.msra.mxu0 %v2107
    %2246 = vmatprep.subr.bf16.mxu0 %v2110
    %2247 = vmatpush1.bf16.msra.mxu0 %v2109
    %2248 = vmatprep.subr.bf16.mxu0 %v2112
    %2249 = vmatpush1.bf16.msra.mxu0 %v2111
    %2250 = vmatprep.subr.bf16.mxu0 %v2114
    %2251 = vmatpush1.bf16.msra.mxu0 %v2113
    %2252 = vmatprep.subr.bf16.mxu0 %v2116
    %2253 = vmatpush1.bf16.msra.mxu0 %v2115
    %2254 = vmatprep.mubr.bf16.mxu0 %v1784
    %2255 = vmatmul.mubr.bf16.gmra.mrb[0].mxu0 %v1783
    %v2256 = vpop.f32.mrb[0].mxu0
    %v2257 = vadd.f32 %v2216, %v2256
    %v2258 = vpop.f32.mrb[0].mxu0
    %v2259 = vadd.f32 %v2218, %v2258
    %v2260 = vpop.f32.mrb[0].mxu0
    %v2261 = vpop.f32.mrb[0].mxu0
    %2262 = vdwg.mxu0
    %v2263 = vld [vmem:[%s1] sm:$0xff]
    %v2264 = vmul.f32 %v2259, 0.5
    %v2265 = vmul.f32 %v2264, 1.442695
    %v2266 = vpow.pop %v2265
    %v2267 = vmul.f32 %v2263, %v2266
    %v2268 = vadd.f32 %v2257, %v2267
    %v2269 = vpack.c.bf16 %v2268, %v2268
    %v2270 = vld [vmem:[%s6] sm:$0xff]
    %v2271 = vld [vmem:[%s6 + $0x8] sm:$0xff]
    %v2272 = vld [vmem:[%s6 + $0x10] sm:$0xff]
    %v2273 = vld [vmem:[%s6 + $0x18] sm:$0xff]
    %v2274 = vld [vmem:[%s6 + $0x20] sm:$0xff]
    %v2275 = vld [vmem:[%s6 + $0x28] sm:$0xff]
    %v2276 = vld [vmem:[%s6 + $0x30] sm:$0xff]
    %v2277 = vld [vmem:[%s6 + $0x38] sm:$0xff]
    %v2278 = vld [vmem:[%s6 + $0x40] sm:$0xff]
    %v2279 = vld [vmem:[%s6 + $0x48] sm:$0xff]
    %v2280 = vld [vmem:[%s6 + $0x50] sm:$0xff]
    %v2281 = vld [vmem:[%s6 + $0x58] sm:$0xff]
    %v2282 = vld [vmem:[%s6 + $0x60] sm:$0xff]
    %v2283 = vld [vmem:[%s6 + $0x68] sm:$0xff]
    %v2284 = vld [vmem:[%s6 + $0x70] sm:$0xff]
    %v2285 = vld [vmem:[%s6 + $0x78] sm:$0xff]
    %v2286 = vld [vmem:[%s6 + $0x80] sm:$0xff]
    %v2287 = vld [vmem:[%s6 + $0x88] sm:$0xff]
    %v2288 = vld [vmem:[%s6 + $0x90] sm:$0xff]
    %v2289 = vld [vmem:[%s6 + $0x98] sm:$0xff]
    %v2290 = vld [vmem:[%s6 + $0xa0] sm:$0xff]
    %v2291 = vld [vmem:[%s6 + $0xa8] sm:$0xff]
    %v2292 = vld [vmem:[%s6 + $0xb0] sm:$0xff]
    %v2293 = vld [vmem:[%s6 + $0xb8] sm:$0xff]
    %v2294 = vld [vmem:[%s6 + $0xc0] sm:$0xff]
    %v2295 = vld [vmem:[%s6 + $0xc8] sm:$0xff]
    %v2296 = vld [vmem:[%s6 + $0xd0] sm:$0xff]
    %v2297 = vld [vmem:[%s6 + $0xd8] sm:$0xff]
    %v2298 = vld [vmem:[%s6 + $0xe0] sm:$0xff]
    %v2299 = vld [vmem:[%s6 + $0xe8] sm:$0xff]
    %v2300 = vld [vmem:[%s6 + $0xf0] sm:$0xff]
    %v2301 = vld [vmem:[%s6 + $0xf8] sm:$0xff]
    %v2302 = vld [vmem:[%s7] sm:$0xf]
    %v2304 = vlaneseq
    %v2305 = vshrl.u32 %v2304, 7
    %v2306 = vsub.s32 0, %v2305
    %v2307 = vrot.slane %v2302, %v2306
    %v2308 = vlaneseq
    %v2309 = vshrl.u32 %v2308, 7
    %v2310 = vsub.s32 1, %v2309
    %v2311 = vrot.slane %v2302, %v2310
    %v2312 = vlaneseq
    %v2313 = vshrl.u32 %v2312, 7
    %v2314 = vsub.s32 2, %v2313
    %v2315 = vrot.slane %v2302, %v2314
    %v2316 = vlaneseq
    %v2317 = vshrl.u32 %v2316, 7
    %v2318 = vsub.s32 3, %v2317
    %v2319 = vrot.slane %v2302, %v2318
    %v2356 = vunpack.c.l.b16 %v2270
    %v2357 = vunpack.c.h.b16 %v2270
    %v2358 = vunpack.c.l.b16 %v2271
    %v2359 = vunpack.c.h.b16 %v2271
    %v2360 = vunpack.c.l.b16 %v2272
    %v2361 = vunpack.c.h.b16 %v2272
    %v2362 = vunpack.c.l.b16 %v2273
    %v2363 = vunpack.c.h.b16 %v2273
    %v2364 = vunpack.c.l.b16 %v2274
    %v2365 = vunpack.c.h.b16 %v2274
    %v2366 = vunpack.c.l.b16 %v2275
    %v2367 = vunpack.c.h.b16 %v2275
    %v2368 = vunpack.c.l.b16 %v2276
    %v2369 = vunpack.c.h.b16 %v2276
    %v2370 = vunpack.c.l.b16 %v2277
    %v2371 = vunpack.c.h.b16 %v2277
    %v2372 = vunpack.c.l.b16 %v2278
    %v2373 = vunpack.c.h.b16 %v2278
    %v2374 = vunpack.c.l.b16 %v2279
    %v2375 = vunpack.c.h.b16 %v2279
    %v2376 = vunpack.c.l.b16 %v2280
    %v2377 = vunpack.c.h.b16 %v2280
    %v2378 = vunpack.c.l.b16 %v2281
    %v2379 = vunpack.c.h.b16 %v2281
    %v2380 = vunpack.c.l.b16 %v2282
    %v2381 = vunpack.c.h.b16 %v2282
    %v2382 = vunpack.c.l.b16 %v2283
    %v2383 = vunpack.c.h.b16 %v2283
    %v2384 = vunpack.c.l.b16 %v2284
    %v2385 = vunpack.c.h.b16 %v2284
    %v2386 = vunpack.c.l.b16 %v2285
    %v2387 = vunpack.c.h.b16 %v2285
    %v2388 = vunpack.c.l.b16 %v2286
    %v2389 = vunpack.c.h.b16 %v2286
    %v2390 = vunpack.c.l.b16 %v2287
    %v2391 = vunpack.c.h.b16 %v2287
    %v2392 = vunpack.c.l.b16 %v2288
    %v2393 = vunpack.c.h.b16 %v2288
    %v2394 = vunpack.c.l.b16 %v2289
    %v2395 = vunpack.c.h.b16 %v2289
    %v2396 = vunpack.c.l.b16 %v2290
    %v2397 = vunpack.c.h.b16 %v2290
    %v2398 = vunpack.c.l.b16 %v2291
    %v2399 = vunpack.c.h.b16 %v2291
    %v2400 = vunpack.c.l.b16 %v2292
    %v2401 = vunpack.c.h.b16 %v2292
    %v2402 = vunpack.c.l.b16 %v2293
    %v2403 = vunpack.c.h.b16 %v2293
    %v2404 = vunpack.c.l.b16 %v2294
    %v2405 = vunpack.c.h.b16 %v2294
    %v2406 = vunpack.c.l.b16 %v2295
    %v2407 = vunpack.c.h.b16 %v2295
    %v2408 = vunpack.c.l.b16 %v2296
    %v2409 = vunpack.c.h.b16 %v2296
    %v2410 = vunpack.c.l.b16 %v2297
    %v2411 = vunpack.c.h.b16 %v2297
    %v2412 = vunpack.c.l.b16 %v2298
    %v2413 = vunpack.c.h.b16 %v2298
    %v2414 = vunpack.c.l.b16 %v2299
    %v2415 = vunpack.c.h.b16 %v2299
    %v2416 = vunpack.c.l.b16 %v2300
    %v2417 = vunpack.c.h.b16 %v2300
    %v2418 = vunpack.c.l.b16 %v2301
    %v2419 = vunpack.c.h.b16 %v2301
    %v2420 = vpack.c.b16 %v2360, %v2356
    %v2421 = vpack.c.b16 %v2361, %v2357
    %v2422 = vpack.c.b16 %v2362, %v2358
    %v2423 = vpack.c.b16 %v2363, %v2359
    %v2424 = vpack.c.b16 %v2368, %v2364
    %v2425 = vpack.c.b16 %v2369, %v2365
    %v2426 = vpack.c.b16 %v2370, %v2366
    %v2427 = vpack.c.b16 %v2371, %v2367
    %v2428 = vpack.c.b16 %v2376, %v2372
    %v2429 = vpack.c.b16 %v2377, %v2373
    %v2430 = vpack.c.b16 %v2378, %v2374
    %v2431 = vpack.c.b16 %v2379, %v2375
    %v2432 = vpack.c.b16 %v2384, %v2380
    %v2433 = vpack.c.b16 %v2385, %v2381
    %v2434 = vpack.c.b16 %v2386, %v2382
    %v2435 = vpack.c.b16 %v2387, %v2383
    %v2436 = vpack.c.b16 %v2392, %v2388
    %v2437 = vpack.c.b16 %v2393, %v2389
    %v2438 = vpack.c.b16 %v2394, %v2390
    %v2439 = vpack.c.b16 %v2395, %v2391
    %v2440 = vpack.c.b16 %v2400, %v2396
    %v2441 = vpack.c.b16 %v2401, %v2397
    %v2442 = vpack.c.b16 %v2402, %v2398
    %v2443 = vpack.c.b16 %v2403, %v2399
    %v2444 = vpack.c.b16 %v2408, %v2404
    %v2445 = vpack.c.b16 %v2409, %v2405
    %v2446 = vpack.c.b16 %v2410, %v2406
    %v2447 = vpack.c.b16 %v2411, %v2407
    %v2448 = vpack.c.b16 %v2416, %v2412
    %v2449 = vpack.c.b16 %v2417, %v2413
    %v2450 = vpack.c.b16 %v2418, %v2414
    %v2451 = vpack.c.b16 %v2419, %v2415
    %2484 = vmatprep.subr.bf16.mxu0 %v2421
    %2485 = vmatpush1.bf16.msra.mxu0 %v2420
    %2486 = vmatprep.subr.bf16.mxu0 %v2425
    %2487 = vmatpush1.bf16.msra.mxu0 %v2424
    %2488 = vmatprep.subr.bf16.mxu0 %v2429
    %2489 = vmatpush1.bf16.msra.mxu0 %v2428
    %2490 = vmatprep.subr.bf16.mxu0 %v2433
    %2491 = vmatpush1.bf16.msra.mxu0 %v2432
    %2492 = vmatprep.subr.bf16.mxu0 %v2437
    %2493 = vmatpush1.bf16.msra.mxu0 %v2436
    %2494 = vmatprep.subr.bf16.mxu0 %v2441
    %2495 = vmatpush1.bf16.msra.mxu0 %v2440
    %2496 = vmatprep.subr.bf16.mxu0 %v2445
    %2497 = vmatpush1.bf16.msra.mxu0 %v2444
    %2498 = vmatprep.subr.bf16.mxu0 %v2449
    %2499 = vmatpush1.bf16.msra.mxu0 %v2448
    %2500 = vmatprep.subr.bf16.mxu0 0
    %2501 = vmatpush1.bf16.msra.mxu0 0
    %2502 = vmatprep.subr.bf16.mxu0 0
    %2503 = vmatpush1.bf16.msra.mxu0 0
    %2504 = vmatprep.subr.bf16.mxu0 0
    %2505 = vmatpush1.bf16.msra.mxu0 0
    %2506 = vmatprep.subr.bf16.mxu0 0
    %2507 = vmatpush1.bf16.msra.mxu0 0
    %2508 = vmatprep.subr.bf16.mxu0 0
    %2509 = vmatpush1.bf16.msra.mxu0 0
    %2510 = vmatprep.subr.bf16.mxu0 0
    %2511 = vmatpush1.bf16.msra.mxu0 0
    %2512 = vmatprep.subr.bf16.mxu0 0
    %2513 = vmatpush1.bf16.msra.mxu0 0
    %2514 = vmatprep.subr.bf16.mxu0 0
    %2515 = vmatpush1.bf16.msra.mxu0 0
    %2516 = vmatprep.mubr.bf16.mxu0 0
    %2517 = vmatmul.mubr.bf16.gmra.mrb[0].mxu0 %v2269
    %v2518 = vpop.f32.mrb[0].mxu0
    %v2519 = vadd.f32 %v2307, %v2518
    %v2520 = vpop.f32.mrb[0].mxu0
    %v2521 = vadd.f32 %v2311, %v2520
    %v2522 = vpop.f32.mrb[0].mxu0
    %v2523 = vpop.f32.mrb[0].mxu0
    %2524 = vdwg.mxu0
    %2525 = vmatprep.subr.bf16.mxu0 %v2423
    %2526 = vmatpush1.bf16.msra.mxu0 %v2422
    %2527 = vmatprep.subr.bf16.mxu0 %v2427
    %2528 = vmatpush1.bf16.msra.mxu0 %v2426
    %2529 = vmatprep.subr.bf16.mxu0 %v2431
    %2530 = vmatpush1.bf16.msra.mxu0 %v2430
    %2531 = vmatprep.subr.bf16.mxu0 %v2435
    %2532 = vmatpush1.bf16.msra.mxu0 %v2434
    %2533 = vmatprep.subr.bf16.mxu0 %v2439
    %2534 = vmatpush1.bf16.msra.mxu0 %v2438
    %2535 = vmatprep.subr.bf16.mxu0 %v2443
    %2536 = vmatpush1.bf16.msra.mxu0 %v2442
    %2537 = vmatprep.subr.bf16.mxu0 %v2447
    %2538 = vmatpush1.bf16.msra.mxu0 %v2446
    %2539 = vmatprep.subr.bf16.mxu0 %v2451
    %2540 = vmatpush1.bf16.msra.mxu0 %v2450
    %2541 = vmatprep.subr.bf16.mxu0 0
    %2542 = vmatpush1.bf16.msra.mxu0 0
    %2543 = vmatprep.subr.bf16.mxu0 0
    %2544 = vmatpush1.bf16.msra.mxu0 0
    %2545 = vmatprep.subr.bf16.mxu0 0
    %2546 = vmatpush1.bf16.msra.mxu0 0
    %2547 = vmatprep.subr.bf16.mxu0 0
    %2548 = vmatpush1.bf16.msra.mxu0 0
    %2549 = vmatprep.subr.bf16.mxu0 0
    %2550 = vmatpush1.bf16.msra.mxu0 0
    %2551 = vmatprep.subr.bf16.mxu0 0
    %2552 = vmatpush1.bf16.msra.mxu0 0
    %2553 = vmatprep.subr.bf16.mxu0 0
    %2554 = vmatpush1.bf16.msra.mxu0 0
    %2555 = vmatprep.subr.bf16.mxu0 0
    %2556 = vmatpush1.bf16.msra.mxu0 0
    %2557 = vmatprep.mubr.bf16.mxu0 0
    %2558 = vmatmul.mubr.bf16.gmra.mrb[0].mxu0 %v2269
    %v2559 = vpop.f32.mrb[0].mxu0
    %v2560 = vadd.f32 %v2315, %v2559
    %v2561 = vpop.f32.mrb[0].mxu0
    %v2562 = vadd.f32 %v2319, %v2561
    %v2563 = vpop.f32.mrb[0].mxu0
    %v2564 = vpop.f32.mrb[0].mxu0
    %2565 = vdwg.mxu0
    %v2566 = vmax.f32 %v2519, 0.0
    %v2567 = vmax.f32 %v2521, 0.0
    %v2568 = vmax.f32 %v2560, 0.0
    %v2569 = vmax.f32 %v2562, 0.0
    %v2570 = vpack.c.bf16 %v2566, %v2566
    %v2571 = vpack.c.bf16 %v2567, %v2567
    %v2572 = vpack.c.bf16 %v2568, %v2568
    %v2573 = vpack.c.bf16 %v2569, %v2569
    %v2574 = vld [vmem:[#allocation5] sm:$0xff]
    %v2575 = vld [vmem:[#allocation5 + $0x8] sm:$0xff]
    %v2576 = vld [vmem:[#allocation5 + $0x10] sm:$0xff]
    %v2577 = vld [vmem:[#allocation5 + $0x18] sm:$0xf]
    %v2578 = vld [vmem:[#allocation5 + $0x1c] sm:$0xff]
    %v2579 = vld [vmem:[#allocation5 + $0x24] sm:$0xff]
    %v2580 = vld [vmem:[#allocation5 + $0x2c] sm:$0xff]
    %v2581 = vld [vmem:[#allocation5 + $0x34] sm:$0xf]
    %v2582 = vld [vmem:[#allocation5 + $0x38] sm:$0xff]
    %v2583 = vld [vmem:[#allocation5 + $0x40] sm:$0xff]
    %v2584 = vld [vmem:[#allocation5 + $0x48] sm:$0xff]
    %v2585 = vld [vmem:[#allocation5 + $0x50] sm:$0xf]
    %v2586 = vld [vmem:[#allocation5 + $0x54] sm:$0xff]
    %v2587 = vld [vmem:[#allocation5 + $0x5c] sm:$0xff]
    %v2588 = vld [vmem:[#allocation5 + $0x64] sm:$0xff]
    %v2589 = vld [vmem:[#allocation5 + $0x6c] sm:$0xf]
    %v2590 = vld [vmem:[#allocation5 + $0x70] sm:$0xff]
    %v2591 = vld [vmem:[#allocation5 + $0x78] sm:$0xff]
    %v2592 = vld [vmem:[#allocation5 + $0x80] sm:$0xff]
    %v2593 = vld [vmem:[#allocation5 + $0x88] sm:$0xf]
    %v2594 = vld [vmem:[#allocation5 + $0x8c] sm:$0xff]
    %v2595 = vld [vmem:[#allocation5 + $0x94] sm:$0xff]
    %v2596 = vld [vmem:[#allocation5 + $0x9c] sm:$0xff]
    %v2597 = vld [vmem:[#allocation5 + $0xa4] sm:$0xf]
    %v2598 = vld [vmem:[#allocation5 + $0xa8] sm:$0xff]
    %v2599 = vld [vmem:[#allocation5 + $0xb0] sm:$0xff]
    %v2600 = vld [vmem:[#allocation5 + $0xb8] sm:$0xff]
    %v2601 = vld [vmem:[#allocation5 + $0xc0] sm:$0xf]
    %v2602 = vld [vmem:[#allocation5 + $0xc4] sm:$0xff]
    %v2603 = vld [vmem:[#allocation5 + $0xcc] sm:$0xff]
    %v2604 = vld [vmem:[#allocation5 + $0xd4] sm:$0xff]
    %v2605 = vld [vmem:[#allocation5 + $0xdc] sm:$0xf]
    %v2606 = vld [vmem:[#allocation5 + $0xe0] sm:$0xff]
    %v2607 = vld [vmem:[#allocation5 + $0xe8] sm:$0xff]
    %v2608 = vld [vmem:[#allocation5 + $0xf0] sm:$0xff]
    %v2609 = vld [vmem:[#allocation5 + $0xf8] sm:$0xf]
    %v2610 = vld [vmem:[#allocation5 + $0xfc] sm:$0xff]
    %v2611 = vld [vmem:[#allocation5 + $0x104] sm:$0xff]
    %v2612 = vld [vmem:[#allocation5 + $0x10c] sm:$0xff]
    %v2613 = vld [vmem:[#allocation5 + $0x114] sm:$0xf]
    %v2614 = vld [vmem:[#allocation5 + $0x118] sm:$0xff]
    %v2615 = vld [vmem:[#allocation5 + $0x120] sm:$0xff]
    %v2616 = vld [vmem:[#allocation5 + $0x128] sm:$0xff]
    %v2617 = vld [vmem:[#allocation5 + $0x130] sm:$0xf]
    %v2618 = vld [vmem:[#allocation5 + $0x134] sm:$0xff]
    %v2619 = vld [vmem:[#allocation5 + $0x13c] sm:$0xff]
    %v2620 = vld [vmem:[#allocation5 + $0x144] sm:$0xff]
    %v2621 = vld [vmem:[#allocation5 + $0x14c] sm:$0xf]
    %v2622 = vld [vmem:[#allocation5 + $0x150] sm:$0xff]
    %v2623 = vld [vmem:[#allocation5 + $0x158] sm:$0xff]
    %v2624 = vld [vmem:[#allocation5 + $0x160] sm:$0xff]
    %v2625 = vld [vmem:[#allocation5 + $0x168] sm:$0xf]
    %v2626 = vld [vmem:[#allocation5 + $0x16c] sm:$0xff]
    %v2627 = vld [vmem:[#allocation5 + $0x174] sm:$0xff]
    %v2628 = vld [vmem:[#allocation5 + $0x17c] sm:$0xff]
    %v2629 = vld [vmem:[#allocation5 + $0x184] sm:$0xf]
    %v2630 = vld [vmem:[#allocation5 + $0x188] sm:$0xff]
    %v2631 = vld [vmem:[#allocation5 + $0x190] sm:$0xff]
    %v2632 = vld [vmem:[#allocation5 + $0x198] sm:$0xff]
    %v2633 = vld [vmem:[#allocation5 + $0x1a0] sm:$0xf]
    %v2634 = vld [vmem:[#allocation5 + $0x1a4] sm:$0xff]
    %v2635 = vld [vmem:[#allocation5 + $0x1ac] sm:$0xff]
    %v2636 = vld [vmem:[#allocation5 + $0x1b4] sm:$0xff]
    %v2637 = vld [vmem:[#allocation5 + $0x1bc] sm:$0xf]
    %v2638 = vld [vmem:[#allocation5 + $0x1c0] sm:$0xff]
    %v2639 = vld [vmem:[#allocation5 + $0x1c8] sm:$0xff]
    %v2640 = vld [vmem:[#allocation5 + $0x1d0] sm:$0xff]
    %v2641 = vld [vmem:[#allocation5 + $0x1d8] sm:$0xf]
    %v2642 = vld [vmem:[#allocation5 + $0x1dc] sm:$0xff]
    %v2643 = vld [vmem:[#allocation5 + $0x1e4] sm:$0xff]
    %v2644 = vld [vmem:[#allocation5 + $0x1ec] sm:$0xff]
    %v2645 = vld [vmem:[#allocation5 + $0x1f4] sm:$0xf]
    %v2646 = vld [vmem:[#allocation5 + $0x1f8] sm:$0xff]
    %v2647 = vld [vmem:[#allocation5 + $0x200] sm:$0xff]
    %v2648 = vld [vmem:[#allocation5 + $0x208] sm:$0xff]
    %v2649 = vld [vmem:[#allocation5 + $0x210] sm:$0xf]
    %v2650 = vld [vmem:[#allocation5 + $0x214] sm:$0xff]
    %v2651 = vld [vmem:[#allocation5 + $0x21c] sm:$0xff]
    %v2652 = vld [vmem:[#allocation5 + $0x224] sm:$0xff]
    %v2653 = vld [vmem:[#allocation5 + $0x22c] sm:$0xf]
    %v2654 = vld [vmem:[#allocation5 + $0x230] sm:$0xff]
    %v2655 = vld [vmem:[#allocation5 + $0x238] sm:$0xff]
    %v2656 = vld [vmem:[#allocation5 + $0x240] sm:$0xff]
    %v2657 = vld [vmem:[#allocation5 + $0x248] sm:$0xf]
    %v2658 = vld [vmem:[#allocation5 + $0x24c] sm:$0xff]
    %v2659 = vld [vmem:[#allocation5 + $0x254] sm:$0xff]
    %v2660 = vld [vmem:[#allocation5 + $0x25c] sm:$0xff]
    %v2661 = vld [vmem:[#allocation5 + $0x264] sm:$0xf]
    %v2662 = vld [vmem:[#allocation5 + $0x268] sm:$0xff]
    %v2663 = vld [vmem:[#allocation5 + $0x270] sm:$0xff]
    %v2664 = vld [vmem:[#allocation5 + $0x278] sm:$0xff]
    %v2665 = vld [vmem:[#allocation5 + $0x280] sm:$0xf]
    %v2666 = vld [vmem:[#allocation5 + $0x284] sm:$0xff]
    %v2667 = vld [vmem:[#allocation5 + $0x28c] sm:$0xff]
    %v2668 = vld [vmem:[#allocation5 + $0x294] sm:$0xff]
    %v2669 = vld [vmem:[#allocation5 + $0x29c] sm:$0xf]
    %v2670 = vld [vmem:[#allocation5 + $0x2a0] sm:$0xff]
    %v2671 = vld [vmem:[#allocation5 + $0x2a8] sm:$0xff]
    %v2672 = vld [vmem:[#allocation5 + $0x2b0] sm:$0xff]
    %v2673 = vld [vmem:[#allocation5 + $0x2b8] sm:$0xf]
    %v2674 = vld [vmem:[#allocation5 + $0x2bc] sm:$0xff]
    %v2675 = vld [vmem:[#allocation5 + $0x2c4] sm:$0xff]
    %v2676 = vld [vmem:[#allocation5 + $0x2cc] sm:$0xff]
    %v2677 = vld [vmem:[#allocation5 + $0x2d4] sm:$0xf]
    %v2678 = vld [vmem:[#allocation5 + $0x2d8] sm:$0xff]
    %v2679 = vld [vmem:[#allocation5 + $0x2e0] sm:$0xff]
    %v2680 = vld [vmem:[#allocation5 + $0x2e8] sm:$0xff]
    %v2681 = vld [vmem:[#allocation5 + $0x2f0] sm:$0xf]
    %v2682 = vld [vmem:[#allocation5 + $0x2f4] sm:$0xff]
    %v2683 = vld [vmem:[#allocation5 + $0x2fc] sm:$0xff]
    %v2684 = vld [vmem:[#allocation5 + $0x304] sm:$0xff]
    %v2685 = vld [vmem:[#allocation5 + $0x30c] sm:$0xf]
    %v2686 = vld [vmem:[#allocation5 + $0x310] sm:$0xff]
    %v2687 = vld [vmem:[#allocation5 + $0x318] sm:$0xff]
    %v2688 = vld [vmem:[#allocation5 + $0x320] sm:$0xff]
    %v2689 = vld [vmem:[#allocation5 + $0x328] sm:$0xf]
    %v2690 = vld [vmem:[#allocation5 + $0x32c] sm:$0xff]
    %v2691 = vld [vmem:[#allocation5 + $0x334] sm:$0xff]
    %v2692 = vld [vmem:[#allocation5 + $0x33c] sm:$0xff]
    %v2693 = vld [vmem:[#allocation5 + $0x344] sm:$0xf]
    %v2694 = vld [vmem:[#allocation5 + $0x348] sm:$0xff]
    %v2695 = vld [vmem:[#allocation5 + $0x350] sm:$0xff]
    %v2696 = vld [vmem:[#allocation5 + $0x358] sm:$0xff]
    %v2697 = vld [vmem:[#allocation5 + $0x360] sm:$0xf]
    %v2698 = vld [vmem:[#allocation5 + $0x364] sm:$0xff]
    %v2699 = vld [vmem:[#allocation5 + $0x36c] sm:$0xff]
    %v2700 = vld [vmem:[#allocation5 + $0x374] sm:$0xff]
    %v2701 = vld [vmem:[#allocation5 + $0x37c] sm:$0xf]
    %v2702 = vld [vmem:[#allocation5 + $0x380] sm:$0xff]
    %v2703 = vld [vmem:[#allocation5 + $0x388] sm:$0xff]
    %v2704 = vld [vmem:[#allocation5 + $0x390] sm:$0xff]
    %v2705 = vld [vmem:[#allocation5 + $0x398] sm:$0xf]
    %v2706 = vld [vmem:[#allocation5 + $0x39c] sm:$0xff]
    %v2707 = vld [vmem:[#allocation5 + $0x3a4] sm:$0xff]
    %v2708 = vld [vmem:[#allocation5 + $0x3ac] sm:$0xff]
    %v2709 = vld [vmem:[#allocation5 + $0x3b4] sm:$0xf]
    %v2710 = vld [vmem:[#allocation5 + $0x3b8] sm:$0xff]
    %v2711 = vld [vmem:[#allocation5 + $0x3c0] sm:$0xff]
    %v2712 = vld [vmem:[#allocation5 + $0x3c8] sm:$0xff]
    %v2713 = vld [vmem:[#allocation5 + $0x3d0] sm:$0xf]
    %v2714 = vld [vmem:[#allocation5 + $0x3d4] sm:$0xff]
    %v2715 = vld [vmem:[#allocation5 + $0x3dc] sm:$0xff]
    %v2716 = vld [vmem:[#allocation5 + $0x3e4] sm:$0xff]
    %v2717 = vld [vmem:[#allocation5 + $0x3ec] sm:$0xf]
    %v2718 = vld [vmem:[#allocation5 + $0x3f0] sm:$0xff]
    %v2719 = vld [vmem:[#allocation5 + $0x3f8] sm:$0xff]
    %v2720 = vld [vmem:[#allocation5 + $0x400] sm:$0xff]
    %v2721 = vld [vmem:[#allocation5 + $0x408] sm:$0xf]
    %v2722 = vld [vmem:[#allocation5 + $0x40c] sm:$0xff]
    %v2723 = vld [vmem:[#allocation5 + $0x414] sm:$0xff]
    %v2724 = vld [vmem:[#allocation5 + $0x41c] sm:$0xff]
    %v2725 = vld [vmem:[#allocation5 + $0x424] sm:$0xf]
    %v2726 = vld [vmem:[#allocation5 + $0x428] sm:$0xff]
    %v2727 = vld [vmem:[#allocation5 + $0x430] sm:$0xff]
    %v2728 = vld [vmem:[#allocation5 + $0x438] sm:$0xff]
    %v2729 = vld [vmem:[#allocation5 + $0x440] sm:$0xf]
    %v2730 = vld [vmem:[#allocation5 + $0x444] sm:$0xff]
    %v2731 = vld [vmem:[#allocation5 + $0x44c] sm:$0xff]
    %v2732 = vld [vmem:[#allocation5 + $0x454] sm:$0xff]
    %v2733 = vld [vmem:[#allocation5 + $0x45c] sm:$0xf]
    %v2734 = vld [vmem:[#allocation5 + $0x460] sm:$0xff]
    %v2735 = vld [vmem:[#allocation5 + $0x468] sm:$0xff]
    %v2736 = vld [vmem:[#allocation5 + $0x470] sm:$0xff]
    %v2737 = vld [vmem:[#allocation5 + $0x478] sm:$0xf]
    %v2738 = vld [vmem:[#allocation5 + $0x47c] sm:$0xff]
    %v2739 = vld [vmem:[#allocation5 + $0x484] sm:$0xff]
    %v2740 = vld [vmem:[#allocation5 + $0x48c] sm:$0xff]
    %v2741 = vld [vmem:[#allocation5 + $0x494] sm:$0xf]
    %v2742 = vld [vmem:[#allocation5 + $0x498] sm:$0xff]
    %v2743 = vld [vmem:[#allocation5 + $0x4a0] sm:$0xff]
    %v2744 = vld [vmem:[#allocation5 + $0x4a8] sm:$0xff]
    %v2745 = vld [vmem:[#allocation5 + $0x4b0] sm:$0xf]
    %v2746 = vld [vmem:[#allocation5 + $0x4b4] sm:$0xff]
    %v2747 = vld [vmem:[#allocation5 + $0x4bc] sm:$0xff]
    %v2748 = vld [vmem:[#allocation5 + $0x4c4] sm:$0xff]
    %v2749 = vld [vmem:[#allocation5 + $0x4cc] sm:$0xf]
    %v2750 = vld [vmem:[#allocation5 + $0x4d0] sm:$0xff]
    %v2751 = vld [vmem:[#allocation5 + $0x4d8] sm:$0xff]
    %v2752 = vld [vmem:[#allocation5 + $0x4e0] sm:$0xff]
    %v2753 = vld [vmem:[#allocation5 + $0x4e8] sm:$0xf]
    %v2754 = vld [vmem:[#allocation5 + $0x4ec] sm:$0xff]
    %v2755 = vld [vmem:[#allocation5 + $0x4f4] sm:$0xff]
    %v2756 = vld [vmem:[#allocation5 + $0x4fc] sm:$0xff]
    %v2757 = vld [vmem:[#allocation5 + $0x504] sm:$0xf]
    %v2758 = vld [vmem:[#allocation5 + $0x508] sm:$0xff]
    %v2759 = vld [vmem:[#allocation5 + $0x510] sm:$0xff]
    %v2760 = vld [vmem:[#allocation5 + $0x518] sm:$0xff]
    %v2761 = vld [vmem:[#allocation5 + $0x520] sm:$0xf]
    %v2762 = vld [vmem:[#allocation5 + $0x524] sm:$0xff]
    %v2763 = vld [vmem:[#allocation5 + $0x52c] sm:$0xff]
    %v2764 = vld [vmem:[#allocation5 + $0x534] sm:$0xff]
    %v2765 = vld [vmem:[#allocation5 + $0x53c] sm:$0xf]
    %v2766 = vld [vmem:[#allocation5 + $0x540] sm:$0xff]
    %v2767 = vld [vmem:[#allocation5 + $0x548] sm:$0xff]
    %v2768 = vld [vmem:[#allocation5 + $0x550] sm:$0xff]
    %v2769 = vld [vmem:[#allocation5 + $0x558] sm:$0xf]
    %v2770 = vld [vmem:[#allocation5 + $0x55c] sm:$0xff]
    %v2771 = vld [vmem:[#allocation5 + $0x564] sm:$0xff]
    %v2772 = vld [vmem:[#allocation5 + $0x56c] sm:$0xff]
    %v2773 = vld [vmem:[#allocation5 + $0x574] sm:$0xf]
    %v2774 = vld [vmem:[#allocation5 + $0x578] sm:$0xff]
    %v2775 = vld [vmem:[#allocation5 + $0x580] sm:$0xff]
    %v2776 = vld [vmem:[#allocation5 + $0x588] sm:$0xff]
    %v2777 = vld [vmem:[#allocation5 + $0x590] sm:$0xf]
    %v2778 = vld [vmem:[#allocation5 + $0x594] sm:$0xff]
    %v2779 = vld [vmem:[#allocation5 + $0x59c] sm:$0xff]
    %v2780 = vld [vmem:[#allocation5 + $0x5a4] sm:$0xff]
    %v2781 = vld [vmem:[#allocation5 + $0x5ac] sm:$0xf]
    %v2782 = vld [vmem:[#allocation5 + $0x5b0] sm:$0xff]
    %v2783 = vld [vmem:[#allocation5 + $0x5b8] sm:$0xff]
    %v2784 = vld [vmem:[#allocation5 + $0x5c0] sm:$0xff]
    %v2785 = vld [vmem:[#allocation5 + $0x5c8] sm:$0xf]
    %v2786 = vld [vmem:[#allocation5 + $0x5cc] sm:$0xff]
    %v2787 = vld [vmem:[#allocation5 + $0x5d4] sm:$0xff]
    %v2788 = vld [vmem:[#allocation5 + $0x5dc] sm:$0xff]
    %v2789 = vld [vmem:[#allocation5 + $0x5e4] sm:$0xf]
    %v2790 = vld [vmem:[#allocation5 + $0x5e8] sm:$0xff]
    %v2791 = vld [vmem:[#allocation5 + $0x5f0] sm:$0xff]
    %v2792 = vld [vmem:[#allocation5 + $0x5f8] sm:$0xff]
    %v2793 = vld [vmem:[#allocation5 + $0x600] sm:$0xf]
    %v2794 = vld [vmem:[#allocation5 + $0x604] sm:$0xff]
    %v2795 = vld [vmem:[#allocation5 + $0x60c] sm:$0xff]
    %v2796 = vld [vmem:[#allocation5 + $0x614] sm:$0xff]
    %v2797 = vld [vmem:[#allocation5 + $0x61c] sm:$0xf]
    %v2798 = vld [vmem:[#allocation5 + $0x620] sm:$0xff]
    %v2799 = vld [vmem:[#allocation5 + $0x628] sm:$0xff]
    %v2800 = vld [vmem:[#allocation5 + $0x630] sm:$0xff]
    %v2801 = vld [vmem:[#allocation5 + $0x638] sm:$0xf]
    %v2802 = vld [vmem:[#allocation5 + $0x63c] sm:$0xff]
    %v2803 = vld [vmem:[#allocation5 + $0x644] sm:$0xff]
    %v2804 = vld [vmem:[#allocation5 + $0x64c] sm:$0xff]
    %v2805 = vld [vmem:[#allocation5 + $0x654] sm:$0xf]
    %v2806 = vld [vmem:[#allocation5 + $0x658] sm:$0xff]
    %v2807 = vld [vmem:[#allocation5 + $0x660] sm:$0xff]
    %v2808 = vld [vmem:[#allocation5 + $0x668] sm:$0xff]
    %v2809 = vld [vmem:[#allocation5 + $0x670] sm:$0xf]
    %v2810 = vld [vmem:[#allocation5 + $0x674] sm:$0xff]
    %v2811 = vld [vmem:[#allocation5 + $0x67c] sm:$0xff]
    %v2812 = vld [vmem:[#allocation5 + $0x684] sm:$0xff]
    %v2813 = vld [vmem:[#allocation5 + $0x68c] sm:$0xf]
    %v2814 = vld [vmem:[#allocation5 + $0x690] sm:$0xff]
    %v2815 = vld [vmem:[#allocation5 + $0x698] sm:$0xff]
    %v2816 = vld [vmem:[#allocation5 + $0x6a0] sm:$0xff]
    %v2817 = vld [vmem:[#allocation5 + $0x6a8] sm:$0xf]
    %v2818 = vld [vmem:[#allocation5 + $0x6ac] sm:$0xff]
    %v2819 = vld [vmem:[#allocation5 + $0x6b4] sm:$0xff]
    %v2820 = vld [vmem:[#allocation5 + $0x6bc] sm:$0xff]
    %v2821 = vld [vmem:[#allocation5 + $0x6c4] sm:$0xf]
    %v2822 = vld [vmem:[#allocation5 + $0x6c8] sm:$0xff]
    %v2823 = vld [vmem:[#allocation5 + $0x6d0] sm:$0xff]
    %v2824 = vld [vmem:[#allocation5 + $0x6d8] sm:$0xff]
    %v2825 = vld [vmem:[#allocation5 + $0x6e0] sm:$0xf]
    %v2826 = vld [vmem:[#allocation5 + $0x6e4] sm:$0xff]
    %v2827 = vld [vmem:[#allocation5 + $0x6ec] sm:$0xff]
    %v2828 = vld [vmem:[#allocation5 + $0x6f4] sm:$0xff]
    %v2829 = vld [vmem:[#allocation5 + $0x6fc] sm:$0xf]
    %v2830 = vld [vmem:[%s9] sm:$0xff]
    %v2832 = vlaneseq
    %v2833 = vshrl.u32 %v2832, 7
    %v2834 = vsub.s32 0, %v2833
    %v2835 = vrot.slane %v2830, %v2834
    %v2836 = vlaneseq
    %v2837 = vshrl.u32 %v2836, 7
    %v2838 = vsub.s32 1, %v2837
    %v2839 = vrot.slane %v2830, %v2838
    %v2840 = vlaneseq
    %v2841 = vshrl.u32 %v2840, 7
    %v2842 = vsub.s32 2, %v2841
    %v2843 = vrot.slane %v2830, %v2842
    %v2844 = vlaneseq
    %v2845 = vshrl.u32 %v2844, 7
    %v2846 = vsub.s32 3, %v2845
    %v2847 = vrot.slane %v2830, %v2846
    %v2848 = vlaneseq
    %v2849 = vshrl.u32 %v2848, 7
    %v2850 = vsub.s32 4, %v2849
    %v2851 = vrot.slane %v2830, %v2850
    %v2852 = vlaneseq
    %v2853 = vshrl.u32 %v2852, 7
    %v2854 = vsub.s32 5, %v2853
    %v2855 = vrot.slane %v2830, %v2854
    %v2856 = vlaneseq
    %v2857 = vshrl.u32 %v2856, 7
    %v2858 = vsub.s32 6, %v2857
    %v2859 = vrot.slane %v2830, %v2858
    %v3123 = vunpack.c.l.b16 %v2574
    %v3124 = vunpack.c.h.b16 %v2574
    %v3125 = vunpack.c.l.b16 %v2575
    %v3126 = vunpack.c.h.b16 %v2575
    %v3127 = vunpack.c.l.b16 %v2576
    %v3128 = vunpack.c.h.b16 %v2576
    %v3129 = vunpack.c.l.b16 %v2577
    %v3130 = vunpack.c.l.b16 %v2578
    %v3131 = vunpack.c.h.b16 %v2578
    %v3132 = vunpack.c.l.b16 %v2579
    %v3133 = vunpack.c.h.b16 %v2579
    %v3134 = vunpack.c.l.b16 %v2580
    %v3135 = vunpack.c.h.b16 %v2580
    %v3136 = vunpack.c.l.b16 %v2581
    %v3137 = vunpack.c.l.b16 %v2582
    %v3138 = vunpack.c.h.b16 %v2582
    %v3139 = vunpack.c.l.b16 %v2583
    %v3140 = vunpack.c.h.b16 %v2583
    %v3141 = vunpack.c.l.b16 %v2584
    %v3142 = vunpack.c.h.b16 %v2584
    %v3143 = vunpack.c.l.b16 %v2585
    %v3144 = vunpack.c.l.b16 %v2586
    %v3145 = vunpack.c.h.b16 %v2586
    %v3146 = vunpack.c.l.b16 %v2587
    %v3147 = vunpack.c.h.b16 %v2587
    %v3148 = vunpack.c.l.b16 %v2588
    %v3149 = vunpack.c.h.b16 %v2588
    %v3150 = vunpack.c.l.b16 %v2589
    %v3151 = vunpack.c.l.b16 %v2590
    %v3152 = vunpack.c.h.b16 %v2590
    %v3153 = vunpack.c.l.b16 %v2591
    %v3154 = vunpack.c.h.b16 %v2591
    %v3155 = vunpack.c.l.b16 %v2592
    %v3156 = vunpack.c.h.b16 %v2592
    %v3157 = vunpack.c.l.b16 %v2593
    %v3158 = vunpack.c.l.b16 %v2594
    %v3159 = vunpack.c.h.b16 %v2594
    %v3160 = vunpack.c.l.b16 %v2595
    %v3161 = vunpack.c.h.b16 %v2595
    %v3162 = vunpack.c.l.b16 %v2596
    %v3163 = vunpack.c.h.b16 %v2596
    %v3164 = vunpack.c.l.b16 %v2597
    %v3165 = vunpack.c.l.b16 %v2598
    %v3166 = vunpack.c.h.b16 %v2598
    %v3167 = vunpack.c.l.b16 %v2599
    %v3168 = vunpack.c.h.b16 %v2599
    %v3169 = vunpack.c.l.b16 %v2600
    %v3170 = vunpack.c.h.b16 %v2600
    %v3171 = vunpack.c.l.b16 %v2601
    %v3172 = vunpack.c.l.b16 %v2602
    %v3173 = vunpack.c.h.b16 %v2602
    %v3174 = vunpack.c.l.b16 %v2603
    %v3175 = vunpack.c.h.b16 %v2603
    %v3176 = vunpack.c.l.b16 %v2604
    %v3177 = vunpack.c.h.b16 %v2604
    %v3178 = vunpack.c.l.b16 %v2605
    %v3179 = vunpack.c.l.b16 %v2606
    %v3180 = vunpack.c.h.b16 %v2606
    %v3181 = vunpack.c.l.b16 %v2607
    %v3182 = vunpack.c.h.b16 %v2607
    %v3183 = vunpack.c.l.b16 %v2608
    %v3184 = vunpack.c.h.b16 %v2608
    %v3185 = vunpack.c.l.b16 %v2609
    %v3186 = vunpack.c.l.b16 %v2610
    %v3187 = vunpack.c.h.b16 %v2610
    %v3188 = vunpack.c.l.b16 %v2611
    %v3189 = vunpack.c.h.b16 %v2611
    %v3190 = vunpack.c.l.b16 %v2612
    %v3191 = vunpack.c.h.b16 %v2612
    %v3192 = vunpack.c.l.b16 %v2613
    %v3193 = vunpack.c.l.b16 %v2614
    %v3194 = vunpack.c.h.b16 %v2614
    %v3195 = vunpack.c.l.b16 %v2615
    %v3196 = vunpack.c.h.b16 %v2615
    %v3197 = vunpack.c.l.b16 %v2616
    %v3198 = vunpack.c.h.b16 %v2616
    %v3199 = vunpack.c.l.b16 %v2617
    %v3200 = vunpack.c.l.b16 %v2618
    %v3201 = vunpack.c.h.b16 %v2618
    %v3202 = vunpack.c.l.b16 %v2619
    %v3203 = vunpack.c.h.b16 %v2619
    %v3204 = vunpack.c.l.b16 %v2620
    %v3205 = vunpack.c.h.b16 %v2620
    %v3206 = vunpack.c.l.b16 %v2621
    %v3207 = vunpack.c.l.b16 %v2622
    %v3208 = vunpack.c.h.b16 %v2622
    %v3209 = vunpack.c.l.b16 %v2623
    %v3210 = vunpack.c.h.b16 %v2623
    %v3211 = vunpack.c.l.b16 %v2624
    %v3212 = vunpack.c.h.b16 %v2624
    %v3213 = vunpack.c.l.b16 %v2625
    %v3214 = vunpack.c.l.b16 %v2626
    %v3215 = vunpack.c.h.b16 %v2626
    %v3216 = vunpack.c.l.b16 %v2627
    %v3217 = vunpack.c.h.b16 %v2627
    %v3218 = vunpack.c.l.b16 %v2628
    %v3219 = vunpack.c.h.b16 %v2628
    %v3220 = vunpack.c.l.b16 %v2629
    %v3221 = vunpack.c.l.b16 %v2630
    %v3222 = vunpack.c.h.b16 %v2630
    %v3223 = vunpack.c.l.b16 %v2631
    %v3224 = vunpack.c.h.b16 %v2631
    %v3225 = vunpack.c.l.b16 %v2632
    %v3226 = vunpack.c.h.b16 %v2632
    %v3227 = vunpack.c.l.b16 %v2633
    %v3228 = vunpack.c.l.b16 %v2634
    %v3229 = vunpack.c.h.b16 %v2634
    %v3230 = vunpack.c.l.b16 %v2635
    %v3231 = vunpack.c.h.b16 %v2635
    %v3232 = vunpack.c.l.b16 %v2636
    %v3233 = vunpack.c.h.b16 %v2636
    %v3234 = vunpack.c.l.b16 %v2637
    %v3235 = vunpack.c.l.b16 %v2638
    %v3236 = vunpack.c.h.b16 %v2638
    %v3237 = vunpack.c.l.b16 %v2639
    %v3238 = vunpack.c.h.b16 %v2639
    %v3239 = vunpack.c.l.b16 %v2640
    %v3240 = vunpack.c.h.b16 %v2640
    %v3241 = vunpack.c.l.b16 %v2641
    %v3242 = vunpack.c.l.b16 %v2642
    %v3243 = vunpack.c.h.b16 %v2642
    %v3244 = vunpack.c.l.b16 %v2643
    %v3245 = vunpack.c.h.b16 %v2643
    %v3246 = vunpack.c.l.b16 %v2644
    %v3247 = vunpack.c.h.b16 %v2644
    %v3248 = vunpack.c.l.b16 %v2645
    %v3249 = vunpack.c.l.b16 %v2646
    %v3250 = vunpack.c.h.b16 %v2646
    %v3251 = vunpack.c.l.b16 %v2647
    %v3252 = vunpack.c.h.b16 %v2647
    %v3253 = vunpack.c.l.b16 %v2648
    %v3254 = vunpack.c.h.b16 %v2648
    %v3255 = vunpack.c.l.b16 %v2649
    %v3256 = vunpack.c.l.b16 %v2650
    %v3257 = vunpack.c.h.b16 %v2650
    %v3258 = vunpack.c.l.b16 %v2651
    %v3259 = vunpack.c.h.b16 %v2651
    %v3260 = vunpack.c.l.b16 %v2652
    %v3261 = vunpack.c.h.b16 %v2652
    %v3262 = vunpack.c.l.b16 %v2653
    %v3263 = vunpack.c.l.b16 %v2654
    %v3264 = vunpack.c.h.b16 %v2654
    %v3265 = vunpack.c.l.b16 %v2655
    %v3266 = vunpack.c.h.b16 %v2655
    %v3267 = vunpack.c.l.b16 %v2656
    %v3268 = vunpack.c.h.b16 %v2656
    %v3269 = vunpack.c.l.b16 %v2657
    %v3270 = vunpack.c.l.b16 %v2658
    %v3271 = vunpack.c.h.b16 %v2658
    %v3272 = vunpack.c.l.b16 %v2659
    %v3273 = vunpack.c.h.b16 %v2659
    %v3274 = vunpack.c.l.b16 %v2660
    %v3275 = vunpack.c.h.b16 %v2660
    %v3276 = vunpack.c.l.b16 %v2661
    %v3277 = vunpack.c.l.b16 %v2662
    %v3278 = vunpack.c.h.b16 %v2662
    %v3279 = vunpack.c.l.b16 %v2663
    %v3280 = vunpack.c.h.b16 %v2663
    %v3281 = vunpack.c.l.b16 %v2664
    %v3282 = vunpack.c.h.b16 %v2664
    %v3283 = vunpack.c.l.b16 %v2665
    %v3284 = vunpack.c.l.b16 %v2666
    %v3285 = vunpack.c.h.b16 %v2666
    %v3286 = vunpack.c.l.b16 %v2667
    %v3287 = vunpack.c.h.b16 %v2667
    %v3288 = vunpack.c.l.b16 %v2668
    %v3289 = vunpack.c.h.b16 %v2668
    %v3290 = vunpack.c.l.b16 %v2669
    %v3291 = vunpack.c.l.b16 %v2670
    %v3292 = vunpack.c.h.b16 %v2670
    %v3293 = vunpack.c.l.b16 %v2671
    %v3294 = vunpack.c.h.b16 %v2671
    %v3295 = vunpack.c.l.b16 %v2672
    %v3296 = vunpack.c.h.b16 %v2672
    %v3297 = vunpack.c.l.b16 %v2673
    %v3298 = vunpack.c.l.b16 %v2674
    %v3299 = vunpack.c.h.b16 %v2674
    %v3300 = vunpack.c.l.b16 %v2675
    %v3301 = vunpack.c.h.b16 %v2675
    %v3302 = vunpack.c.l.b16 %v2676
    %v3303 = vunpack.c.h.b16 %v2676
    %v3304 = vunpack.c.l.b16 %v2677
    %v3305 = vunpack.c.l.b16 %v2678
    %v3306 = vunpack.c.h.b16 %v2678
    %v3307 = vunpack.c.l.b16 %v2679
    %v3308 = vunpack.c.h.b16 %v2679
    %v3309 = vunpack.c.l.b16 %v2680
    %v3310 = vunpack.c.h.b16 %v2680
    %v3311 = vunpack.c.l.b16 %v2681
    %v3312 = vunpack.c.l.b16 %v2682
    %v3313 = vunpack.c.h.b16 %v2682
    %v3314 = vunpack.c.l.b16 %v2683
    %v3315 = vunpack.c.h.b16 %v2683
    %v3316 = vunpack.c.l.b16 %v2684
    %v3317 = vunpack.c.h.b16 %v2684
    %v3318 = vunpack.c.l.b16 %v2685
    %v3319 = vunpack.c.l.b16 %v2686
    %v3320 = vunpack.c.h.b16 %v2686
    %v3321 = vunpack.c.l.b16 %v2687
    %v3322 = vunpack.c.h.b16 %v2687
    %v3323 = vunpack.c.l.b16 %v2688
    %v3324 = vunpack.c.h.b16 %v2688
    %v3325 = vunpack.c.l.b16 %v2689
    %v3326 = vunpack.c.l.b16 %v2690
    %v3327 = vunpack.c.h.b16 %v2690
    %v3328 = vunpack.c.l.b16 %v2691
    %v3329 = vunpack.c.h.b16 %v2691
    %v3330 = vunpack.c.l.b16 %v2692
    %v3331 = vunpack.c.h.b16 %v2692
    %v3332 = vunpack.c.l.b16 %v2693
    %v3333 = vunpack.c.l.b16 %v2694
    %v3334 = vunpack.c.h.b16 %v2694
    %v3335 = vunpack.c.l.b16 %v2695
    %v3336 = vunpack.c.h.b16 %v2695
    %v3337 = vunpack.c.l.b16 %v2696
    %v3338 = vunpack.c.h.b16 %v2696
    %v3339 = vunpack.c.l.b16 %v2697
    %v3340 = vunpack.c.l.b16 %v2698
    %v3341 = vunpack.c.h.b16 %v2698
    %v3342 = vunpack.c.l.b16 %v2699
    %v3343 = vunpack.c.h.b16 %v2699
    %v3344 = vunpack.c.l.b16 %v2700
    %v3345 = vunpack.c.h.b16 %v2700
    %v3346 = vunpack.c.l.b16 %v2701
    %v3347 = vunpack.c.l.b16 %v2702
    %v3348 = vunpack.c.h.b16 %v2702
    %v3349 = vunpack.c.l.b16 %v2703
    %v3350 = vunpack.c.h.b16 %v2703
    %v3351 = vunpack.c.l.b16 %v2704
    %v3352 = vunpack.c.h.b16 %v2704
    %v3353 = vunpack.c.l.b16 %v2705
    %v3354 = vunpack.c.l.b16 %v2706
    %v3355 = vunpack.c.h.b16 %v2706
    %v3356 = vunpack.c.l.b16 %v2707
    %v3357 = vunpack.c.h.b16 %v2707
    %v3358 = vunpack.c.l.b16 %v2708
    %v3359 = vunpack.c.h.b16 %v2708
    %v3360 = vunpack.c.l.b16 %v2709
    %v3361 = vunpack.c.l.b16 %v2710
    %v3362 = vunpack.c.h.b16 %v2710
    %v3363 = vunpack.c.l.b16 %v2711
    %v3364 = vunpack.c.h.b16 %v2711
    %v3365 = vunpack.c.l.b16 %v2712
    %v3366 = vunpack.c.h.b16 %v2712
    %v3367 = vunpack.c.l.b16 %v2713
    %v3368 = vunpack.c.l.b16 %v2714
    %v3369 = vunpack.c.h.b16 %v2714
    %v3370 = vunpack.c.l.b16 %v2715
    %v3371 = vunpack.c.h.b16 %v2715
    %v3372 = vunpack.c.l.b16 %v2716
    %v3373 = vunpack.c.h.b16 %v2716
    %v3374 = vunpack.c.l.b16 %v2717
    %v3375 = vunpack.c.l.b16 %v2718
    %v3376 = vunpack.c.h.b16 %v2718
    %v3377 = vunpack.c.l.b16 %v2719
    %v3378 = vunpack.c.h.b16 %v2719
    %v3379 = vunpack.c.l.b16 %v2720
    %v3380 = vunpack.c.h.b16 %v2720
    %v3381 = vunpack.c.l.b16 %v2721
    %v3382 = vunpack.c.l.b16 %v2722
    %v3383 = vunpack.c.h.b16 %v2722
    %v3384 = vunpack.c.l.b16 %v2723
    %v3385 = vunpack.c.h.b16 %v2723
    %v3386 = vunpack.c.l.b16 %v2724
    %v3387 = vunpack.c.h.b16 %v2724
    %v3388 = vunpack.c.l.b16 %v2725
    %v3389 = vunpack.c.l.b16 %v2726
    %v3390 = vunpack.c.h.b16 %v2726
    %v3391 = vunpack.c.l.b16 %v2727
    %v3392 = vunpack.c.h.b16 %v2727
    %v3393 = vunpack.c.l.b16 %v2728
    %v3394 = vunpack.c.h.b16 %v2728
    %v3395 = vunpack.c.l.b16 %v2729
    %v3396 = vunpack.c.l.b16 %v2730
    %v3397 = vunpack.c.h.b16 %v2730
    %v3398 = vunpack.c.l.b16 %v2731
    %v3399 = vunpack.c.h.b16 %v2731
    %v3400 = vunpack.c.l.b16 %v2732
    %v3401 = vunpack.c.h.b16 %v2732
    %v3402 = vunpack.c.l.b16 %v2733
    %v3403 = vunpack.c.l.b16 %v2734
    %v3404 = vunpack.c.h.b16 %v2734
    %v3405 = vunpack.c.l.b16 %v2735
    %v3406 = vunpack.c.h.b16 %v2735
    %v3407 = vunpack.c.l.b16 %v2736
    %v3408 = vunpack.c.h.b16 %v2736
    %v3409 = vunpack.c.l.b16 %v2737
    %v3410 = vunpack.c.l.b16 %v2738
    %v3411 = vunpack.c.h.b16 %v2738
    %v3412 = vunpack.c.l.b16 %v2739
    %v3413 = vunpack.c.h.b16 %v2739
    %v3414 = vunpack.c.l.b16 %v2740
    %v3415 = vunpack.c.h.b16 %v2740
    %v3416 = vunpack.c.l.b16 %v2741
    %v3417 = vunpack.c.l.b16 %v2742
    %v3418 = vunpack.c.h.b16 %v2742
    %v3419 = vunpack.c.l.b16 %v2743
    %v3420 = vunpack.c.h.b16 %v2743
    %v3421 = vunpack.c.l.b16 %v2744
    %v3422 = vunpack.c.h.b16 %v2744
    %v3423 = vunpack.c.l.b16 %v2745
    %v3424 = vunpack.c.l.b16 %v2746
    %v3425 = vunpack.c.h.b16 %v2746
    %v3426 = vunpack.c.l.b16 %v2747
    %v3427 = vunpack.c.h.b16 %v2747
    %v3428 = vunpack.c.l.b16 %v2748
    %v3429 = vunpack.c.h.b16 %v2748
    %v3430 = vunpack.c.l.b16 %v2749
    %v3431 = vunpack.c.l.b16 %v2750
    %v3432 = vunpack.c.h.b16 %v2750
    %v3433 = vunpack.c.l.b16 %v2751
    %v3434 = vunpack.c.h.b16 %v2751
    %v3435 = vunpack.c.l.b16 %v2752
    %v3436 = vunpack.c.h.b16 %v2752
    %v3437 = vunpack.c.l.b16 %v2753
    %v3438 = vunpack.c.l.b16 %v2754
    %v3439 = vunpack.c.h.b16 %v2754
    %v3440 = vunpack.c.l.b16 %v2755
    %v3441 = vunpack.c.h.b16 %v2755
    %v3442 = vunpack.c.l.b16 %v2756
    %v3443 = vunpack.c.h.b16 %v2756
    %v3444 = vunpack.c.l.b16 %v2757
    %v3445 = vunpack.c.l.b16 %v2758
    %v3446 = vunpack.c.h.b16 %v2758
    %v3447 = vunpack.c.l.b16 %v2759
    %v3448 = vunpack.c.h.b16 %v2759
    %v3449 = vunpack.c.l.b16 %v2760
    %v3450 = vunpack.c.h.b16 %v2760
    %v3451 = vunpack.c.l.b16 %v2761
    %v3452 = vunpack.c.l.b16 %v2762
    %v3453 = vunpack.c.h.b16 %v2762
    %v3454 = vunpack.c.l.b16 %v2763
    %v3455 = vunpack.c.h.b16 %v2763
    %v3456 = vunpack.c.l.b16 %v2764
    %v3457 = vunpack.c.h.b16 %v2764
    %v3458 = vunpack.c.l.b16 %v2765
    %v3459 = vunpack.c.l.b16 %v2766
    %v3460 = vunpack.c.h.b16 %v2766
    %v3461 = vunpack.c.l.b16 %v2767
    %v3462 = vunpack.c.h.b16 %v2767
    %v3463 = vunpack.c.l.b16 %v2768
    %v3464 = vunpack.c.h.b16 %v2768
    %v3465 = vunpack.c.l.b16 %v2769
    %v3466 = vunpack.c.l.b16 %v2770
    %v3467 = vunpack.c.h.b16 %v2770
    %v3468 = vunpack.c.l.b16 %v2771
    %v3469 = vunpack.c.h.b16 %v2771
    %v3470 = vunpack.c.l.b16 %v2772
    %v3471 = vunpack.c.h.b16 %v2772
    %v3472 = vunpack.c.l.b16 %v2773
    %v3473 = vunpack.c.l.b16 %v2774
    %v3474 = vunpack.c.h.b16 %v2774
    %v3475 = vunpack.c.l.b16 %v2775
    %v3476 = vunpack.c.h.b16 %v2775
    %v3477 = vunpack.c.l.b16 %v2776
    %v3478 = vunpack.c.h.b16 %v2776
    %v3479 = vunpack.c.l.b16 %v2777
    %v3480 = vunpack.c.l.b16 %v2778
    %v3481 = vunpack.c.h.b16 %v2778
    %v3482 = vunpack.c.l.b16 %v2779
    %v3483 = vunpack.c.h.b16 %v2779
    %v3484 = vunpack.c.l.b16 %v2780
    %v3485 = vunpack.c.h.b16 %v2780
    %v3486 = vunpack.c.l.b16 %v2781
    %v3487 = vunpack.c.l.b16 %v2782
    %v3488 = vunpack.c.h.b16 %v2782
    %v3489 = vunpack.c.l.b16 %v2783
    %v3490 = vunpack.c.h.b16 %v2783
    %v3491 = vunpack.c.l.b16 %v2784
    %v3492 = vunpack.c.h.b16 %v2784
    %v3493 = vunpack.c.l.b16 %v2785
    %v3494 = vunpack.c.l.b16 %v2786
    %v3495 = vunpack.c.h.b16 %v2786
    %v3496 = vunpack.c.l.b16 %v2787
    %v3497 = vunpack.c.h.b16 %v2787
    %v3498 = vunpack.c.l.b16 %v2788
    %v3499 = vunpack.c.h.b16 %v2788
    %v3500 = vunpack.c.l.b16 %v2789
    %v3501 = vunpack.c.l.b16 %v2790
    %v3502 = vunpack.c.h.b16 %v2790
    %v3503 = vunpack.c.l.b16 %v2791
    %v3504 = vunpack.c.h.b16 %v2791
    %v3505 = vunpack.c.l.b16 %v2792
    %v3506 = vunpack.c.h.b16 %v2792
    %v3507 = vunpack.c.l.b16 %v2793
    %v3508 = vunpack.c.l.b16 %v2794
    %v3509 = vunpack.c.h.b16 %v2794
    %v3510 = vunpack.c.l.b16 %v2795
    %v3511 = vunpack.c.h.b16 %v2795
    %v3512 = vunpack.c.l.b16 %v2796
    %v3513 = vunpack.c.h.b16 %v2796
    %v3514 = vunpack.c.l.b16 %v2797
    %v3515 = vunpack.c.l.b16 %v2798
    %v3516 = vunpack.c.h.b16 %v2798
    %v3517 = vunpack.c.l.b16 %v2799
    %v3518 = vunpack.c.h.b16 %v2799
    %v3519 = vunpack.c.l.b16 %v2800
    %v3520 = vunpack.c.h.b16 %v2800
    %v3521 = vunpack.c.l.b16 %v2801
    %v3522 = vunpack.c.l.b16 %v2802
    %v3523 = vunpack.c.h.b16 %v2802
    %v3524 = vunpack.c.l.b16 %v2803
    %v3525 = vunpack.c.h.b16 %v2803
    %v3526 = vunpack.c.l.b16 %v2804
    %v3527 = vunpack.c.h.b16 %v2804
    %v3528 = vunpack.c.l.b16 %v2805
    %v3529 = vunpack.c.l.b16 %v2806
    %v3530 = vunpack.c.h.b16 %v2806
    %v3531 = vunpack.c.l.b16 %v2807
    %v3532 = vunpack.c.h.b16 %v2807
    %v3533 = vunpack.c.l.b16 %v2808
    %v3534 = vunpack.c.h.b16 %v2808
    %v3535 = vunpack.c.l.b16 %v2809
    %v3536 = vunpack.c.l.b16 %v2810
    %v3537 = vunpack.c.h.b16 %v2810
    %v3538 = vunpack.c.l.b16 %v2811
    %v3539 = vunpack.c.h.b16 %v2811
    %v3540 = vunpack.c.l.b16 %v2812
    %v3541 = vunpack.c.h.b16 %v2812
    %v3542 = vunpack.c.l.b16 %v2813
    %v3543 = vunpack.c.l.b16 %v2814
    %v3544 = vunpack.c.h.b16 %v2814
    %v3545 = vunpack.c.l.b16 %v2815
    %v3546 = vunpack.c.h.b16 %v2815
    %v3547 = vunpack.c.l.b16 %v2816
    %v3548 = vunpack.c.h.b16 %v2816
    %v3549 = vunpack.c.l.b16 %v2817
    %v3550 = vunpack.c.l.b16 %v2818
    %v3551 = vunpack.c.h.b16 %v2818
    %v3552 = vunpack.c.l.b16 %v2819
    %v3553 = vunpack.c.h.b16 %v2819
    %v3554 = vunpack.c.l.b16 %v2820
    %v3555 = vunpack.c.h.b16 %v2820
    %v3556 = vunpack.c.l.b16 %v2821
    %v3557 = vunpack.c.l.b16 %v2822
    %v3558 = vunpack.c.h.b16 %v2822
    %v3559 = vunpack.c.l.b16 %v2823
    %v3560 = vunpack.c.h.b16 %v2823
    %v3561 = vunpack.c.l.b16 %v2824
    %v3562 = vunpack.c.h.b16 %v2824
    %v3563 = vunpack.c.l.b16 %v2825
    %v3564 = vunpack.c.l.b16 %v2826
    %v3565 = vunpack.c.h.b16 %v2826
    %v3566 = vunpack.c.l.b16 %v2827
    %v3567 = vunpack.c.h.b16 %v2827
    %v3568 = vunpack.c.l.b16 %v2828
    %v3569 = vunpack.c.h.b16 %v2828
    %v3570 = vunpack.c.l.b16 %v2829
    %v3571 = vpack.c.b16 %v3130, %v3123
    %v3572 = vpack.c.b16 %v3131, %v3124
    %v3573 = vpack.c.b16 %v3132, %v3125
    %v3574 = vpack.c.b16 %v3133, %v3126
    %v3575 = vpack.c.b16 %v3134, %v3127
    %v3576 = vpack.c.b16 %v3135, %v3128
    %v3577 = vpack.c.b16 %v3136, %v3129
    %v3578 = vpack.c.b16 %v3144, %v3137
    %v3579 = vpack.c.b16 %v3145, %v3138
    %v3580 = vpack.c.b16 %v3146, %v3139
    %v3581 = vpack.c.b16 %v3147, %v3140
    %v3582 = vpack.c.b16 %v3148, %v3141
    %v3583 = vpack.c.b16 %v3149, %v3142
    %v3584 = vpack.c.b16 %v3150, %v3143
    %v3585 = vpack.c.b16 %v3158, %v3151
    %v3586 = vpack.c.b16 %v3159, %v3152
    %v3587 = vpack.c.b16 %v3160, %v3153
    %v3588 = vpack.c.b16 %v3161, %v3154
    %v3589 = vpack.c.b16 %v3162, %v3155
    %v3590 = vpack.c.b16 %v3163, %v3156
    %v3591 = vpack.c.b16 %v3164, %v3157
    %v3592 = vpack.c.b16 %v3172, %v3165
    %v3593 = vpack.c.b16 %v3173, %v3166
    %v3594 = vpack.c.b16 %v3174, %v3167
    %v3595 = vpack.c.b16 %v3175, %v3168
    %v3596 = vpack.c.b16 %v3176, %v3169
    %v3597 = vpack.c.b16 %v3177, %v3170
    %v3598 = vpack.c.b16 %v3178, %v3171
    %v3599 = vpack.c.b16 %v3186, %v3179
    %v3600 = vpack.c.b16 %v3187, %v3180
    %v3601 = vpack.c.b16 %v3188, %v3181
    %v3602 = vpack.c.b16 %v3189, %v3182
    %v3603 = vpack.c.b16 %v3190, %v3183
    %v3604 = vpack.c.b16 %v3191, %v3184
    %v3605 = vpack.c.b16 %v3192, %v3185
    %v3606 = vpack.c.b16 %v3200, %v3193
    %v3607 = vpack.c.b16 %v3201, %v3194
    %v3608 = vpack.c.b16 %v3202, %v3195
    %v3609 = vpack.c.b16 %v3203, %v3196
    %v3610 = vpack.c.b16 %v3204, %v3197
    %v3611 = vpack.c.b16 %v3205, %v3198
    %v3612 = vpack.c.b16 %v3206, %v3199
    %v3613 = vpack.c.b16 %v3214, %v3207
    %v3614 = vpack.c.b16 %v3215, %v3208
    %v3615 = vpack.c.b16 %v3216, %v3209
    %v3616 = vpack.c.b16 %v3217, %v3210
    %v3617 = vpack.c.b16 %v3218, %v3211
    %v3618 = vpack.c.b16 %v3219, %v3212
    %v3619 = vpack.c.b16 %v3220, %v3213
    %v3620 = vpack.c.b16 %v3228, %v3221
    %v3621 = vpack.c.b16 %v3229, %v3222
    %v3622 = vpack.c.b16 %v3230, %v3223
    %v3623 = vpack.c.b16 %v3231, %v3224
    %v3624 = vpack.c.b16 %v3232, %v3225
    %v3625 = vpack.c.b16 %v3233, %v3226
    %v3626 = vpack.c.b16 %v3234, %v3227
    %v3627 = vpack.c.b16 %v3242, %v3235
    %v3628 = vpack.c.b16 %v3243, %v3236
    %v3629 = vpack.c.b16 %v3244, %v3237
    %v3630 = vpack.c.b16 %v3245, %v3238
    %v3631 = vpack.c.b16 %v3246, %v3239
    %v3632 = vpack.c.b16 %v3247, %v3240
    %v3633 = vpack.c.b16 %v3248, %v3241
    %v3634 = vpack.c.b16 %v3256, %v3249
    %v3635 = vpack.c.b16 %v3257, %v3250
    %v3636 = vpack.c.b16 %v3258, %v3251
    %v3637 = vpack.c.b16 %v3259, %v3252
    %v3638 = vpack.c.b16 %v3260, %v3253
    %v3639 = vpack.c.b16 %v3261, %v3254
    %v3640 = vpack.c.b16 %v3262, %v3255
    %v3641 = vpack.c.b16 %v3270, %v3263
    %v3642 = vpack.c.b16 %v3271, %v3264
    %v3643 = vpack.c.b16 %v3272, %v3265
    %v3644 = vpack.c.b16 %v3273, %v3266
    %v3645 = vpack.c.b16 %v3274, %v3267
    %v3646 = vpack.c.b16 %v3275, %v3268
    %v3647 = vpack.c.b16 %v3276, %v3269
    %v3648 = vpack.c.b16 %v3284, %v3277
    %v3649 = vpack.c.b16 %v3285, %v3278
    %v3650 = vpack.c.b16 %v3286, %v3279
    %v3651 = vpack.c.b16 %v3287, %v3280
    %v3652 = vpack.c.b16 %v3288, %v3281
    %v3653 = vpack.c.b16 %v3289, %v3282
    %v3654 = vpack.c.b16 %v3290, %v3283
    %v3655 = vpack.c.b16 %v3298, %v3291
    %v3656 = vpack.c.b16 %v3299, %v3292
    %v3657 = vpack.c.b16 %v3300, %v3293
    %v3658 = vpack.c.b16 %v3301, %v3294
    %v3659 = vpack.c.b16 %v3302, %v3295
    %v3660 = vpack.c.b16 %v3303, %v3296
    %v3661 = vpack.c.b16 %v3304, %v3297
    %v3662 = vpack.c.b16 %v3312, %v3305
    %v3663 = vpack.c.b16 %v3313, %v3306
    %v3664 = vpack.c.b16 %v3314, %v3307
    %v3665 = vpack.c.b16 %v3315, %v3308
    %v3666 = vpack.c.b16 %v3316, %v3309
    %v3667 = vpack.c.b16 %v3317, %v3310
    %v3668 = vpack.c.b16 %v3318, %v3311
    %v3669 = vpack.c.b16 %v3326, %v3319
    %v3670 = vpack.c.b16 %v3327, %v3320
    %v3671 = vpack.c.b16 %v3328, %v3321
    %v3672 = vpack.c.b16 %v3329, %v3322
    %v3673 = vpack.c.b16 %v3330, %v3323
    %v3674 = vpack.c.b16 %v3331, %v3324
    %v3675 = vpack.c.b16 %v3332, %v3325
    %v3676 = vpack.c.b16 %v3340, %v3333
    %v3677 = vpack.c.b16 %v3341, %v3334
    %v3678 = vpack.c.b16 %v3342, %v3335
    %v3679 = vpack.c.b16 %v3343, %v3336
    %v3680 = vpack.c.b16 %v3344, %v3337
    %v3681 = vpack.c.b16 %v3345, %v3338
    %v3682 = vpack.c.b16 %v3346, %v3339
    %v3683 = vpack.c.b16 %v3354, %v3347
    %v3684 = vpack.c.b16 %v3355, %v3348
    %v3685 = vpack.c.b16 %v3356, %v3349
    %v3686 = vpack.c.b16 %v3357, %v3350
    %v3687 = vpack.c.b16 %v3358, %v3351
    %v3688 = vpack.c.b16 %v3359, %v3352
    %v3689 = vpack.c.b16 %v3360, %v3353
    %v3690 = vpack.c.b16 %v3368, %v3361
    %v3691 = vpack.c.b16 %v3369, %v3362
    %v3692 = vpack.c.b16 %v3370, %v3363
    %v3693 = vpack.c.b16 %v3371, %v3364
    %v3694 = vpack.c.b16 %v3372, %v3365
    %v3695 = vpack.c.b16 %v3373, %v3366
    %v3696 = vpack.c.b16 %v3374, %v3367
    %v3697 = vpack.c.b16 %v3382, %v3375
    %v3698 = vpack.c.b16 %v3383, %v3376
    %v3699 = vpack.c.b16 %v3384, %v3377
    %v3700 = vpack.c.b16 %v3385, %v3378
    %v3701 = vpack.c.b16 %v3386, %v3379
    %v3702 = vpack.c.b16 %v3387, %v3380
    %v3703 = vpack.c.b16 %v3388, %v3381
    %v3704 = vpack.c.b16 %v3396, %v3389
    %v3705 = vpack.c.b16 %v3397, %v3390
    %v3706 = vpack.c.b16 %v3398, %v3391
    %v3707 = vpack.c.b16 %v3399, %v3392
    %v3708 = vpack.c.b16 %v3400, %v3393
    %v3709 = vpack.c.b16 %v3401, %v3394
    %v3710 = vpack.c.b16 %v3402, %v3395
    %v3711 = vpack.c.b16 %v3410, %v3403
    %v3712 = vpack.c.b16 %v3411, %v3404
    %v3713 = vpack.c.b16 %v3412, %v3405
    %v3714 = vpack.c.b16 %v3413, %v3406
    %v3715 = vpack.c.b16 %v3414, %v3407
    %v3716 = vpack.c.b16 %v3415, %v3408
    %v3717 = vpack.c.b16 %v3416, %v3409
    %v3718 = vpack.c.b16 %v3424, %v3417
    %v3719 = vpack.c.b16 %v3425, %v3418
    %v3720 = vpack.c.b16 %v3426, %v3419
    %v3721 = vpack.c.b16 %v3427, %v3420
    %v3722 = vpack.c.b16 %v3428, %v3421
    %v3723 = vpack.c.b16 %v3429, %v3422
    %v3724 = vpack.c.b16 %v3430, %v3423
    %v3725 = vpack.c.b16 %v3438, %v3431
    %v3726 = vpack.c.b16 %v3439, %v3432
    %v3727 = vpack.c.b16 %v3440, %v3433
    %v3728 = vpack.c.b16 %v3441, %v3434
    %v3729 = vpack.c.b16 %v3442, %v3435
    %v3730 = vpack.c.b16 %v3443, %v3436
    %v3731 = vpack.c.b16 %v3444, %v3437
    %v3732 = vpack.c.b16 %v3452, %v3445
    %v3733 = vpack.c.b16 %v3453, %v3446
    %v3734 = vpack.c.b16 %v3454, %v3447
    %v3735 = vpack.c.b16 %v3455, %v3448
    %v3736 = vpack.c.b16 %v3456, %v3449
    %v3737 = vpack.c.b16 %v3457, %v3450
    %v3738 = vpack.c.b16 %v3458, %v3451
    %v3739 = vpack.c.b16 %v3466, %v3459
    %v3740 = vpack.c.b16 %v3467, %v3460
    %v3741 = vpack.c.b16 %v3468, %v3461
    %v3742 = vpack.c.b16 %v3469, %v3462
    %v3743 = vpack.c.b16 %v3470, %v3463
    %v3744 = vpack.c.b16 %v3471, %v3464
    %v3745 = vpack.c.b16 %v3472, %v3465
    %v3746 = vpack.c.b16 %v3480, %v3473
    %v3747 = vpack.c.b16 %v3481, %v3474
    %v3748 = vpack.c.b16 %v3482, %v3475
    %v3749 = vpack.c.b16 %v3483, %v3476
    %v3750 = vpack.c.b16 %v3484, %v3477
    %v3751 = vpack.c.b16 %v3485, %v3478
    %v3752 = vpack.c.b16 %v3486, %v3479
    %v3753 = vpack.c.b16 %v3494, %v3487
    %v3754 = vpack.c.b16 %v3495, %v3488
    %v3755 = vpack.c.b16 %v3496, %v3489
    %v3756 = vpack.c.b16 %v3497, %v3490
    %v3757 = vpack.c.b16 %v3498, %v3491
    %v3758 = vpack.c.b16 %v3499, %v3492
    %v3759 = vpack.c.b16 %v3500, %v3493
    %v3760 = vpack.c.b16 %v3508, %v3501
    %v3761 = vpack.c.b16 %v3509, %v3502
    %v3762 = vpack.c.b16 %v3510, %v3503
    %v3763 = vpack.c.b16 %v3511, %v3504
    %v3764 = vpack.c.b16 %v3512, %v3505
    %v3765 = vpack.c.b16 %v3513, %v3506
    %v3766 = vpack.c.b16 %v3514, %v3507
    %v3767 = vpack.c.b16 %v3522, %v3515
    %v3768 = vpack.c.b16 %v3523, %v3516
    %v3769 = vpack.c.b16 %v3524, %v3517
    %v3770 = vpack.c.b16 %v3525, %v3518
    %v3771 = vpack.c.b16 %v3526, %v3519
    %v3772 = vpack.c.b16 %v3527, %v3520
    %v3773 = vpack.c.b16 %v3528, %v3521
    %v3774 = vpack.c.b16 %v3536, %v3529
    %v3775 = vpack.c.b16 %v3537, %v3530
    %v3776 = vpack.c.b16 %v3538, %v3531
    %v3777 = vpack.c.b16 %v3539, %v3532
    %v3778 = vpack.c.b16 %v3540, %v3533
    %v3779 = vpack.c.b16 %v3541, %v3534
    %v3780 = vpack.c.b16 %v3542, %v3535
    %v3781 = vpack.c.b16 %v3550, %v3543
    %v3782 = vpack.c.b16 %v3551, %v3544
    %v3783 = vpack.c.b16 %v3552, %v3545
    %v3784 = vpack.c.b16 %v3553, %v3546
    %v3785 = vpack.c.b16 %v3554, %v3547
    %v3786 = vpack.c.b16 %v3555, %v3548
    %v3787 = vpack.c.b16 %v3556, %v3549
    %v3788 = vpack.c.b16 %v3564, %v3557
    %v3789 = vpack.c.b16 %v3565, %v3558
    %v3790 = vpack.c.b16 %v3566, %v3559
    %v3791 = vpack.c.b16 %v3567, %v3560
    %v3792 = vpack.c.b16 %v3568, %v3561
    %v3793 = vpack.c.b16 %v3569, %v3562
    %v3794 = vpack.c.b16 %v3570, %v3563
    %4019 = vmatprep.subr.bf16.mxu0 %v3572
    %4020 = vmatpush1.bf16.msra.mxu0 %v3571
    %4021 = vmatprep.subr.bf16.mxu0 %v3579
    %4022 = vmatpush1.bf16.msra.mxu0 %v3578
    %4023 = vmatprep.subr.bf16.mxu0 %v3586
    %4024 = vmatpush1.bf16.msra.mxu0 %v3585
    %4025 = vmatprep.subr.bf16.mxu0 %v3593
    %4026 = vmatpush1.bf16.msra.mxu0 %v3592
    %4027 = vmatprep.subr.bf16.mxu0 %v3600
    %4028 = vmatpush1.bf16.msra.mxu0 %v3599
    %4029 = vmatprep.subr.bf16.mxu0 %v3607
    %4030 = vmatpush1.bf16.msra.mxu0 %v3606
    %4031 = vmatprep.subr.bf16.mxu0 %v3614
    %4032 = vmatpush1.bf16.msra.mxu0 %v3613
    %4033 = vmatprep.subr.bf16.mxu0 %v3621
    %4034 = vmatpush1.bf16.msra.mxu0 %v3620
    %4035 = vmatprep.subr.bf16.mxu0 %v3628
    %4036 = vmatpush1.bf16.msra.mxu0 %v3627
    %4037 = vmatprep.subr.bf16.mxu0 %v3635
    %4038 = vmatpush1.bf16.msra.mxu0 %v3634
    %4039 = vmatprep.subr.bf16.mxu0 %v3642
    %4040 = vmatpush1.bf16.msra.mxu0 %v3641
    %4041 = vmatprep.subr.bf16.mxu0 %v3649
    %4042 = vmatpush1.bf16.msra.mxu0 %v3648
    %4043 = vmatprep.subr.bf16.mxu0 %v3656
    %4044 = vmatpush1.bf16.msra.mxu0 %v3655
    %4045 = vmatprep.subr.bf16.mxu0 %v3663
    %4046 = vmatpush1.bf16.msra.mxu0 %v3662
    %4047 = vmatprep.subr.bf16.mxu0 %v3670
    %4048 = vmatpush1.bf16.msra.mxu0 %v3669
    %4049 = vmatprep.subr.bf16.mxu0 %v3677
    %4050 = vmatpush1.bf16.msra.mxu0 %v3676
    %4051 = vmatprep.mubr.bf16.mxu0 %v2571
    %4052 = vmatmul.mubr.bf16.gmra.mrb[0].mxu0 %v2570
    %v4053 = vpop.f32.mrb[0].mxu0
    %v4054 = vadd.f32 %v2835, %v4053
    %v4055 = vpop.f32.mrb[0].mxu0
    %v4056 = vadd.f32 %v2839, %v4055
    %v4057 = vpop.f32.mrb[0].mxu0
    %v4058 = vpop.f32.mrb[0].mxu0
    %4059 = vdwg.mxu0
    %4060 = vmatprep.subr.bf16.mxu0 %v3684
    %4061 = vmatpush1.bf16.msra.mxu0 %v3683
    %4062 = vmatprep.subr.bf16.mxu0 %v3691
    %4063 = vmatpush1.bf16.msra.mxu0 %v3690
    %4064 = vmatprep.subr.bf16.mxu0 %v3698
    %4065 = vmatpush1.bf16.msra.mxu0 %v3697
    %4066 = vmatprep.subr.bf16.mxu0 %v3705
    %4067 = vmatpush1.bf16.msra.mxu0 %v3704
    %4068 = vmatprep.subr.bf16.mxu0 %v3712
    %4069 = vmatpush1.bf16.msra.mxu0 %v3711
    %4070 = vmatprep.subr.bf16.mxu0 %v3719
    %4071 = vmatpush1.bf16.msra.mxu0 %v3718
    %4072 = vmatprep.subr.bf16.mxu0 %v3726
    %4073 = vmatpush1.bf16.msra.mxu0 %v3725
    %4074 = vmatprep.subr.bf16.mxu0 %v3733
    %4075 = vmatpush1.bf16.msra.mxu0 %v3732
    %4076 = vmatprep.subr.bf16.mxu0 %v3740
    %4077 = vmatpush1.bf16.msra.mxu0 %v3739
    %4078 = vmatprep.subr.bf16.mxu0 %v3747
    %4079 = vmatpush1.bf16.msra.mxu0 %v3746
    %4080 = vmatprep.subr.bf16.mxu0 %v3754
    %4081 = vmatpush1.bf16.msra.mxu0 %v3753
    %4082 = vmatprep.subr.bf16.mxu0 %v3761
    %4083 = vmatpush1.bf16.msra.mxu0 %v3760
    %4084 = vmatprep.subr.bf16.mxu0 %v3768
    %4085 = vmatpush1.bf16.msra.mxu0 %v3767
    %4086 = vmatprep.subr.bf16.mxu0 %v3775
    %4087 = vmatpush1.bf16.msra.mxu0 %v3774
    %4088 = vmatprep.subr.bf16.mxu0 %v3782
    %4089 = vmatpush1.bf16.msra.mxu0 %v3781
    %4090 = vmatprep.subr.bf16.mxu0 %v3789
    %4091 = vmatpush1.bf16.msra.mxu0 %v3788
    %4092 = vmatprep.mubr.bf16.mxu0 %v2573
    %4093 = vmatmul.mubr.bf16.gmra.mrb[0].mxu0 %v2572
    %v4094 = vpop.f32.mrb[0].mxu0
    %v4095 = vadd.f32 %v4054, %v4094
    %v4096 = vpop.f32.mrb[0].mxu0
    %v4097 = vadd.f32 %v4056, %v4096
    %v4098 = vpop.f32.mrb[0].mxu0
    %v4099 = vpop.f32.mrb[0].mxu0
    %4100 = vdwg.mxu0
    %4101 = vmatprep.subr.bf16.mxu0 %v3574
    %4102 = vmatpush1.bf16.msra.mxu0 %v3573
    %4103 = vmatprep.subr.bf16.mxu0 %v3581
    %4104 = vmatpush1.bf16.msra.mxu0 %v3580
    %4105 = vmatprep.subr.bf16.mxu0 %v3588
    %4106 = vmatpush1.bf16.msra.mxu0 %v3587
    %4107 = vmatprep.subr.bf16.mxu0 %v3595
    %4108 = vmatpush1.bf16.msra.mxu0 %v3594
    %4109 = vmatprep.subr.bf16.mxu0 %v3602
    %4110 = vmatpush1.bf16.msra.mxu0 %v3601
    %4111 = vmatprep.subr.bf16.mxu0 %v3609
    %4112 = vmatpush1.bf16.msra.mxu0 %v3608
    %4113 = vmatprep.subr.bf16.mxu0 %v3616
    %4114 = vmatpush1.bf16.msra.mxu0 %v3615
    %4115 = vmatprep.subr.bf16.mxu0 %v3623
    %4116 = vmatpush1.bf16.msra.mxu0 %v3622
    %4117 = vmatprep.subr.bf16.mxu0 %v3630
    %4118 = vmatpush1.bf16.msra.mxu0 %v3629
    %4119 = vmatprep.subr.bf16.mxu0 %v3637
    %4120 = vmatpush1.bf16.msra.mxu0 %v3636
    %4121 = vmatprep.subr.bf16.mxu0 %v3644
    %4122 = vmatpush1.bf16.msra.mxu0 %v3643
    %4123 = vmatprep.subr.bf16.mxu0 %v3651
    %4124 = vmatpush1.bf16.msra.mxu0 %v3650
    %4125 = vmatprep.subr.bf16.mxu0 %v3658
    %4126 = vmatpush1.bf16.msra.mxu0 %v3657
    %4127 = vmatprep.subr.bf16.mxu0 %v3665
    %4128 = vmatpush1.bf16.msra.mxu0 %v3664
    %4129 = vmatprep.subr.bf16.mxu0 %v3672
    %4130 = vmatpush1.bf16.msra.mxu0 %v3671
    %4131 = vmatprep.subr.bf16.mxu0 %v3679
    %4132 = vmatpush1.bf16.msra.mxu0 %v3678
    %4133 = vmatprep.mubr.bf16.mxu0 %v2571
    %4134 = vmatmul.mubr.bf16.gmra.mrb[0].mxu0 %v2570
    %v4135 = vpop.f32.mrb[0].mxu0
    %v4136 = vadd.f32 %v2843, %v4135
    %v4137 = vpop.f32.mrb[0].mxu0
    %v4138 = vadd.f32 %v2847, %v4137
    %v4139 = vpop.f32.mrb[0].mxu0
    %v4140 = vpop.f32.mrb[0].mxu0
    %4141 = vdwg.mxu0
    %4142 = vmatprep.subr.bf16.mxu0 %v3686
    %4143 = vmatpush1.bf16.msra.mxu0 %v3685
    %4144 = vmatprep.subr.bf16.mxu0 %v3693
    %4145 = vmatpush1.bf16.msra.mxu0 %v3692
    %4146 = vmatprep.subr.bf16.mxu0 %v3700
    %4147 = vmatpush1.bf16.msra.mxu0 %v3699
    %4148 = vmatprep.subr.bf16.mxu0 %v3707
    %4149 = vmatpush1.bf16.msra.mxu0 %v3706
    %4150 = vmatprep.subr.bf16.mxu0 %v3714
    %4151 = vmatpush1.bf16.msra.mxu0 %v3713
    %4152 = vmatprep.subr.bf16.mxu0 %v3721
    %4153 = vmatpush1.bf16.msra.mxu0 %v3720
    %4154 = vmatprep.subr.bf16.mxu0 %v3728
    %4155 = vmatpush1.bf16.msra.mxu0 %v3727
    %4156 = vmatprep.subr.bf16.mxu0 %v3735
    %4157 = vmatpush1.bf16.msra.mxu0 %v3734
    %4158 = vmatprep.subr.bf16.mxu0 %v3742
    %4159 = vmatpush1.bf16.msra.mxu0 %v3741
    %4160 = vmatprep.subr.bf16.mxu0 %v3749
    %4161 = vmatpush1.bf16.msra.mxu0 %v3748
    %4162 = vmatprep.subr.bf16.mxu0 %v3756
    %4163 = vmatpush1.bf16.msra.mxu0 %v3755
    %4164 = vmatprep.subr.bf16.mxu0 %v3763
    %4165 = vmatpush1.bf16.msra.mxu0 %v3762
    %4166 = vmatprep.subr.bf16.mxu0 %v3770
    %4167 = vmatpush1.bf16.msra.mxu0 %v3769
    %4168 = vmatprep.subr.bf16.mxu0 %v3777
    %4169 = vmatpush1.bf16.msra.mxu0 %v3776
    %4170 = vmatprep.subr.bf16.mxu0 %v3784
    %4171 = vmatpush1.bf16.msra.mxu0 %v3783
    %4172 = vmatprep.subr.bf16.mxu0 %v3791
    %4173 = vmatpush1.bf16.msra.mxu0 %v3790
    %4174 = vmatprep.mubr.bf16.mxu0 %v2573
    %4175 = vmatmul.mubr.bf16.gmra.mrb[0].mxu0 %v2572
    %v4176 = vpop.f32.mrb[0].mxu0
    %v4177 = vadd.f32 %v4136, %v4176
    %v4178 = vpop.f32.mrb[0].mxu0
    %v4179 = vadd.f32 %v4138, %v4178
    %v4180 = vpop.f32.mrb[0].mxu0
    %v4181 = vpop.f32.mrb[0].mxu0
    %4182 = vdwg.mxu0
    %4183 = vmatprep.subr.bf16.mxu0 %v3576
    %4184 = vmatpush1.bf16.msra.mxu0 %v3575
    %4185 = vmatprep.subr.bf16.mxu0 %v3583
    %4186 = vmatpush1.bf16.msra.mxu0 %v3582
    %4187 = vmatprep.subr.bf16.mxu0 %v3590
    %4188 = vmatpush1.bf16.msra.mxu0 %v3589
    %4189 = vmatprep.subr.bf16.mxu0 %v3597
    %4190 = vmatpush1.bf16.msra.mxu0 %v3596
    %4191 = vmatprep.subr.bf16.mxu0 %v3604
    %4192 = vmatpush1.bf16.msra.mxu0 %v3603
    %4193 = vmatprep.subr.bf16.mxu0 %v3611
    %4194 = vmatpush1.bf16.msra.mxu0 %v3610
    %4195 = vmatprep.subr.bf16.mxu0 %v3618
    %4196 = vmatpush1.bf16.msra.mxu0 %v3617
    %4197 = vmatprep.subr.bf16.mxu0 %v3625
    %4198 = vmatpush1.bf16.msra.mxu0 %v3624
    %4199 = vmatprep.subr.bf16.mxu0 %v3632
    %4200 = vmatpush1.bf16.msra.mxu0 %v3631
    %4201 = vmatprep.subr.bf16.mxu0 %v3639
    %4202 = vmatpush1.bf16.msra.mxu0 %v3638
    %4203 = vmatprep.subr.bf16.mxu0 %v3646
    %4204 = vmatpush1.bf16.msra.mxu0 %v3645
    %4205 = vmatprep.subr.bf16.mxu0 %v3653
    %4206 = vmatpush1.bf16.msra.mxu0 %v3652
    %4207 = vmatprep.subr.bf16.mxu0 %v3660
    %4208 = vmatpush1.bf16.msra.mxu0 %v3659
    %4209 = vmatprep.subr.bf16.mxu0 %v3667
    %4210 = vmatpush1.bf16.msra.mxu0 %v3666
    %4211 = vmatprep.subr.bf16.mxu0 %v3674
    %4212 = vmatpush1.bf16.msra.mxu0 %v3673
    %4213 = vmatprep.subr.bf16.mxu0 %v3681
    %4214 = vmatpush1.bf16.msra.mxu0 %v3680
    %4215 = vmatprep.mubr.bf16.mxu0 %v2571
    %4216 = vmatmul.mubr.bf16.gmra.mrb[0].mxu0 %v2570
    %v4217 = vpop.f32.mrb[0].mxu0
    %v4218 = vadd.f32 %v2851, %v4217
    %v4219 = vpop.f32.mrb[0].mxu0
    %v4220 = vadd.f32 %v2855, %v4219
    %v4221 = vpop.f32.mrb[0].mxu0
    %v4222 = vpop.f32.mrb[0].mxu0
    %4223 = vdwg.mxu0
    %4224 = vmatprep.subr.bf16.mxu0 %v3688
    %4225 = vmatpush1.bf16.msra.mxu0 %v3687
    %4226 = vmatprep.subr.bf16.mxu0 %v3695
    %4227 = vmatpush1.bf16.msra.mxu0 %v3694
    %4228 = vmatprep.subr.bf16.mxu0 %v3702
    %4229 = vmatpush1.bf16.msra.mxu0 %v3701
    %4230 = vmatprep.subr.bf16.mxu0 %v3709
    %4231 = vmatpush1.bf16.msra.mxu0 %v3708
    %4232 = vmatprep.subr.bf16.mxu0 %v3716
    %4233 = vmatpush1.bf16.msra.mxu0 %v3715
    %4234 = vmatprep.subr.bf16.mxu0 %v3723
    %4235 = vmatpush1.bf16.msra.mxu0 %v3722
    %4236 = vmatprep.subr.bf16.mxu0 %v3730
    %4237 = vmatpush1.bf16.msra.mxu0 %v3729
    %4238 = vmatprep.subr.bf16.mxu0 %v3737
    %4239 = vmatpush1.bf16.msra.mxu0 %v3736
    %4240 = vmatprep.subr.bf16.mxu0 %v3744
    %4241 = vmatpush1.bf16.msra.mxu0 %v3743
    %4242 = vmatprep.subr.bf16.mxu0 %v3751
    %4243 = vmatpush1.bf16.msra.mxu0 %v3750
    %4244 = vmatprep.subr.bf16.mxu0 %v3758
    %4245 = vmatpush1.bf16.msra.mxu0 %v3757
    %4246 = vmatprep.subr.bf16.mxu0 %v3765
    %4247 = vmatpush1.bf16.msra.mxu0 %v3764
    %4248 = vmatprep.subr.bf16.mxu0 %v3772
    %4249 = vmatpush1.bf16.msra.mxu0 %v3771
    %4250 = vmatprep.subr.bf16.mxu0 %v3779
    %4251 = vmatpush1.bf16.msra.mxu0 %v3778
    %4252 = vmatprep.subr.bf16.mxu0 %v3786
    %4253 = vmatpush1.bf16.msra.mxu0 %v3785
    %4254 = vmatprep.subr.bf16.mxu0 %v3793
    %4255 = vmatpush1.bf16.msra.mxu0 %v3792
    %4256 = vmatprep.mubr.bf16.mxu0 %v2573
    %4257 = vmatmul.mubr.bf16.gmra.mrb[0].mxu0 %v2572
    %v4258 = vpop.f32.mrb[0].mxu0
    %v4259 = vadd.f32 %v4218, %v4258
    %v4260 = vpop.f32.mrb[0].mxu0
    %v4261 = vadd.f32 %v4220, %v4260
    %v4262 = vpop.f32.mrb[0].mxu0
    %v4263 = vpop.f32.mrb[0].mxu0
    %4264 = vdwg.mxu0
    %4265 = vmatprep.subr.bf16.mxu0 0
    %4266 = vmatpush1.bf16.msra.mxu0 %v3577
    %4267 = vmatprep.subr.bf16.mxu0 0
    %4268 = vmatpush1.bf16.msra.mxu0 %v3584
    %4269 = vmatprep.subr.bf16.mxu0 0
    %4270 = vmatpush1.bf16.msra.mxu0 %v3591
    %4271 = vmatprep.subr.bf16.mxu0 0
    %4272 = vmatpush1.bf16.msra.mxu0 %v3598
    %4273 = vmatprep.subr.bf16.mxu0 0
    %4274 = vmatpush1.bf16.msra.mxu0 %v3605
    %4275 = vmatprep.subr.bf16.mxu0 0
    %4276 = vmatpush1.bf16.msra.mxu0 %v3612
    %4277 = vmatprep.subr.bf16.mxu0 0
    %4278 = vmatpush1.bf16.msra.mxu0 %v3619
    %4279 = vmatprep.subr.bf16.mxu0 0
    %4280 = vmatpush1.bf16.msra.mxu0 %v3626
    %4281 = vmatprep.subr.bf16.mxu0 0
    %4282 = vmatpush1.bf16.msra.mxu0 %v3633
    %4283 = vmatprep.subr.bf16.mxu0 0
    %4284 = vmatpush1.bf16.msra.mxu0 %v3640
    %4285 = vmatprep.subr.bf16.mxu0 0
    %4286 = vmatpush1.bf16.msra.mxu0 %v3647
    %4287 = vmatprep.subr.bf16.mxu0 0
    %4288 = vmatpush1.bf16.msra.mxu0 %v3654
    %4289 = vmatprep.subr.bf16.mxu0 0
    %4290 = vmatpush1.bf16.msra.mxu0 %v3661
    %4291 = vmatprep.subr.bf16.mxu0 0
    %4292 = vmatpush1.bf16.msra.mxu0 %v3668
    %4293 = vmatprep.subr.bf16.mxu0 0
    %4294 = vmatpush1.bf16.msra.mxu0 %v3675
    %4295 = vmatprep.subr.bf16.mxu0 0
    %4296 = vmatpush1.bf16.msra.mxu0 %v3682
    %4297 = vmatprep.mubr.bf16.mxu0 %v2571
    %4298 = vmatmul.mubr.bf16.gmra.mrb[0].mxu0 %v2570
    %v4299 = vpop.f32.mrb[0].mxu0
    %v4300 = vadd.f32 %v2859, %v4299
    %v4301 = vpop.f32.mrb[0].mxu0
    %v4302 = vpop.f32.mrb[0].mxu0
    %v4303 = vpop.f32.mrb[0].mxu0
    %4304 = vdwg.mxu0
    %4305 = vmatprep.subr.bf16.mxu0 0
    %4306 = vmatpush1.bf16.msra.mxu0 %v3689
    %4307 = vmatprep.subr.bf16.mxu0 0
    %4308 = vmatpush1.bf16.msra.mxu0 %v3696
    %4309 = vmatprep.subr.bf16.mxu0 0
    %4310 = vmatpush1.bf16.msra.mxu0 %v3703
    %4311 = vmatprep.subr.bf16.mxu0 0
    %4312 = vmatpush1.bf16.msra.mxu0 %v3710
    %4313 = vmatprep.subr.bf16.mxu0 0
    %4314 = vmatpush1.bf16.msra.mxu0 %v3717
    %4315 = vmatprep.subr.bf16.mxu0 0
    %4316 = vmatpush1.bf16.msra.mxu0 %v3724
    %4317 = vmatprep.subr.bf16.mxu0 0
    %4318 = vmatpush1.bf16.msra.mxu0 %v3731
    %4319 = vmatprep.subr.bf16.mxu0 0
    %4320 = vmatpush1.bf16.msra.mxu0 %v3738
    %4321 = vmatprep.subr.bf16.mxu0 0
    %4322 = vmatpush1.bf16.msra.mxu0 %v3745
    %4323 = vmatprep.subr.bf16.mxu0 0
    %4324 = vmatpush1.bf16.msra.mxu0 %v3752
    %4325 = vmatprep.subr.bf16.mxu0 0
    %4326 = vmatpush1.bf16.msra.mxu0 %v3759
    %4327 = vmatprep.subr.bf16.mxu0 0
    %4328 = vmatpush1.bf16.msra.mxu0 %v3766
    %4329 = vmatprep.subr.bf16.mxu0 0
    %4330 = vmatpush1.bf16.msra.mxu0 %v3773
    %4331 = vmatprep.subr.bf16.mxu0 0
    %4332 = vmatpush1.bf16.msra.mxu0 %v3780
    %4333 = vmatprep.subr.bf16.mxu0 0
    %4334 = vmatpush1.bf16.msra.mxu0 %v3787
    %4335 = vmatprep.subr.bf16.mxu0 0
    %4336 = vmatpush1.bf16.msra.mxu0 %v3794
    %4337 = vmatprep.mubr.bf16.mxu0 %v2573
    %4338 = vmatmul.mubr.bf16.gmra.mrb[0].mxu0 %v2572
    %v4339 = vpop.f32.mrb[0].mxu0
    %v4340 = vadd.f32 %v4300, %v4339
    %v4341 = vpop.f32.mrb[0].mxu0
    %v4342 = vpop.f32.mrb[0].mxu0
    %v4343 = vpop.f32.mrb[0].mxu0
    %4344 = vdwg.mxu0
    %v4345 = vxor.u32 %v4095, 2147483648
    %v4346 = vxor.u32 %v4097, 2147483648
    %v4347 = vxor.u32 %v4177, 2147483648
    %v4348 = vxor.u32 %v4179, 2147483648
    %v4349 = vxor.u32 %v4259, 2147483648
    %v4350 = vxor.u32 %v4261, 2147483648
    %v4351 = vxor.u32 %v4340, 2147483648
    %v4352 = vmul.f32 %v4345, 1.442695
    %v4353 = vpow.pop %v4352
    %v4354 = vmul.f32 %v4346, 1.442695
    %v4355 = vpow.pop %v4354
    %v4356 = vmul.f32 %v4347, 1.442695
    %v4357 = vpow.pop %v4356
    %v4358 = vmul.f32 %v4348, 1.442695
    %v4359 = vpow.pop %v4358
    %v4360 = vmul.f32 %v4349, 1.442695
    %v4361 = vpow.pop %v4360
    %v4362 = vmul.f32 %v4350, 1.442695
    %v4363 = vpow.pop %v4362
    %v4364 = vmul.f32 %v4351, 1.442695
    %v4365 = vpow.pop %v4364
    %v4366 = vadd.f32 %v4353, 1.0
    %v4367 = vadd.f32 %v4355, 1.0
    %v4368 = vadd.f32 %v4357, 1.0
    %v4369 = vadd.f32 %v4359, 1.0
    %v4370 = vadd.f32 %v4361, 1.0
    %v4371 = vadd.f32 %v4363, 1.0
    %v4372 = vadd.f32 %v4365, 1.0
    %v4373 = vrcp.pop %v4366
    %v4374 = vmul.f32 1.0, %v4373
    %v4375 = vrcp.pop %v4367
    %v4376 = vmul.f32 1.0, %v4375
    %v4377 = vrcp.pop %v4368
    %v4378 = vmul.f32 1.0, %v4377
    %v4379 = vrcp.pop %v4369
    %v4380 = vmul.f32 1.0, %v4379
    %v4381 = vrcp.pop %v4370
    %v4382 = vmul.f32 1.0, %v4381
    %v4383 = vrcp.pop %v4371
    %v4384 = vmul.f32 1.0, %v4383
    %v4385 = vrcp.pop %v4372
    %v4386 = vmul.f32 1.0, %v4385
    %4387 = vst [vmem:[#allocation7] sm:$0xff] %v4374
    %4388 = vst [vmem:[#allocation7 + $0x8] sm:$0xff] %v4376
    %4389 = vst [vmem:[#allocation7 + $0x10] sm:$0xff] %v4378
    %4390 = vst [vmem:[#allocation7 + $0x18] sm:$0xff] %v4380
    %4391 = vst [vmem:[#allocation7 + $0x20] sm:$0xff] %v4382
    %4392 = vst [vmem:[#allocation7 + $0x28] sm:$0xff] %v4384
    %4393 = vst [vmem:[#allocation7 + $0x30] sm:$0xff] %v4386
    %4394 = vst [vmem:[#allocation8] sm:$0xff] %v2257
    %4395 = vst [vmem:[#allocation10] sm:$0xff] %v2259
    // Predicated region
    $region50: #{vae_forward.1} parent=1 // pred_check
      _
    $region51: #{vae_forward.1} parent=1 // pred_check_branch
      %4397 = sbr.rel (0) target = $region53
    $region52: #{vae_forward.1} parent=1 // pred_region
      %s4399 = ssub.s32 896, 896
      %4400 = vsyncadd [#allocation4], %s4399
      %s4402 = sshll.u32 [#allocation7], 4
      %s4403 = int_to_ptr.vmem [resolvable:$true] %s4402
      %4405 = dma.vmem_to_hbm [thread:$0]  %s4403, 896, %s10, [#allocation4]
    $region53: #{vae_forward.1} parent=1 // pred_fallthru
      _
    // Predicated region
    $region54: #{vae_forward.1} parent=1 // pred_check
      _
    $region55: #{vae_forward.1} parent=1 // pred_check_branch
      %4407 = sbr.rel (0) target = $region57
    $region56: #{vae_forward.1} parent=1 // pred_region
      %s4409 = ssub.s32 128, 128
      %4410 = vsyncadd [#allocation9], %s4409
      %s4412 = sshll.u32 [#allocation8], 4
      %s4413 = int_to_ptr.vmem [resolvable:$true] %s4412
      %4415 = dma.vmem_to_hbm [thread:$0]  %s4413, 128, %s11, [#allocation9]
    $region57: #{vae_forward.1} parent=1 // pred_fallthru
      _
    // Predicated region
    $region58: #{vae_forward.1} parent=1 // pred_check
      _
    $region59: #{vae_forward.1} parent=1 // pred_check_branch
      %4417 = sbr.rel (0) target = $region61
    $region60: #{vae_forward.1} parent=1 // pred_region
      %s4419 = ssub.s32 128, 128
      %4420 = vsyncadd [#allocation9], %s4419
      %s4422 = sshll.u32 [#allocation10], 4
      %s4423 = int_to_ptr.vmem [resolvable:$true] %s4422
      %4425 = dma.vmem_to_hbm [thread:$0]  %s4423, 128, %s12, [#allocation9]
    $region61: #{vae_forward.1} parent=1 // pred_fallthru
      _
    // Predicated region
    $region62: #{vae_forward.1} parent=1 // pred_check
      _
    $region63: #{vae_forward.1} parent=1 // pred_check_branch
      %4427 = sbr.rel (0) target = $region65
    $region64: #{vae_forward.1} parent=1 // pred_region
      %4428 = dma.done [#allocation4], 896
    $region65: #{vae_forward.1} parent=1 // pred_fallthru
      _
    // Predicated region
    $region66: #{vae_forward.1} parent=1 // pred_check
      _
    $region67: #{vae_forward.1} parent=1 // pred_check_branch
      %4430 = sbr.rel (0) target = $region69
    $region68: #{vae_forward.1} parent=1 // pred_region
      %4431 = dma.done [#allocation9], 128
    $region69: #{vae_forward.1} parent=1 // pred_fallthru
      _
    // Predicated region
    $region70: #{vae_forward.1} parent=1 // pred_check
      _
    $region71: #{vae_forward.1} parent=1 // pred_check_branch
      %4433 = sbr.rel (0) target = $region73
    $region72: #{vae_forward.1} parent=1 // pred_region
      %4434 = dma.done [#allocation9], 128
    $region73: #{vae_forward.1} parent=1 // pred_fallthru
      _
    %4435 = vsyncpa [#allocation3], 1
    %4436 = vsyncpa [#allocation6], 1
    %4437 = vsyncpa [#allocation4], 1
    %4438 = vsyncpa [#allocation9], 1

</llo_original>
